<compile_context>
chip_gen: v7x
topology: tpu7x:2x2x1
jax: 0.10.0
libtpu: 0.0.40
codegen_flags: <defaults>
</compile_context>

<pallas_src>
import functools

import jax
import jax.numpy as jnp
from jax import lax
from jax.experimental import pallas as pl
from jax.experimental.pallas import tpu as pltpu


def _vq_kernel(z_ref, emb_ref, esq_ref,
               zq_ref, idx_ref, counts_ref, sqerr_ref, *, n_valid):
    i = pl.program_id(0)
    tn, d = z_ref.shape
    k = emb_ref.shape[0]

    z = z_ref[...].astype(jnp.float32)       # [tn, D]
    e = emb_ref[...].astype(jnp.float32)     # [K, D]
    e_sq = esq_ref[...]                      # [1, K]  (precomputed in wrapper)

    # Distances for argmin only: ||z||^2 is a per-row constant and is dropped.
    # dot_general contracting ((1,),(1,)) == z @ e^T with no in-kernel transpose.
    ze_t = lax.dot_general(z, e, (((1,), (1,)), ((), ())),
                           preferred_element_type=jnp.float32)      # [tn, K]
    dist = e_sq - 2.0 * ze_t                                        # [tn, K]

    # argmin with first-occurrence tie-breaking (matches torch.argmin)
    col = lax.broadcasted_iota(jnp.int32, (tn, k), 1)               # [tn, K]
    min_d = jnp.min(dist, axis=1, keepdims=True)                    # [tn, 1]
    idx_col = jnp.min(jnp.where(dist == min_d, col, jnp.int32(k)),
                      axis=1, keepdims=True)                        # [tn, 1]
    enc = (col == idx_col).astype(jnp.float32)                      # [tn, K] one-hot

    # Quantized rows: one-hot gather on the MXU.
    zq = jnp.dot(enc, e, preferred_element_type=jnp.float32)        # [tn, D]
    zq_ref[...] = zq.astype(zq_ref.dtype)

    # Lane-dense index row, produced on the MXU (exact: one product per column),
    # avoiding a [tn,1] -> [1,tn] XLU relayout.
    k_iota = lax.broadcasted_iota(jnp.int32, (1, k), 1).astype(jnp.float32)
    idx_row = lax.dot_general(k_iota, enc, (((1,), (1,)), ((), ())),
                              preferred_element_type=jnp.float32)   # [1, tn]
    idx_ref[...] = (idx_row + 0.5).astype(jnp.int32)[None]          # (1, 1, tn)

    # Valid-row mask: handles the zero-padded tail when N % tile_n != 0.
    lane = lax.broadcasted_iota(jnp.int32, (1, tn), 1)
    vmask = ((lane + i * tn) < n_valid).astype(jnp.float32)         # [1, tn]

    # Per-tile partials (reduced in the JAX epilogue); both on the MXU.
    counts = jnp.dot(vmask, enc, preferred_element_type=jnp.float32)        # [1, K]
    counts_ref[...] = counts[None]                                          # (1,1,K)

    diff = zq - z
    err_d = jnp.dot(vmask, diff * diff, preferred_element_type=jnp.float32)  # [1, D]
    sqerr_ref[...] = jnp.sum(err_d, axis=1, keepdims=True)[None]             # (1,1,1)


def st_quantize_forward(z_nchw, embedding, commitment_cost=0.25, tile_n=512):
    """Forward of STQuantize.

    z_nchw:    [B, C, H, W] float32
    embedding: [num_codes, code_dim] float32 (code_dim == C)
    Returns (z_q [B,C,H,W], loss scalar, (indices [B,H,W] int32, perplexity scalar)).
    """
    B, C, H, W = z_nchw.shape
    K, D = embedding.shape
    assert D == C

    # glue: NCHW -> NHWC -> (N, D)
    z_flat = jnp.transpose(z_nchw, (0, 2, 3, 1)).reshape(B * H * W, C)
    N = z_flat.shape[0]

    # tile sizing: cap at N (rounded to sublane multiple), keep multiple of 8
    tile_n = min(tile_n, ((N + 7) // 8) * 8)
    tile_n = max(8, ((tile_n + 7) // 8) * 8)
    num_tiles = pl.cdiv(N, tile_n)
    n_pad = num_tiles * tile_n
    if n_pad != N:
        z_flat = jnp.pad(z_flat, ((0, n_pad - N), (0, 0)))

    emb_f32 = embedding.astype(jnp.float32)
    # grid-invariant codebook norms, hoisted out of the kernel
    e_sq = jnp.sum(emb_f32 * emb_f32, axis=1)[None, :]               # [1, K]

    kernel = functools.partial(_vq_kernel, n_valid=N)

    zq_flat, idx_rows, counts_p, sqerr_p = pl.pallas_call(
        kernel,
        out_shape=(
            jax.ShapeDtypeStruct((n_pad, D), z_flat.dtype),          # z_q (flattened)
            jax.ShapeDtypeStruct((num_tiles, 1, tile_n), jnp.int32),  # indices (lane-dense)
            jax.ShapeDtypeStruct((num_tiles, 1, K), jnp.float32),    # per-tile code counts
            jax.ShapeDtypeStruct((num_tiles, 1, 1), jnp.float32),    # per-tile sum((zq-z)^2)
        ),
        grid_spec=pltpu.PrefetchScalarGridSpec(
            num_scalar_prefetch=0,
            grid=(num_tiles,),
            in_specs=[
                pl.BlockSpec((tile_n, D), lambda i: (i, 0)),
                pl.BlockSpec((K, D), lambda i: (0, 0)),              # codebook, VMEM-resident
                pl.BlockSpec((1, K), lambda i: (0, 0)),              # e_sq, VMEM-resident
            ],
            out_specs=[
                pl.BlockSpec((tile_n, D), lambda i: (i, 0)),
                pl.BlockSpec((1, 1, tile_n), lambda i: (i, 0, 0)),
                pl.BlockSpec((1, 1, K), lambda i: (i, 0, 0)),
                pl.BlockSpec((1, 1, 1), lambda i: (i, 0, 0)),
            ],
        ),
        compiler_params=pltpu.CompilerParams(
            # no revisited accumulators -> grid can be megacore-sharded (v7x)
            dimension_semantics=("parallel",)),
    )(z_flat, emb_f32, e_sq)

    # scalar epilogue (pure JAX glue): reduce per-tile partials
    counts = jnp.sum(counts_p.reshape(num_tiles, K), axis=0)        # [K]
    sqerr = jnp.sum(sqerr_p)
    avg_use = counts / jnp.float32(N)
    perplexity = jnp.exp(-jnp.sum(avg_use * jnp.log(avg_use + 1e-10)))
    mse = sqerr / jnp.float32(N * D)
    # forward value of commitment_cost*MSE(detach) + MSE(detach) == (1 + cc) * MSE
    loss = (1.0 + commitment_cost) * mse

    # straight-through: forward value of z + (z_q - z).detach() is just z_q
    z_q = jnp.transpose(zq_flat[:N].reshape(B, H, W, C), (0, 3, 1, 2))
    indices = idx_rows.reshape(num_tiles * tile_n)[:N].reshape(B, H, W)
    return z_q, loss, (indices, perplexity)


def _kaiming_uniform(key, shape):
    # matches nn.init.kaiming_uniform_ defaults (a=0 -> gain=sqrt(2), fan_in=shape[1])
    fan_in = shape[1]
    bound = jnp.sqrt(2.0) * jnp.sqrt(3.0 / fan_in)
    return jax.random.uniform(key, shape, jnp.float32, -bound, bound)


def _reference(z_nchw, embedding, commitment_cost=0.25):
    B, C, H, W = z_nchw.shape
    zf = jnp.transpose(z_nchw, (0, 2, 3, 1)).reshape(-1, C)
    dist = (jnp.sum(zf ** 2, 1, keepdims=True) + jnp.sum(embedding ** 2, 1)
            - 2.0 * zf @ embedding.T)
    idx = jnp.argmin(dist, axis=1)
    enc = jax.nn.one_hot(idx, embedding.shape[0], dtype=zf.dtype)
    avg_use = jnp.mean(enc, axis=0)
    perp = jnp.exp(-jnp.sum(avg_use * jnp.log(avg_use + 1e-10)))
    zq = embedding[idx]
    loss = (1.0 + commitment_cost) * jnp.mean((zq - zf) ** 2)
    zq = jnp.transpose(zq.reshape(B, H, W, C), (0, 3, 1, 2))
    return zq, loss, idx.reshape(B, H, W), perp


if __name__ == "__main__":
    code_dim = 4
    num_codes = 16
    B, C, H, W = 2, code_dim, 16, 16

    key = jax.random.PRNGKey(0)
    k_z, k_e = jax.random.split(key)
    z = jax.random.normal(k_z, (B, C, H, W), jnp.float32)
    emb = _kaiming_uniform(k_e, (num_codes, code_dim))

    r_zq, r_loss, r_idx, r_perp = _reference(z, emb)

    # default single 512-row tile, a multi-step grid, and a ragged (padded) grid
    for tn in (512, 128, 200):
        z_q, loss, (indices, perplexity) = st_quantize_forward(z, emb, tile_n=tn)
        jax.block_until_ready((z_q, loss, indices, perplexity))
        assert jnp.allclose(z_q, r_zq, atol=1e-5)
        assert jnp.allclose(loss, r_loss, atol=1e-5)
        assert jnp.array_equal(indices, r_idx)
        assert jnp.allclose(perplexity, r_perp, atol=1e-4)

    print("KERNEL_OK")
</pallas_src>

<mosaic_0001>
module attributes {stable_mosaic.version = 11 : i64} {
  func.func @_vq_kernel(%arg0: i32, %arg1: memref<512x4xf32, #tpu.memory_space<vmem>>, %arg2: memref<16x4xf32, #tpu.memory_space<vmem>>, %arg3: memref<1x16xf32, #tpu.memory_space<vmem>>, %arg4: memref<512x4xf32, #tpu.memory_space<vmem>>, %arg5: memref<1x1x512xi32, #tpu.memory_space<vmem>>, %arg6: memref<1x1x16xf32, #tpu.memory_space<vmem>>, %arg7: memref<1x1x1xf32, #tpu.memory_space<vmem>>) attributes {dimension_semantics = [#tpu.dimension_semantics<parallel>], iteration_bounds = array<i64: 1>, scalar_prefetch = 0 : i64, scratch_operands = 0 : i64, tpu.core_type = #tpu.core_type<tc>, window_params = [{transform_indices = @transform_0, window_bounds = array<i64: 512, 4>}, {pipeline_mode = #tpu.pipeline_mode<synchronous>, transform_indices = @transform_1, window_bounds = array<i64: 16, 4>}, {pipeline_mode = #tpu.pipeline_mode<synchronous>, transform_indices = @transform_2, window_bounds = array<i64: 1, 16>}, {transform_indices = @transform_3, window_bounds = array<i64: 512, 4>}, {transform_indices = @transform_4, window_bounds = array<i64: 1, 1, 512>}, {transform_indices = @transform_5, window_bounds = array<i64: 1, 1, 16>}, {transform_indices = @transform_6, window_bounds = array<i64: 1, 1, 1>}]} {
    %c0 = arith.constant 0 : index
    %c0_0 = arith.constant 0 : index
    %0 = vector.load %arg1[%c0, %c0_0] : memref<512x4xf32, #tpu.memory_space<vmem>>, vector<512x4xf32>
    %c0_1 = arith.constant 0 : index
    %c0_2 = arith.constant 0 : index
    %1 = vector.load %arg2[%c0_1, %c0_2] : memref<16x4xf32, #tpu.memory_space<vmem>>, vector<16x4xf32>
    %c0_3 = arith.constant 0 : index
    %c0_4 = arith.constant 0 : index
    %2 = vector.load %arg3[%c0_3, %c0_4] : memref<1x16xf32, #tpu.memory_space<vmem>>, vector<1x16xf32>
    %cst = arith.constant dense<0.000000e+00> : vector<512x16xf32>
    %3 = tpu.matmul %0, %1, %cst {dimension_numbers = #tpu.dot_dimension_numbers<[1], [1], [0], [0], [0, 0, 1, 0], [], []>} : vector<512x4xf32>, vector<16x4xf32>, vector<512x16xf32> -> vector<512x16xf32>
    %cst_5 = arith.constant 2.000000e+00 : f32
    %4 = vector.broadcast %cst_5 : f32 to vector<512x16xf32>
    %5 = arith.mulf %4, %3 : vector<512x16xf32>
    %6 = vector.broadcast %2 : vector<1x16xf32> to vector<512x16xf32>
    %7 = arith.subf %6, %5 : vector<512x16xf32>
    %8 = tpu.iota {dimensions = array<i32: 1>} : vector<512x16xi32>
    %cst_6 = arith.constant dense<0x7F800000> : vector<512xf32>
    %9 = vector.multi_reduction <minimumf>, %7, %cst_6 [1] : vector<512x16xf32> to vector<512xf32>
    %10 = vector.shape_cast %9 : vector<512xf32> to vector<512x1xf32>
    %11 = vector.broadcast %10 : vector<512x1xf32> to vector<512x16xf32>
    %12 = arith.cmpf oeq, %7, %11 : vector<512x16xf32>
    %c16_i32 = arith.constant 16 : i32
    %13 = vector.broadcast %c16_i32 : i32 to vector<512x16xi32>
    %14 = arith.select %12, %8, %13 : vector<512x16xi1>, vector<512x16xi32>
    %cst_7 = arith.constant dense<2147483647> : vector<512xi32>
    %15 = vector.multi_reduction <minsi>, %14, %cst_7 [1] : vector<512x16xi32> to vector<512xi32>
    %16 = vector.shape_cast %15 : vector<512xi32> to vector<512x1xi32>
    %17 = vector.broadcast %16 : vector<512x1xi32> to vector<512x16xi32>
    %18 = arith.cmpi eq, %8, %17 : vector<512x16xi32>
    %19 = arith.extui %18 : vector<512x16xi1> to vector<512x16xi32>
    %20 = arith.sitofp %19 : vector<512x16xi32> to vector<512x16xf32>
    %cst_8 = arith.constant dense<0.000000e+00> : vector<512x4xf32>
    %21 = tpu.matmul %20, %1, %cst_8 {dimension_numbers = #tpu.dot_dimension_numbers<[1], [0], [0], [1], [0, 0, 1, 1], [], []>} : vector<512x16xf32>, vector<16x4xf32>, vector<512x4xf32> -> vector<512x4xf32>
    %c0_9 = arith.constant 0 : index
    %c0_10 = arith.constant 0 : index
    %22 = vector.load %arg4[%c0_9, %c0_10] : memref<512x4xf32, #tpu.memory_space<vmem>>, vector<512x4xf32>
    tpu.vector_store %arg4[%c0_9, %c0_10], %21 {strides = array<i32>} : memref<512x4xf32, #tpu.memory_space<vmem>>, vector<512x4xf32>,
    %23 = tpu.iota {dimensions = array<i32: 1>} : vector<1x16xi32>
    %24 = arith.sitofp %23 : vector<1x16xi32> to vector<1x16xf32>
    %cst_11 = arith.constant dense<0.000000e+00> : vector<1x512xf32>
    %25 = tpu.matmul %24, %20, %cst_11 {dimension_numbers = #tpu.dot_dimension_numbers<[1], [1], [0], [0], [0, 0, 1, 0], [], []>} : vector<1x16xf32>, vector<512x16xf32>, vector<1x512xf32> -> vector<1x512xf32>
    %cst_12 = arith.constant 5.000000e-01 : f32
    %26 = vector.broadcast %cst_12 : f32 to vector<1x512xf32>
    %27 = arith.addf %25, %26 : vector<1x512xf32>
    %28 = arith.fptosi %27 : vector<1x512xf32> to vector<1x512xi32>
    %29 = vector.shape_cast %28 : vector<1x512xi32> to vector<1x1x512xi32>
    %c0_13 = arith.constant 0 : index
    %c0_14 = arith.constant 0 : index
    %c0_15 = arith.constant 0 : index
    %30 = vector.load %arg5[%c0_13, %c0_14, %c0_15] : memref<1x1x512xi32, #tpu.memory_space<vmem>>, vector<1x1x512xi32>
    tpu.vector_store %arg5[%c0_13, %c0_14, %c0_15], %29 {strides = array<i32>} : memref<1x1x512xi32, #tpu.memory_space<vmem>>, vector<1x1x512xi32>,
    %31 = tpu.iota {dimensions = array<i32: 1>} : vector<1x512xi32>
    %c512_i32 = arith.constant 512 : i32
    %32 = arith.muli %arg0, %c512_i32 : i32
    %33 = vector.broadcast %32 : i32 to vector<1x512xi32>
    %34 = arith.addi %31, %33 : vector<1x512xi32>
    %c512_i32_16 = arith.constant 512 : i32
    %35 = vector.broadcast %c512_i32_16 : i32 to vector<1x512xi32>
    %36 = arith.cmpi slt, %34, %35 : vector<1x512xi32>
    %37 = arith.extui %36 : vector<1x512xi1> to vector<1x512xi32>
    %38 = arith.sitofp %37 : vector<1x512xi32> to vector<1x512xf32>
    %cst_17 = arith.constant dense<0.000000e+00> : vector<1x16xf32>
    %39 = tpu.matmul %38, %20, %cst_17 {dimension_numbers = #tpu.dot_dimension_numbers<[1], [0], [0], [1], [0, 0, 1, 1], [], []>} : vector<1x512xf32>, vector<512x16xf32>, vector<1x16xf32> -> vector<1x16xf32>
    %40 = vector.shape_cast %39 : vector<1x16xf32> to vector<1x1x16xf32>
    %c0_18 = arith.constant 0 : index
    %c0_19 = arith.constant 0 : index
    %c0_20 = arith.constant 0 : index
    %41 = vector.load %arg6[%c0_18, %c0_19, %c0_20] : memref<1x1x16xf32, #tpu.memory_space<vmem>>, vector<1x1x16xf32>
    tpu.vector_store %arg6[%c0_18, %c0_19, %c0_20], %40 {strides = array<i32>} : memref<1x1x16xf32, #tpu.memory_space<vmem>>, vector<1x1x16xf32>,
    %42 = arith.subf %21, %0 : vector<512x4xf32>
    %43 = arith.mulf %42, %42 : vector<512x4xf32>
    %cst_21 = arith.constant dense<0.000000e+00> : vector<1x4xf32>
    %44 = tpu.matmul %38, %43, %cst_21 {dimension_numbers = #tpu.dot_dimension_numbers<[1], [0], [0], [1], [0, 0, 1, 1], [], []>} : vector<1x512xf32>, vector<512x4xf32>, vector<1x4xf32> -> vector<1x4xf32>
    %cst_22 = arith.constant dense<0.000000e+00> : vector<1xf32>
    %45 = vector.multi_reduction <add>, %44, %cst_22 [1] : vector<1x4xf32> to vector<1xf32>
    %46 = vector.shape_cast %45 : vector<1xf32> to vector<1x1xf32>
    %47 = vector.shape_cast %46 : vector<1x1xf32> to vector<1x1x1xf32>
    %c0_23 = arith.constant 0 : index
    %c0_24 = arith.constant 0 : index
    %c0_25 = arith.constant 0 : index
    %48 = vector.load %arg7[%c0_23, %c0_24, %c0_25] : memref<1x1x1xf32, #tpu.memory_space<vmem>>, vector<1x1x1xf32>
    tpu.vector_store %arg7[%c0_23, %c0_24, %c0_25], %47 {strides = array<i32>} : memref<1x1x1xf32, #tpu.memory_space<vmem>>, vector<1x1x1xf32>,
    return
  }
  func.func @transform_0(%arg0: i32) -> (i32, i32) {
    %c0_i32 = arith.constant 0 : i32
    %c0_i32_0 = arith.constant 0 : i32
    return %arg0, %c0_i32 : i32, i32
  }
  func.func @transform_1(%arg0: i32) -> (i32, i32) {
    %c0_i32 = arith.constant 0 : i32
    %c0_i32_0 = arith.constant 0 : i32
    %c0_i32_1 = arith.constant 0 : i32
    return %c0_i32, %c0_i32_0 : i32, i32
  }
  func.func @transform_2(%arg0: i32) -> (i32, i32) {
    %c0_i32 = arith.constant 0 : i32
    %c0_i32_0 = arith.constant 0 : i32
    %c0_i32_1 = arith.constant 0 : i32
    return %c0_i32, %c0_i32_0 : i32, i32
  }
  func.func @transform_3(%arg0: i32) -> (i32, i32) {
    %c0_i32 = arith.constant 0 : i32
    %c0_i32_0 = arith.constant 0 : i32
    return %arg0, %c0_i32 : i32, i32
  }
  func.func @transform_4(%arg0: i32) -> (i32, i32, i32) {
    %c0_i32 = arith.constant 0 : i32
    %c0_i32_0 = arith.constant 0 : i32
    %c0_i32_1 = arith.constant 0 : i32
    return %arg0, %c0_i32, %c0_i32_0 : i32, i32, i32
  }
  func.func @transform_5(%arg0: i32) -> (i32, i32, i32) {
    %c0_i32 = arith.constant 0 : i32
    %c0_i32_0 = arith.constant 0 : i32
    %c0_i32_1 = arith.constant 0 : i32
    return %arg0, %c0_i32, %c0_i32_0 : i32, i32, i32
  }
  func.func @transform_6(%arg0: i32) -> (i32, i32, i32) {
    %c0_i32 = arith.constant 0 : i32
    %c0_i32_0 = arith.constant 0 : i32
    %c0_i32_1 = arith.constant 0 : i32
    return %arg0, %c0_i32, %c0_i32_0 : i32, i32, i32
  }
}

</mosaic_0001>

<llo_original>
// kernel: tpu_custom_call.1
$region0: #{tpu_custom_call.1}
  #allocation0 [shape = 'u32[]', space=smem, size = 0x4, offset = 0x4, fixed_abs, tag = 'smem constant byte address 0x4 - core index']
  #allocation1 [shape = 'u32[144,128]{1,0:T(1,128)}', space=vmem, size = 0x12000, scoped, tag = 'internal scratch']
  %s0 = inlined_call_operand.vmem [shape: f32[512,4], index: 0, kind: input, shape index: {}]
  %s1 = inlined_call_operand.vmem [shape: f32[16,4], index: 1, kind: input, shape index: {}]
  %s2 = inlined_call_operand.vmem [shape: f32[1,16], index: 2, kind: input, shape index: {}]
  %s3 = inlined_call_operand.vmem [shape: f32[512,4], index: 3, kind: output, shape index: {0}]
  %s4 = inlined_call_operand.hbm [shape: s32[1,1,512], index: 4, kind: output, shape index: {1}]
  %s5 = inlined_call_operand.hbm [shape: f32[1,1,16], index: 5, kind: output, shape index: {2}]
  %s6 = inlined_call_operand.hbm [shape: f32[1,1,1], index: 6, kind: output, shape index: {3}]
  %7 = xla_tuple %s3, %s4, %s5, %s6
  %s8 = sld [smem:[#allocation0]]
  $region46: #{tpu_custom_call.1} parent=0
    _
  %s10 = ssub.s32 1, %s8
  %s11 = scalar_select 0, %s10, %s8
  $region1: #{tpu_custom_call.1} parent=0
    #allocation2 [shape = 'u8[2048]{0}', space=vmem, size = 0x800, scoped, tag = 'output window, operand 1, single buffered']
    #allocation3 [shape = 's32[1]{0}', space=sflag, size = 0x4, scoped, tag = 'scoped memory for tpu_custom_call.1']
    #allocation4 [shape = 'u8[512]{0}', space=vmem, size = 0x400, scoped, tag = 'output window, operand 2, single buffered']
    #allocation5 [shape = 's32[1]{0}', space=sflag, size = 0x4, scoped, tag = 'scoped memory for tpu_custom_call.1']
    #allocation6 [shape = 'u8[512]{0}', space=vmem, size = 0x400, scoped, tag = 'output window, operand 3, single buffered']
    %12 = vsyncpa [#allocation3], 0
    %13 = vsyncpa [#allocation5], 0
    // Predicated region
    $region2: #{tpu_custom_call.1} parent=1 // pred_check
      _
    $region3: #{tpu_custom_call.1} parent=1 // pred_check_branch
      %15 = sbr.rel (0) target = $region5
    $region4: #{tpu_custom_call.1} parent=1 // pred_region
      _
    $region5: #{tpu_custom_call.1} parent=1 // pred_fallthru
      _
    // Predicated region
    $region6: #{tpu_custom_call.1} parent=1 // pred_check
      _
    $region7: #{tpu_custom_call.1} parent=1 // pred_check_branch
      %17 = sbr.rel (0) target = $region9
    $region8: #{tpu_custom_call.1} parent=1 // pred_region
      _
    $region9: #{tpu_custom_call.1} parent=1 // pred_fallthru
      _
    // Predicated region
    $region10: #{tpu_custom_call.1} parent=1 // pred_check
      _
    $region11: #{tpu_custom_call.1} parent=1 // pred_check_branch
      %19 = sbr.rel (0) target = $region13
    $region12: #{tpu_custom_call.1} parent=1 // pred_region
      _
    $region13: #{tpu_custom_call.1} parent=1 // pred_fallthru
      _
    %v20 = vld [vmem:[%s0] sm:$0xff]
    %v21 = vld [vmem:[%s0 + $0x8] sm:$0xff]
    %v22 = vld [vmem:[%s0 + $0x10] sm:$0xff]
    %v23 = vld [vmem:[%s0 + $0x18] sm:$0xff]
    %v24 = vld [vmem:[%s0 + $0x20] sm:$0xff]
    %v25 = vld [vmem:[%s0 + $0x28] sm:$0xff]
    %v26 = vld [vmem:[%s0 + $0x30] sm:$0xff]
    %v27 = vld [vmem:[%s0 + $0x38] sm:$0xff]
    %v28 = vld [vmem:[%s0 + $0x40] sm:$0xff]
    %v29 = vld [vmem:[%s0 + $0x48] sm:$0xff]
    %v30 = vld [vmem:[%s0 + $0x50] sm:$0xff]
    %v31 = vld [vmem:[%s0 + $0x58] sm:$0xff]
    %v32 = vld [vmem:[%s0 + $0x60] sm:$0xff]
    %v33 = vld [vmem:[%s0 + $0x68] sm:$0xff]
    %v34 = vld [vmem:[%s0 + $0x70] sm:$0xff]
    %v35 = vld [vmem:[%s0 + $0x78] sm:$0xff]
    %v36 = vld [vmem:[%s0 + $0x80] sm:$0xff]
    %v37 = vld [vmem:[%s0 + $0x88] sm:$0xff]
    %v38 = vld [vmem:[%s0 + $0x90] sm:$0xff]
    %v39 = vld [vmem:[%s0 + $0x98] sm:$0xff]
    %v40 = vld [vmem:[%s0 + $0xa0] sm:$0xff]
    %v41 = vld [vmem:[%s0 + $0xa8] sm:$0xff]
    %v42 = vld [vmem:[%s0 + $0xb0] sm:$0xff]
    %v43 = vld [vmem:[%s0 + $0xb8] sm:$0xff]
    %v44 = vld [vmem:[%s0 + $0xc0] sm:$0xff]
    %v45 = vld [vmem:[%s0 + $0xc8] sm:$0xff]
    %v46 = vld [vmem:[%s0 + $0xd0] sm:$0xff]
    %v47 = vld [vmem:[%s0 + $0xd8] sm:$0xff]
    %v48 = vld [vmem:[%s0 + $0xe0] sm:$0xff]
    %v49 = vld [vmem:[%s0 + $0xe8] sm:$0xff]
    %v50 = vld [vmem:[%s0 + $0xf0] sm:$0xff]
    %v51 = vld [vmem:[%s0 + $0xf8] sm:$0xff]
    %v52 = vld [vmem:[%s0 + $0x100] sm:$0xff]
    %v53 = vld [vmem:[%s0 + $0x108] sm:$0xff]
    %v54 = vld [vmem:[%s0 + $0x110] sm:$0xff]
    %v55 = vld [vmem:[%s0 + $0x118] sm:$0xff]
    %v56 = vld [vmem:[%s0 + $0x120] sm:$0xff]
    %v57 = vld [vmem:[%s0 + $0x128] sm:$0xff]
    %v58 = vld [vmem:[%s0 + $0x130] sm:$0xff]
    %v59 = vld [vmem:[%s0 + $0x138] sm:$0xff]
    %v60 = vld [vmem:[%s0 + $0x140] sm:$0xff]
    %v61 = vld [vmem:[%s0 + $0x148] sm:$0xff]
    %v62 = vld [vmem:[%s0 + $0x150] sm:$0xff]
    %v63 = vld [vmem:[%s0 + $0x158] sm:$0xff]
    %v64 = vld [vmem:[%s0 + $0x160] sm:$0xff]
    %v65 = vld [vmem:[%s0 + $0x168] sm:$0xff]
    %v66 = vld [vmem:[%s0 + $0x170] sm:$0xff]
    %v67 = vld [vmem:[%s0 + $0x178] sm:$0xff]
    %v68 = vld [vmem:[%s0 + $0x180] sm:$0xff]
    %v69 = vld [vmem:[%s0 + $0x188] sm:$0xff]
    %v70 = vld [vmem:[%s0 + $0x190] sm:$0xff]
    %v71 = vld [vmem:[%s0 + $0x198] sm:$0xff]
    %v72 = vld [vmem:[%s0 + $0x1a0] sm:$0xff]
    %v73 = vld [vmem:[%s0 + $0x1a8] sm:$0xff]
    %v74 = vld [vmem:[%s0 + $0x1b0] sm:$0xff]
    %v75 = vld [vmem:[%s0 + $0x1b8] sm:$0xff]
    %v76 = vld [vmem:[%s0 + $0x1c0] sm:$0xff]
    %v77 = vld [vmem:[%s0 + $0x1c8] sm:$0xff]
    %v78 = vld [vmem:[%s0 + $0x1d0] sm:$0xff]
    %v79 = vld [vmem:[%s0 + $0x1d8] sm:$0xff]
    %v80 = vld [vmem:[%s0 + $0x1e0] sm:$0xff]
    %v81 = vld [vmem:[%s0 + $0x1e8] sm:$0xff]
    %v82 = vld [vmem:[%s0 + $0x1f0] sm:$0xff]
    %v83 = vld [vmem:[%s0 + $0x1f8] sm:$0xff]
    %v84 = vld [vmem:[%s1] sm:$0xff]
    %v85 = vld [vmem:[%s1 + $0x8] sm:$0xff]
    %v86 = vld [vmem:[%s2] sm:$0x1]
    %vm87 = vcmask 31744
    %v89 = vsel %vm87, %v20, 0
    %v92 = vsel %vm87, %v21, 0
    %v95 = vsel %vm87, %v22, 0
    %v98 = vsel %vm87, %v23, 0
    %v101 = vsel %vm87, %v24, 0
    %v104 = vsel %vm87, %v25, 0
    %v107 = vsel %vm87, %v26, 0
    %v110 = vsel %vm87, %v27, 0
    %v113 = vsel %vm87, %v28, 0
    %v116 = vsel %vm87, %v29, 0
    %v119 = vsel %vm87, %v30, 0
    %v122 = vsel %vm87, %v31, 0
    %v125 = vsel %vm87, %v32, 0
    %v128 = vsel %vm87, %v33, 0
    %v131 = vsel %vm87, %v34, 0
    %v134 = vsel %vm87, %v35, 0
    %v137 = vsel %vm87, %v36, 0
    %v140 = vsel %vm87, %v37, 0
    %v143 = vsel %vm87, %v38, 0
    %v146 = vsel %vm87, %v39, 0
    %v149 = vsel %vm87, %v40, 0
    %v152 = vsel %vm87, %v41, 0
    %v155 = vsel %vm87, %v42, 0
    %v158 = vsel %vm87, %v43, 0
    %v161 = vsel %vm87, %v44, 0
    %v164 = vsel %vm87, %v45, 0
    %v167 = vsel %vm87, %v46, 0
    %v170 = vsel %vm87, %v47, 0
    %v173 = vsel %vm87, %v48, 0
    %v176 = vsel %vm87, %v49, 0
    %v179 = vsel %vm87, %v50, 0
    %v182 = vsel %vm87, %v51, 0
    %v185 = vsel %vm87, %v52, 0
    %v188 = vsel %vm87, %v53, 0
    %v191 = vsel %vm87, %v54, 0
    %v194 = vsel %vm87, %v55, 0
    %v197 = vsel %vm87, %v56, 0
    %v200 = vsel %vm87, %v57, 0
    %v203 = vsel %vm87, %v58, 0
    %v206 = vsel %vm87, %v59, 0
    %v209 = vsel %vm87, %v60, 0
    %v212 = vsel %vm87, %v61, 0
    %v215 = vsel %vm87, %v62, 0
    %v218 = vsel %vm87, %v63, 0
    %v221 = vsel %vm87, %v64, 0
    %v224 = vsel %vm87, %v65, 0
    %v227 = vsel %vm87, %v66, 0
    %v230 = vsel %vm87, %v67, 0
    %v233 = vsel %vm87, %v68, 0
    %v236 = vsel %vm87, %v69, 0
    %v239 = vsel %vm87, %v70, 0
    %v242 = vsel %vm87, %v71, 0
    %v245 = vsel %vm87, %v72, 0
    %v248 = vsel %vm87, %v73, 0
    %v251 = vsel %vm87, %v74, 0
    %v254 = vsel %vm87, %v75, 0
    %v257 = vsel %vm87, %v76, 0
    %v260 = vsel %vm87, %v77, 0
    %v263 = vsel %vm87, %v78, 0
    %v266 = vsel %vm87, %v79, 0
    %v269 = vsel %vm87, %v80, 0
    %v272 = vsel %vm87, %v81, 0
    %v275 = vsel %vm87, %v82, 0
    %v278 = vsel %vm87, %v83, 0
    %v281 = vsel %vm87, %v84, 0
    %v284 = vsel %vm87, %v85, 0
    %286 = vmatprep.subr.mxu0 0.0
    %287 = vmatpush1.xpose.msra.mxu0 %v281
    %288 = vmatprep.subr.mxu0 0.0
    %289 = vmatpush1.xpose.msra.mxu0 %v284
    %290 = vmatprep.subr.mxu0 0.0
    %291 = vmatpush1.xpose.msra.mxu0 0.0
    %292 = vmatprep.subr.mxu0 0.0
    %293 = vmatpush1.xpose.msra.mxu0 0.0
    %294 = vmatprep.subr.mxu0 0.0
    %295 = vmatpush1.xpose.msra.mxu0 0.0
    %296 = vmatprep.subr.mxu0 0.0
    %297 = vmatpush1.xpose.msra.mxu0 0.0
    %298 = vmatprep.subr.mxu0 0.0
    %299 = vmatpush1.xpose.msra.mxu0 0.0
    %300 = vmatprep.subr.mxu0 0.0
    %301 = vmatpush1.xpose.msra.mxu0 0.0
    %302 = vmatprep.subr.mxu0 0.0
    %303 = vmatpush1.xpose.msra.mxu0 0.0
    %304 = vmatprep.subr.mxu0 0.0
    %305 = vmatpush1.xpose.msra.mxu0 0.0
    %306 = vmatprep.subr.mxu0 0.0
    %307 = vmatpush1.xpose.msra.mxu0 0.0
    %308 = vmatprep.subr.mxu0 0.0
    %309 = vmatpush1.xpose.msra.mxu0 0.0
    %310 = vmatprep.subr.mxu0 0.0
    %311 = vmatpush1.xpose.msra.mxu0 0.0
    %312 = vmatprep.subr.mxu0 0.0
    %313 = vmatpush1.xpose.msra.mxu0 0.0
    %314 = vmatprep.subr.mxu0 0.0
    %315 = vmatpush1.xpose.msra.mxu0 0.0
    %316 = vmatprep.subr.mxu0 0.0
    %317 = vmatpush1.xpose.msra.mxu0 0.0
    %318 = vmatprep.subr.mxu0 0.0
    %319 = vmatpush1.xpose.msra.mxu0 0.0
    %320 = vmatprep.subr.mxu0 0.0
    %321 = vmatpush1.xpose.msra.mxu0 0.0
    %322 = vmatprep.subr.mxu0 0.0
    %323 = vmatpush1.xpose.msra.mxu0 0.0
    %324 = vmatprep.subr.mxu0 0.0
    %325 = vmatpush1.xpose.msra.mxu0 0.0
    %326 = vmatprep.subr.mxu0 0.0
    %327 = vmatpush1.xpose.msra.mxu0 0.0
    %328 = vmatprep.subr.mxu0 0.0
    %329 = vmatpush1.xpose.msra.mxu0 0.0
    %330 = vmatprep.subr.mxu0 0.0
    %331 = vmatpush1.xpose.msra.mxu0 0.0
    %332 = vmatprep.subr.mxu0 0.0
    %333 = vmatpush1.xpose.msra.mxu0 0.0
    %334 = vmatprep.subr.mxu0 0.0
    %335 = vmatpush1.xpose.msra.mxu0 0.0
    %336 = vmatprep.subr.mxu0 0.0
    %337 = vmatpush1.xpose.msra.mxu0 0.0
    %338 = vmatprep.subr.mxu0 0.0
    %339 = vmatpush1.xpose.msra.mxu0 0.0
    %340 = vmatprep.subr.mxu0 0.0
    %341 = vmatpush1.xpose.msra.mxu0 0.0
    %342 = vmatprep.subr.mxu0 0.0
    %343 = vmatpush1.xpose.msra.mxu0 0.0
    %344 = vmatprep.subr.mxu0 0.0
    %345 = vmatpush1.xpose.msra.mxu0 0.0
    %346 = vmatprep.subr.mxu0 0.0
    %347 = vmatpush1.xpose.msra.mxu0 0.0
    %348 = vmatprep.subr.mxu0 0.0
    %349 = vmatpush1.xpose.msra.mxu0 0.0
    %350 = vmatprep.mubr.f32.mxu0 0.0
    %351 = vmatmul.mubr.f32.gmra.mrb[0].mxu0 %v89
    %v352 = vpop.f32.mrb[0].mxu0
    %v353 = vadd.f32 0.0, %v352
    %v354 = vpop.f32.mrb[0].mxu0
    %355 = vmatprep.mubr.f32.mxu0 0.0
    %356 = vmatmul.mubr.f32.gmra.mrb[0].mxu0 %v92
    %v357 = vpop.f32.mrb[0].mxu0
    %v358 = vadd.f32 0.0, %v357
    %v359 = vpop.f32.mrb[0].mxu0
    %360 = vmatprep.mubr.f32.mxu0 0.0
    %361 = vmatmul.mubr.f32.gmra.mrb[0].mxu0 %v95
    %v362 = vpop.f32.mrb[0].mxu0
    %v363 = vadd.f32 0.0, %v362
    %v364 = vpop.f32.mrb[0].mxu0
    %365 = vmatprep.mubr.f32.mxu0 0.0
    %366 = vmatmul.mubr.f32.gmra.mrb[0].mxu0 %v98
    %v367 = vpop.f32.mrb[0].mxu0
    %v368 = vadd.f32 0.0, %v367
    %v369 = vpop.f32.mrb[0].mxu0
    %370 = vmatprep.mubr.f32.mxu0 0.0
    %371 = vmatmul.mubr.f32.gmra.mrb[0].mxu0 %v101
    %v372 = vpop.f32.mrb[0].mxu0
    %v373 = vadd.f32 0.0, %v372
    %v374 = vpop.f32.mrb[0].mxu0
    %375 = vmatprep.mubr.f32.mxu0 0.0
    %376 = vmatmul.mubr.f32.gmra.mrb[0].mxu0 %v104
    %v377 = vpop.f32.mrb[0].mxu0
    %v378 = vadd.f32 0.0, %v377
    %v379 = vpop.f32.mrb[0].mxu0
    %380 = vmatprep.mubr.f32.mxu0 0.0
    %381 = vmatmul.mubr.f32.gmra.mrb[0].mxu0 %v107
    %v382 = vpop.f32.mrb[0].mxu0
    %v383 = vadd.f32 0.0, %v382
    %v384 = vpop.f32.mrb[0].mxu0
    %385 = vmatprep.mubr.f32.mxu0 0.0
    %386 = vmatmul.mubr.f32.gmra.mrb[0].mxu0 %v110
    %v387 = vpop.f32.mrb[0].mxu0
    %v388 = vadd.f32 0.0, %v387
    %v389 = vpop.f32.mrb[0].mxu0
    %390 = vmatprep.mubr.f32.mxu0 0.0
    %391 = vmatmul.mubr.f32.gmra.mrb[0].mxu0 %v113
    %v392 = vpop.f32.mrb[0].mxu0
    %v393 = vadd.f32 0.0, %v392
    %v394 = vpop.f32.mrb[0].mxu0
    %395 = vmatprep.mubr.f32.mxu0 0.0
    %396 = vmatmul.mubr.f32.gmra.mrb[0].mxu0 %v116
    %v397 = vpop.f32.mrb[0].mxu0
    %v398 = vadd.f32 0.0, %v397
    %v399 = vpop.f32.mrb[0].mxu0
    %400 = vmatprep.mubr.f32.mxu0 0.0
    %401 = vmatmul.mubr.f32.gmra.mrb[0].mxu0 %v119
    %v402 = vpop.f32.mrb[0].mxu0
    %v403 = vadd.f32 0.0, %v402
    %v404 = vpop.f32.mrb[0].mxu0
    %405 = vmatprep.mubr.f32.mxu0 0.0
    %406 = vmatmul.mubr.f32.gmra.mrb[0].mxu0 %v122
    %v407 = vpop.f32.mrb[0].mxu0
    %v408 = vadd.f32 0.0, %v407
    %v409 = vpop.f32.mrb[0].mxu0
    %410 = vmatprep.mubr.f32.mxu0 0.0
    %411 = vmatmul.mubr.f32.gmra.mrb[0].mxu0 %v125
    %v412 = vpop.f32.mrb[0].mxu0
    %v413 = vadd.f32 0.0, %v412
    %v414 = vpop.f32.mrb[0].mxu0
    %415 = vmatprep.mubr.f32.mxu0 0.0
    %416 = vmatmul.mubr.f32.gmra.mrb[0].mxu0 %v128
    %v417 = vpop.f32.mrb[0].mxu0
    %v418 = vadd.f32 0.0, %v417
    %v419 = vpop.f32.mrb[0].mxu0
    %420 = vmatprep.mubr.f32.mxu0 0.0
    %421 = vmatmul.mubr.f32.gmra.mrb[0].mxu0 %v131
    %v422 = vpop.f32.mrb[0].mxu0
    %v423 = vadd.f32 0.0, %v422
    %v424 = vpop.f32.mrb[0].mxu0
    %425 = vmatprep.mubr.f32.mxu0 0.0
    %426 = vmatmul.mubr.f32.gmra.mrb[0].mxu0 %v134
    %v427 = vpop.f32.mrb[0].mxu0
    %v428 = vadd.f32 0.0, %v427
    %v429 = vpop.f32.mrb[0].mxu0
    %430 = vmatprep.mubr.f32.mxu0 0.0
    %431 = vmatmul.mubr.f32.gmra.mrb[0].mxu0 %v137
    %v432 = vpop.f32.mrb[0].mxu0
    %v433 = vadd.f32 0.0, %v432
    %v434 = vpop.f32.mrb[0].mxu0
    %435 = vmatprep.mubr.f32.mxu0 0.0
    %436 = vmatmul.mubr.f32.gmra.mrb[0].mxu0 %v140
    %v437 = vpop.f32.mrb[0].mxu0
    %v438 = vadd.f32 0.0, %v437
    %v439 = vpop.f32.mrb[0].mxu0
    %440 = vmatprep.mubr.f32.mxu0 0.0
    %441 = vmatmul.mubr.f32.gmra.mrb[0].mxu0 %v143
    %v442 = vpop.f32.mrb[0].mxu0
    %v443 = vadd.f32 0.0, %v442
    %v444 = vpop.f32.mrb[0].mxu0
    %445 = vmatprep.mubr.f32.mxu0 0.0
    %446 = vmatmul.mubr.f32.gmra.mrb[0].mxu0 %v146
    %v447 = vpop.f32.mrb[0].mxu0
    %v448 = vadd.f32 0.0, %v447
    %v449 = vpop.f32.mrb[0].mxu0
    %450 = vmatprep.mubr.f32.mxu0 0.0
    %451 = vmatmul.mubr.f32.gmra.mrb[0].mxu0 %v149
    %v452 = vpop.f32.mrb[0].mxu0
    %v453 = vadd.f32 0.0, %v452
    %v454 = vpop.f32.mrb[0].mxu0
    %455 = vmatprep.mubr.f32.mxu0 0.0
    %456 = vmatmul.mubr.f32.gmra.mrb[0].mxu0 %v152
    %v457 = vpop.f32.mrb[0].mxu0
    %v458 = vadd.f32 0.0, %v457
    %v459 = vpop.f32.mrb[0].mxu0
    %460 = vmatprep.mubr.f32.mxu0 0.0
    %461 = vmatmul.mubr.f32.gmra.mrb[0].mxu0 %v155
    %v462 = vpop.f32.mrb[0].mxu0
    %v463 = vadd.f32 0.0, %v462
    %v464 = vpop.f32.mrb[0].mxu0
    %465 = vmatprep.mubr.f32.mxu0 0.0
    %466 = vmatmul.mubr.f32.gmra.mrb[0].mxu0 %v158
    %v467 = vpop.f32.mrb[0].mxu0
    %v468 = vadd.f32 0.0, %v467
    %v469 = vpop.f32.mrb[0].mxu0
    %470 = vmatprep.mubr.f32.mxu0 0.0
    %471 = vmatmul.mubr.f32.gmra.mrb[0].mxu0 %v161
    %v472 = vpop.f32.mrb[0].mxu0
    %v473 = vadd.f32 0.0, %v472
    %v474 = vpop.f32.mrb[0].mxu0
    %475 = vmatprep.mubr.f32.mxu0 0.0
    %476 = vmatmul.mubr.f32.gmra.mrb[0].mxu0 %v164
    %v477 = vpop.f32.mrb[0].mxu0
    %v478 = vadd.f32 0.0, %v477
    %v479 = vpop.f32.mrb[0].mxu0
    %480 = vmatprep.mubr.f32.mxu0 0.0
    %481 = vmatmul.mubr.f32.gmra.mrb[0].mxu0 %v167
    %v482 = vpop.f32.mrb[0].mxu0
    %v483 = vadd.f32 0.0, %v482
    %v484 = vpop.f32.mrb[0].mxu0
    %485 = vmatprep.mubr.f32.mxu0 0.0
    %486 = vmatmul.mubr.f32.gmra.mrb[0].mxu0 %v170
    %v487 = vpop.f32.mrb[0].mxu0
    %v488 = vadd.f32 0.0, %v487
    %v489 = vpop.f32.mrb[0].mxu0
    %490 = vmatprep.mubr.f32.mxu0 0.0
    %491 = vmatmul.mubr.f32.gmra.mrb[0].mxu0 %v173
    %v492 = vpop.f32.mrb[0].mxu0
    %v493 = vadd.f32 0.0, %v492
    %v494 = vpop.f32.mrb[0].mxu0
    %495 = vmatprep.mubr.f32.mxu0 0.0
    %496 = vmatmul.mubr.f32.gmra.mrb[0].mxu0 %v176
    %v497 = vpop.f32.mrb[0].mxu0
    %v498 = vadd.f32 0.0, %v497
    %v499 = vpop.f32.mrb[0].mxu0
    %500 = vmatprep.mubr.f32.mxu0 0.0
    %501 = vmatmul.mubr.f32.gmra.mrb[0].mxu0 %v179
    %v502 = vpop.f32.mrb[0].mxu0
    %v503 = vadd.f32 0.0, %v502
    %v504 = vpop.f32.mrb[0].mxu0
    %505 = vmatprep.mubr.f32.mxu0 0.0
    %506 = vmatmul.mubr.f32.gmra.mrb[0].mxu0 %v182
    %v507 = vpop.f32.mrb[0].mxu0
    %v508 = vadd.f32 0.0, %v507
    %v509 = vpop.f32.mrb[0].mxu0
    %510 = vmatprep.mubr.f32.mxu0 0.0
    %511 = vmatmul.mubr.f32.gmra.mrb[0].mxu0 %v185
    %v512 = vpop.f32.mrb[0].mxu0
    %v513 = vadd.f32 0.0, %v512
    %v514 = vpop.f32.mrb[0].mxu0
    %515 = vmatprep.mubr.f32.mxu0 0.0
    %516 = vmatmul.mubr.f32.gmra.mrb[0].mxu0 %v188
    %v517 = vpop.f32.mrb[0].mxu0
    %v518 = vadd.f32 0.0, %v517
    %v519 = vpop.f32.mrb[0].mxu0
    %520 = vmatprep.mubr.f32.mxu0 0.0
    %521 = vmatmul.mubr.f32.gmra.mrb[0].mxu0 %v191
    %v522 = vpop.f32.mrb[0].mxu0
    %v523 = vadd.f32 0.0, %v522
    %v524 = vpop.f32.mrb[0].mxu0
    %525 = vmatprep.mubr.f32.mxu0 0.0
    %526 = vmatmul.mubr.f32.gmra.mrb[0].mxu0 %v194
    %v527 = vpop.f32.mrb[0].mxu0
    %v528 = vadd.f32 0.0, %v527
    %v529 = vpop.f32.mrb[0].mxu0
    %530 = vmatprep.mubr.f32.mxu0 0.0
    %531 = vmatmul.mubr.f32.gmra.mrb[0].mxu0 %v197
    %v532 = vpop.f32.mrb[0].mxu0
    %v533 = vadd.f32 0.0, %v532
    %v534 = vpop.f32.mrb[0].mxu0
    %535 = vmatprep.mubr.f32.mxu0 0.0
    %536 = vmatmul.mubr.f32.gmra.mrb[0].mxu0 %v200
    %v537 = vpop.f32.mrb[0].mxu0
    %v538 = vadd.f32 0.0, %v537
    %v539 = vpop.f32.mrb[0].mxu0
    %540 = vmatprep.mubr.f32.mxu0 0.0
    %541 = vmatmul.mubr.f32.gmra.mrb[0].mxu0 %v203
    %v542 = vpop.f32.mrb[0].mxu0
    %v543 = vadd.f32 0.0, %v542
    %v544 = vpop.f32.mrb[0].mxu0
    %545 = vmatprep.mubr.f32.mxu0 0.0
    %546 = vmatmul.mubr.f32.gmra.mrb[0].mxu0 %v206
    %v547 = vpop.f32.mrb[0].mxu0
    %v548 = vadd.f32 0.0, %v547
    %v549 = vpop.f32.mrb[0].mxu0
    %550 = vmatprep.mubr.f32.mxu0 0.0
    %551 = vmatmul.mubr.f32.gmra.mrb[0].mxu0 %v209
    %v552 = vpop.f32.mrb[0].mxu0
    %v553 = vadd.f32 0.0, %v552
    %v554 = vpop.f32.mrb[0].mxu0
    %555 = vmatprep.mubr.f32.mxu0 0.0
    %556 = vmatmul.mubr.f32.gmra.mrb[0].mxu0 %v212
    %v557 = vpop.f32.mrb[0].mxu0
    %v558 = vadd.f32 0.0, %v557
    %v559 = vpop.f32.mrb[0].mxu0
    %560 = vmatprep.mubr.f32.mxu0 0.0
    %561 = vmatmul.mubr.f32.gmra.mrb[0].mxu0 %v215
    %v562 = vpop.f32.mrb[0].mxu0
    %v563 = vadd.f32 0.0, %v562
    %v564 = vpop.f32.mrb[0].mxu0
    %565 = vmatprep.mubr.f32.mxu0 0.0
    %566 = vmatmul.mubr.f32.gmra.mrb[0].mxu0 %v218
    %v567 = vpop.f32.mrb[0].mxu0
    %v568 = vadd.f32 0.0, %v567
    %v569 = vpop.f32.mrb[0].mxu0
    %570 = vmatprep.mubr.f32.mxu0 0.0
    %571 = vmatmul.mubr.f32.gmra.mrb[0].mxu0 %v221
    %v572 = vpop.f32.mrb[0].mxu0
    %v573 = vadd.f32 0.0, %v572
    %v574 = vpop.f32.mrb[0].mxu0
    %575 = vmatprep.mubr.f32.mxu0 0.0
    %576 = vmatmul.mubr.f32.gmra.mrb[0].mxu0 %v224
    %v577 = vpop.f32.mrb[0].mxu0
    %v578 = vadd.f32 0.0, %v577
    %v579 = vpop.f32.mrb[0].mxu0
    %580 = vmatprep.mubr.f32.mxu0 0.0
    %581 = vmatmul.mubr.f32.gmra.mrb[0].mxu0 %v227
    %v582 = vpop.f32.mrb[0].mxu0
    %v583 = vadd.f32 0.0, %v582
    %v584 = vpop.f32.mrb[0].mxu0
    %585 = vmatprep.mubr.f32.mxu0 0.0
    %586 = vmatmul.mubr.f32.gmra.mrb[0].mxu0 %v230
    %v587 = vpop.f32.mrb[0].mxu0
    %v588 = vadd.f32 0.0, %v587
    %v589 = vpop.f32.mrb[0].mxu0
    %590 = vmatprep.mubr.f32.mxu0 0.0
    %591 = vmatmul.mubr.f32.gmra.mrb[0].mxu0 %v233
    %v592 = vpop.f32.mrb[0].mxu0
    %v593 = vadd.f32 0.0, %v592
    %v594 = vpop.f32.mrb[0].mxu0
    %595 = vmatprep.mubr.f32.mxu0 0.0
    %596 = vmatmul.mubr.f32.gmra.mrb[0].mxu0 %v236
    %v597 = vpop.f32.mrb[0].mxu0
    %v598 = vadd.f32 0.0, %v597
    %v599 = vpop.f32.mrb[0].mxu0
    %600 = vmatprep.mubr.f32.mxu0 0.0
    %601 = vmatmul.mubr.f32.gmra.mrb[0].mxu0 %v239
    %v602 = vpop.f32.mrb[0].mxu0
    %v603 = vadd.f32 0.0, %v602
    %v604 = vpop.f32.mrb[0].mxu0
    %605 = vmatprep.mubr.f32.mxu0 0.0
    %606 = vmatmul.mubr.f32.gmra.mrb[0].mxu0 %v242
    %v607 = vpop.f32.mrb[0].mxu0
    %v608 = vadd.f32 0.0, %v607
    %v609 = vpop.f32.mrb[0].mxu0
    %610 = vmatprep.mubr.f32.mxu0 0.0
    %611 = vmatmul.mubr.f32.gmra.mrb[0].mxu0 %v245
    %v612 = vpop.f32.mrb[0].mxu0
    %v613 = vadd.f32 0.0, %v612
    %v614 = vpop.f32.mrb[0].mxu0
    %615 = vmatprep.mubr.f32.mxu0 0.0
    %616 = vmatmul.mubr.f32.gmra.mrb[0].mxu0 %v248
    %v617 = vpop.f32.mrb[0].mxu0
    %v618 = vadd.f32 0.0, %v617
    %v619 = vpop.f32.mrb[0].mxu0
    %620 = vmatprep.mubr.f32.mxu0 0.0
    %621 = vmatmul.mubr.f32.gmra.mrb[0].mxu0 %v251
    %v622 = vpop.f32.mrb[0].mxu0
    %v623 = vadd.f32 0.0, %v622
    %v624 = vpop.f32.mrb[0].mxu0
    %625 = vmatprep.mubr.f32.mxu0 0.0
    %626 = vmatmul.mubr.f32.gmra.mrb[0].mxu0 %v254
    %v627 = vpop.f32.mrb[0].mxu0
    %v628 = vadd.f32 0.0, %v627
    %v629 = vpop.f32.mrb[0].mxu0
    %630 = vmatprep.mubr.f32.mxu0 0.0
    %631 = vmatmul.mubr.f32.gmra.mrb[0].mxu0 %v257
    %v632 = vpop.f32.mrb[0].mxu0
    %v633 = vadd.f32 0.0, %v632
    %v634 = vpop.f32.mrb[0].mxu0
    %635 = vmatprep.mubr.f32.mxu0 0.0
    %636 = vmatmul.mubr.f32.gmra.mrb[0].mxu0 %v260
    %v637 = vpop.f32.mrb[0].mxu0
    %v638 = vadd.f32 0.0, %v637
    %v639 = vpop.f32.mrb[0].mxu0
    %640 = vmatprep.mubr.f32.mxu0 0.0
    %641 = vmatmul.mubr.f32.gmra.mrb[0].mxu0 %v263
    %v642 = vpop.f32.mrb[0].mxu0
    %v643 = vadd.f32 0.0, %v642
    %v644 = vpop.f32.mrb[0].mxu0
    %645 = vmatprep.mubr.f32.mxu0 0.0
    %646 = vmatmul.mubr.f32.gmra.mrb[0].mxu0 %v266
    %v647 = vpop.f32.mrb[0].mxu0
    %v648 = vadd.f32 0.0, %v647
    %v649 = vpop.f32.mrb[0].mxu0
    %650 = vmatprep.mubr.f32.mxu0 0.0
    %651 = vmatmul.mubr.f32.gmra.mrb[0].mxu0 %v269
    %v652 = vpop.f32.mrb[0].mxu0
    %v653 = vadd.f32 0.0, %v652
    %v654 = vpop.f32.mrb[0].mxu0
    %655 = vmatprep.mubr.f32.mxu0 0.0
    %656 = vmatmul.mubr.f32.gmra.mrb[0].mxu0 %v272
    %v657 = vpop.f32.mrb[0].mxu0
    %v658 = vadd.f32 0.0, %v657
    %v659 = vpop.f32.mrb[0].mxu0
    %660 = vmatprep.mubr.f32.mxu0 0.0
    %661 = vmatmul.mubr.f32.gmra.mrb[0].mxu0 %v275
    %v662 = vpop.f32.mrb[0].mxu0
    %v663 = vadd.f32 0.0, %v662
    %v664 = vpop.f32.mrb[0].mxu0
    %665 = vmatprep.mubr.f32.mxu0 0.0
    %666 = vmatmul.mubr.f32.gmra.mrb[0].mxu0 %v278
    %v667 = vpop.f32.mrb[0].mxu0
    %v668 = vadd.f32 0.0, %v667
    %v669 = vpop.f32.mrb[0].mxu0
    %670 = vdwg.mxu0
    %v671 = vmul.f32 %v353, 2.0
    %v672 = vmul.f32 %v358, 2.0
    %v673 = vmul.f32 %v363, 2.0
    %v674 = vmul.f32 %v368, 2.0
    %v675 = vmul.f32 %v373, 2.0
    %v676 = vmul.f32 %v378, 2.0
    %v677 = vmul.f32 %v383, 2.0
    %v678 = vmul.f32 %v388, 2.0
    %v679 = vmul.f32 %v393, 2.0
    %v680 = vmul.f32 %v398, 2.0
    %v681 = vmul.f32 %v403, 2.0
    %v682 = vmul.f32 %v408, 2.0
    %v683 = vmul.f32 %v413, 2.0
    %v684 = vmul.f32 %v418, 2.0
    %v685 = vmul.f32 %v423, 2.0
    %v686 = vmul.f32 %v428, 2.0
    %v687 = vmul.f32 %v433, 2.0
    %v688 = vmul.f32 %v438, 2.0
    %v689 = vmul.f32 %v443, 2.0
    %v690 = vmul.f32 %v448, 2.0
    %v691 = vmul.f32 %v453, 2.0
    %v692 = vmul.f32 %v458, 2.0
    %v693 = vmul.f32 %v463, 2.0
    %v694 = vmul.f32 %v468, 2.0
    %v695 = vmul.f32 %v473, 2.0
    %v696 = vmul.f32 %v478, 2.0
    %v697 = vmul.f32 %v483, 2.0
    %v698 = vmul.f32 %v488, 2.0
    %v699 = vmul.f32 %v493, 2.0
    %v700 = vmul.f32 %v498, 2.0
    %v701 = vmul.f32 %v503, 2.0
    %v702 = vmul.f32 %v508, 2.0
    %v703 = vmul.f32 %v513, 2.0
    %v704 = vmul.f32 %v518, 2.0
    %v705 = vmul.f32 %v523, 2.0
    %v706 = vmul.f32 %v528, 2.0
    %v707 = vmul.f32 %v533, 2.0
    %v708 = vmul.f32 %v538, 2.0
    %v709 = vmul.f32 %v543, 2.0
    %v710 = vmul.f32 %v548, 2.0
    %v711 = vmul.f32 %v553, 2.0
    %v712 = vmul.f32 %v558, 2.0
    %v713 = vmul.f32 %v563, 2.0
    %v714 = vmul.f32 %v568, 2.0
    %v715 = vmul.f32 %v573, 2.0
    %v716 = vmul.f32 %v578, 2.0
    %v717 = vmul.f32 %v583, 2.0
    %v718 = vmul.f32 %v588, 2.0
    %v719 = vmul.f32 %v593, 2.0
    %v720 = vmul.f32 %v598, 2.0
    %v721 = vmul.f32 %v603, 2.0
    %v722 = vmul.f32 %v608, 2.0
    %v723 = vmul.f32 %v613, 2.0
    %v724 = vmul.f32 %v618, 2.0
    %v725 = vmul.f32 %v623, 2.0
    %v726 = vmul.f32 %v628, 2.0
    %v727 = vmul.f32 %v633, 2.0
    %v728 = vmul.f32 %v638, 2.0
    %v729 = vmul.f32 %v643, 2.0
    %v730 = vmul.f32 %v648, 2.0
    %v731 = vmul.f32 %v653, 2.0
    %v732 = vmul.f32 %v658, 2.0
    %v733 = vmul.f32 %v663, 2.0
    %v734 = vmul.f32 %v668, 2.0
    %v736 = vlaneseq
    %v737 = vshrl.u32 %v736, 7
    %v738 = vsub.s32 0, %v737
    %v739 = vrot.slane %v86, %v738
    %v741 = vsub.f32 %v739, %v671
    %v742 = vsub.f32 %v739, %v672
    %v743 = vsub.f32 %v739, %v673
    %v744 = vsub.f32 %v739, %v674
    %v745 = vsub.f32 %v739, %v675
    %v746 = vsub.f32 %v739, %v676
    %v747 = vsub.f32 %v739, %v677
    %v748 = vsub.f32 %v739, %v678
    %v749 = vsub.f32 %v739, %v679
    %v750 = vsub.f32 %v739, %v680
    %v751 = vsub.f32 %v739, %v681
    %v752 = vsub.f32 %v739, %v682
    %v753 = vsub.f32 %v739, %v683
    %v754 = vsub.f32 %v739, %v684
    %v755 = vsub.f32 %v739, %v685
    %v756 = vsub.f32 %v739, %v686
    %v757 = vsub.f32 %v739, %v687
    %v758 = vsub.f32 %v739, %v688
    %v759 = vsub.f32 %v739, %v689
    %v760 = vsub.f32 %v739, %v690
    %v761 = vsub.f32 %v739, %v691
    %v762 = vsub.f32 %v739, %v692
    %v763 = vsub.f32 %v739, %v693
    %v764 = vsub.f32 %v739, %v694
    %v765 = vsub.f32 %v739, %v695
    %v766 = vsub.f32 %v739, %v696
    %v767 = vsub.f32 %v739, %v697
    %v768 = vsub.f32 %v739, %v698
    %v769 = vsub.f32 %v739, %v699
    %v770 = vsub.f32 %v739, %v700
    %v771 = vsub.f32 %v739, %v701
    %v772 = vsub.f32 %v739, %v702
    %v773 = vsub.f32 %v739, %v703
    %v774 = vsub.f32 %v739, %v704
    %v775 = vsub.f32 %v739, %v705
    %v776 = vsub.f32 %v739, %v706
    %v777 = vsub.f32 %v739, %v707
    %v778 = vsub.f32 %v739, %v708
    %v779 = vsub.f32 %v739, %v709
    %v780 = vsub.f32 %v739, %v710
    %v781 = vsub.f32 %v739, %v711
    %v782 = vsub.f32 %v739, %v712
    %v783 = vsub.f32 %v739, %v713
    %v784 = vsub.f32 %v739, %v714
    %v785 = vsub.f32 %v739, %v715
    %v786 = vsub.f32 %v739, %v716
    %v787 = vsub.f32 %v739, %v717
    %v788 = vsub.f32 %v739, %v718
    %v789 = vsub.f32 %v739, %v719
    %v790 = vsub.f32 %v739, %v720
    %v791 = vsub.f32 %v739, %v721
    %v792 = vsub.f32 %v739, %v722
    %v793 = vsub.f32 %v739, %v723
    %v794 = vsub.f32 %v739, %v724
    %v795 = vsub.f32 %v739, %v725
    %v796 = vsub.f32 %v739, %v726
    %v797 = vsub.f32 %v739, %v727
    %v798 = vsub.f32 %v739, %v728
    %v799 = vsub.f32 %v739, %v729
    %v800 = vsub.f32 %v739, %v730
    %v801 = vsub.f32 %v739, %v731
    %v802 = vsub.f32 %v739, %v732
    %v803 = vsub.f32 %v739, %v733
    %v804 = vsub.f32 %v739, %v734
    %v805 = vlaneseq
    %v806 = vand.u32 %v805, 127
    %vm807 = vcmask 130048
    %v808 = vsel %vm807, %v741, inf
    %809 = vmin.xlane.f32.xlu0 %v808
    %v810 = vpop.xlane.xlu0 %809
    %v811 = vsel %vm807, %v742, inf
    %812 = vmin.xlane.f32.xlu0 %v811
    %v813 = vpop.xlane.xlu0 %812
    %v814 = vsel %vm807, %v743, inf
    %815 = vmin.xlane.f32.xlu0 %v814
    %v816 = vpop.xlane.xlu0 %815
    %v817 = vsel %vm807, %v744, inf
    %818 = vmin.xlane.f32.xlu0 %v817
    %v819 = vpop.xlane.xlu0 %818
    %v820 = vsel %vm807, %v745, inf
    %821 = vmin.xlane.f32.xlu0 %v820
    %v822 = vpop.xlane.xlu0 %821
    %v823 = vsel %vm807, %v746, inf
    %824 = vmin.xlane.f32.xlu0 %v823
    %v825 = vpop.xlane.xlu0 %824
    %v826 = vsel %vm807, %v747, inf
    %827 = vmin.xlane.f32.xlu0 %v826
    %v828 = vpop.xlane.xlu0 %827
    %v829 = vsel %vm807, %v748, inf
    %830 = vmin.xlane.f32.xlu0 %v829
    %v831 = vpop.xlane.xlu0 %830
    %v832 = vsel %vm807, %v749, inf
    %833 = vmin.xlane.f32.xlu0 %v832
    %v834 = vpop.xlane.xlu0 %833
    %v835 = vsel %vm807, %v750, inf
    %836 = vmin.xlane.f32.xlu0 %v835
    %v837 = vpop.xlane.xlu0 %836
    %v838 = vsel %vm807, %v751, inf
    %839 = vmin.xlane.f32.xlu0 %v838
    %v840 = vpop.xlane.xlu0 %839
    %v841 = vsel %vm807, %v752, inf
    %842 = vmin.xlane.f32.xlu0 %v841
    %v843 = vpop.xlane.xlu0 %842
    %v844 = vsel %vm807, %v753, inf
    %845 = vmin.xlane.f32.xlu0 %v844
    %v846 = vpop.xlane.xlu0 %845
    %v847 = vsel %vm807, %v754, inf
    %848 = vmin.xlane.f32.xlu0 %v847
    %v849 = vpop.xlane.xlu0 %848
    %v850 = vsel %vm807, %v755, inf
    %851 = vmin.xlane.f32.xlu0 %v850
    %v852 = vpop.xlane.xlu0 %851
    %v853 = vsel %vm807, %v756, inf
    %854 = vmin.xlane.f32.xlu0 %v853
    %v855 = vpop.xlane.xlu0 %854
    %v856 = vsel %vm807, %v757, inf
    %857 = vmin.xlane.f32.xlu0 %v856
    %v858 = vpop.xlane.xlu0 %857
    %v859 = vsel %vm807, %v758, inf
    %860 = vmin.xlane.f32.xlu0 %v859
    %v861 = vpop.xlane.xlu0 %860
    %v862 = vsel %vm807, %v759, inf
    %863 = vmin.xlane.f32.xlu0 %v862
    %v864 = vpop.xlane.xlu0 %863
    %v865 = vsel %vm807, %v760, inf
    %866 = vmin.xlane.f32.xlu0 %v865
    %v867 = vpop.xlane.xlu0 %866
    %v868 = vsel %vm807, %v761, inf
    %869 = vmin.xlane.f32.xlu0 %v868
    %v870 = vpop.xlane.xlu0 %869
    %v871 = vsel %vm807, %v762, inf
    %872 = vmin.xlane.f32.xlu0 %v871
    %v873 = vpop.xlane.xlu0 %872
    %v874 = vsel %vm807, %v763, inf
    %875 = vmin.xlane.f32.xlu0 %v874
    %v876 = vpop.xlane.xlu0 %875
    %v877 = vsel %vm807, %v764, inf
    %878 = vmin.xlane.f32.xlu0 %v877
    %v879 = vpop.xlane.xlu0 %878
    %v880 = vsel %vm807, %v765, inf
    %881 = vmin.xlane.f32.xlu0 %v880
    %v882 = vpop.xlane.xlu0 %881
    %v883 = vsel %vm807, %v766, inf
    %884 = vmin.xlane.f32.xlu0 %v883
    %v885 = vpop.xlane.xlu0 %884
    %v886 = vsel %vm807, %v767, inf
    %887 = vmin.xlane.f32.xlu0 %v886
    %v888 = vpop.xlane.xlu0 %887
    %v889 = vsel %vm807, %v768, inf
    %890 = vmin.xlane.f32.xlu0 %v889
    %v891 = vpop.xlane.xlu0 %890
    %v892 = vsel %vm807, %v769, inf
    %893 = vmin.xlane.f32.xlu0 %v892
    %v894 = vpop.xlane.xlu0 %893
    %v895 = vsel %vm807, %v770, inf
    %896 = vmin.xlane.f32.xlu0 %v895
    %v897 = vpop.xlane.xlu0 %896
    %v898 = vsel %vm807, %v771, inf
    %899 = vmin.xlane.f32.xlu0 %v898
    %v900 = vpop.xlane.xlu0 %899
    %v901 = vsel %vm807, %v772, inf
    %902 = vmin.xlane.f32.xlu0 %v901
    %v903 = vpop.xlane.xlu0 %902
    %v904 = vsel %vm807, %v773, inf
    %905 = vmin.xlane.f32.xlu0 %v904
    %v906 = vpop.xlane.xlu0 %905
    %v907 = vsel %vm807, %v774, inf
    %908 = vmin.xlane.f32.xlu0 %v907
    %v909 = vpop.xlane.xlu0 %908
    %v910 = vsel %vm807, %v775, inf
    %911 = vmin.xlane.f32.xlu0 %v910
    %v912 = vpop.xlane.xlu0 %911
    %v913 = vsel %vm807, %v776, inf
    %914 = vmin.xlane.f32.xlu0 %v913
    %v915 = vpop.xlane.xlu0 %914
    %v916 = vsel %vm807, %v777, inf
    %917 = vmin.xlane.f32.xlu0 %v916
    %v918 = vpop.xlane.xlu0 %917
    %v919 = vsel %vm807, %v778, inf
    %920 = vmin.xlane.f32.xlu0 %v919
    %v921 = vpop.xlane.xlu0 %920
    %v922 = vsel %vm807, %v779, inf
    %923 = vmin.xlane.f32.xlu0 %v922
    %v924 = vpop.xlane.xlu0 %923
    %v925 = vsel %vm807, %v780, inf
    %926 = vmin.xlane.f32.xlu0 %v925
    %v927 = vpop.xlane.xlu0 %926
    %v928 = vsel %vm807, %v781, inf
    %929 = vmin.xlane.f32.xlu0 %v928
    %v930 = vpop.xlane.xlu0 %929
    %v931 = vsel %vm807, %v782, inf
    %932 = vmin.xlane.f32.xlu0 %v931
    %v933 = vpop.xlane.xlu0 %932
    %v934 = vsel %vm807, %v783, inf
    %935 = vmin.xlane.f32.xlu0 %v934
    %v936 = vpop.xlane.xlu0 %935
    %v937 = vsel %vm807, %v784, inf
    %938 = vmin.xlane.f32.xlu0 %v937
    %v939 = vpop.xlane.xlu0 %938
    %v940 = vsel %vm807, %v785, inf
    %941 = vmin.xlane.f32.xlu0 %v940
    %v942 = vpop.xlane.xlu0 %941
    %v943 = vsel %vm807, %v786, inf
    %944 = vmin.xlane.f32.xlu0 %v943
    %v945 = vpop.xlane.xlu0 %944
    %v946 = vsel %vm807, %v787, inf
    %947 = vmin.xlane.f32.xlu0 %v946
    %v948 = vpop.xlane.xlu0 %947
    %v949 = vsel %vm807, %v788, inf
    %950 = vmin.xlane.f32.xlu0 %v949
    %v951 = vpop.xlane.xlu0 %950
    %v952 = vsel %vm807, %v789, inf
    %953 = vmin.xlane.f32.xlu0 %v952
    %v954 = vpop.xlane.xlu0 %953
    %v955 = vsel %vm807, %v790, inf
    %956 = vmin.xlane.f32.xlu0 %v955
    %v957 = vpop.xlane.xlu0 %956
    %v958 = vsel %vm807, %v791, inf
    %959 = vmin.xlane.f32.xlu0 %v958
    %v960 = vpop.xlane.xlu0 %959
    %v961 = vsel %vm807, %v792, inf
    %962 = vmin.xlane.f32.xlu0 %v961
    %v963 = vpop.xlane.xlu0 %962
    %v964 = vsel %vm807, %v793, inf
    %965 = vmin.xlane.f32.xlu0 %v964
    %v966 = vpop.xlane.xlu0 %965
    %v967 = vsel %vm807, %v794, inf
    %968 = vmin.xlane.f32.xlu0 %v967
    %v969 = vpop.xlane.xlu0 %968
    %v970 = vsel %vm807, %v795, inf
    %971 = vmin.xlane.f32.xlu0 %v970
    %v972 = vpop.xlane.xlu0 %971
    %v973 = vsel %vm807, %v796, inf
    %974 = vmin.xlane.f32.xlu0 %v973
    %v975 = vpop.xlane.xlu0 %974
    %v976 = vsel %vm807, %v797, inf
    %977 = vmin.xlane.f32.xlu0 %v976
    %v978 = vpop.xlane.xlu0 %977
    %v979 = vsel %vm807, %v798, inf
    %980 = vmin.xlane.f32.xlu0 %v979
    %v981 = vpop.xlane.xlu0 %980
    %v982 = vsel %vm807, %v799, inf
    %983 = vmin.xlane.f32.xlu0 %v982
    %v984 = vpop.xlane.xlu0 %983
    %v985 = vsel %vm807, %v800, inf
    %986 = vmin.xlane.f32.xlu0 %v985
    %v987 = vpop.xlane.xlu0 %986
    %v988 = vsel %vm807, %v801, inf
    %989 = vmin.xlane.f32.xlu0 %v988
    %v990 = vpop.xlane.xlu0 %989
    %v991 = vsel %vm807, %v802, inf
    %992 = vmin.xlane.f32.xlu0 %v991
    %v993 = vpop.xlane.xlu0 %992
    %v994 = vsel %vm807, %v803, inf
    %995 = vmin.xlane.f32.xlu0 %v994
    %v996 = vpop.xlane.xlu0 %995
    %v997 = vsel %vm807, %v804, inf
    %998 = vmin.xlane.f32.xlu0 %v997
    %v999 = vpop.xlane.xlu0 %998
    %vm1000 = vcmp.eq.f32.partialorder %v741, %v810
    %vm1001 = vcmp.eq.f32.partialorder %v742, %v813
    %vm1002 = vcmp.eq.f32.partialorder %v743, %v816
    %vm1003 = vcmp.eq.f32.partialorder %v744, %v819
    %vm1004 = vcmp.eq.f32.partialorder %v745, %v822
    %vm1005 = vcmp.eq.f32.partialorder %v746, %v825
    %vm1006 = vcmp.eq.f32.partialorder %v747, %v828
    %vm1007 = vcmp.eq.f32.partialorder %v748, %v831
    %vm1008 = vcmp.eq.f32.partialorder %v749, %v834
    %vm1009 = vcmp.eq.f32.partialorder %v750, %v837
    %vm1010 = vcmp.eq.f32.partialorder %v751, %v840
    %vm1011 = vcmp.eq.f32.partialorder %v752, %v843
    %vm1012 = vcmp.eq.f32.partialorder %v753, %v846
    %vm1013 = vcmp.eq.f32.partialorder %v754, %v849
    %vm1014 = vcmp.eq.f32.partialorder %v755, %v852
    %vm1015 = vcmp.eq.f32.partialorder %v756, %v855
    %vm1016 = vcmp.eq.f32.partialorder %v757, %v858
    %vm1017 = vcmp.eq.f32.partialorder %v758, %v861
    %vm1018 = vcmp.eq.f32.partialorder %v759, %v864
    %vm1019 = vcmp.eq.f32.partialorder %v760, %v867
    %vm1020 = vcmp.eq.f32.partialorder %v761, %v870
    %vm1021 = vcmp.eq.f32.partialorder %v762, %v873
    %vm1022 = vcmp.eq.f32.partialorder %v763, %v876
    %vm1023 = vcmp.eq.f32.partialorder %v764, %v879
    %vm1024 = vcmp.eq.f32.partialorder %v765, %v882
    %vm1025 = vcmp.eq.f32.partialorder %v766, %v885
    %vm1026 = vcmp.eq.f32.partialorder %v767, %v888
    %vm1027 = vcmp.eq.f32.partialorder %v768, %v891
    %vm1028 = vcmp.eq.f32.partialorder %v769, %v894
    %vm1029 = vcmp.eq.f32.partialorder %v770, %v897
    %vm1030 = vcmp.eq.f32.partialorder %v771, %v900
    %vm1031 = vcmp.eq.f32.partialorder %v772, %v903
    %vm1032 = vcmp.eq.f32.partialorder %v773, %v906
    %vm1033 = vcmp.eq.f32.partialorder %v774, %v909
    %vm1034 = vcmp.eq.f32.partialorder %v775, %v912
    %vm1035 = vcmp.eq.f32.partialorder %v776, %v915
    %vm1036 = vcmp.eq.f32.partialorder %v777, %v918
    %vm1037 = vcmp.eq.f32.partialorder %v778, %v921
    %vm1038 = vcmp.eq.f32.partialorder %v779, %v924
    %vm1039 = vcmp.eq.f32.partialorder %v780, %v927
    %vm1040 = vcmp.eq.f32.partialorder %v781, %v930
    %vm1041 = vcmp.eq.f32.partialorder %v782, %v933
    %vm1042 = vcmp.eq.f32.partialorder %v783, %v936
    %vm1043 = vcmp.eq.f32.partialorder %v784, %v939
    %vm1044 = vcmp.eq.f32.partialorder %v785, %v942
    %vm1045 = vcmp.eq.f32.partialorder %v786, %v945
    %vm1046 = vcmp.eq.f32.partialorder %v787, %v948
    %vm1047 = vcmp.eq.f32.partialorder %v788, %v951
    %vm1048 = vcmp.eq.f32.partialorder %v789, %v954
    %vm1049 = vcmp.eq.f32.partialorder %v790, %v957
    %vm1050 = vcmp.eq.f32.partialorder %v791, %v960
    %vm1051 = vcmp.eq.f32.partialorder %v792, %v963
    %vm1052 = vcmp.eq.f32.partialorder %v793, %v966
    %vm1053 = vcmp.eq.f32.partialorder %v794, %v969
    %vm1054 = vcmp.eq.f32.partialorder %v795, %v972
    %vm1055 = vcmp.eq.f32.partialorder %v796, %v975
    %vm1056 = vcmp.eq.f32.partialorder %v797, %v978
    %vm1057 = vcmp.eq.f32.partialorder %v798, %v981
    %vm1058 = vcmp.eq.f32.partialorder %v799, %v984
    %vm1059 = vcmp.eq.f32.partialorder %v800, %v987
    %vm1060 = vcmp.eq.f32.partialorder %v801, %v990
    %vm1061 = vcmp.eq.f32.partialorder %v802, %v993
    %vm1062 = vcmp.eq.f32.partialorder %v803, %v996
    %vm1063 = vcmp.eq.f32.partialorder %v804, %v999
    %v1064 = vsel %vm1000, %v806, 16
    %v1065 = vsel %vm1001, %v806, 16
    %v1066 = vsel %vm1002, %v806, 16
    %v1067 = vsel %vm1003, %v806, 16
    %v1068 = vsel %vm1004, %v806, 16
    %v1069 = vsel %vm1005, %v806, 16
    %v1070 = vsel %vm1006, %v806, 16
    %v1071 = vsel %vm1007, %v806, 16
    %v1072 = vsel %vm1008, %v806, 16
    %v1073 = vsel %vm1009, %v806, 16
    %v1074 = vsel %vm1010, %v806, 16
    %v1075 = vsel %vm1011, %v806, 16
    %v1076 = vsel %vm1012, %v806, 16
    %v1077 = vsel %vm1013, %v806, 16
    %v1078 = vsel %vm1014, %v806, 16
    %v1079 = vsel %vm1015, %v806, 16
    %v1080 = vsel %vm1016, %v806, 16
    %v1081 = vsel %vm1017, %v806, 16
    %v1082 = vsel %vm1018, %v806, 16
    %v1083 = vsel %vm1019, %v806, 16
    %v1084 = vsel %vm1020, %v806, 16
    %v1085 = vsel %vm1021, %v806, 16
    %v1086 = vsel %vm1022, %v806, 16
    %v1087 = vsel %vm1023, %v806, 16
    %v1088 = vsel %vm1024, %v806, 16
    %v1089 = vsel %vm1025, %v806, 16
    %v1090 = vsel %vm1026, %v806, 16
    %v1091 = vsel %vm1027, %v806, 16
    %v1092 = vsel %vm1028, %v806, 16
    %v1093 = vsel %vm1029, %v806, 16
    %v1094 = vsel %vm1030, %v806, 16
    %v1095 = vsel %vm1031, %v806, 16
    %v1096 = vsel %vm1032, %v806, 16
    %v1097 = vsel %vm1033, %v806, 16
    %v1098 = vsel %vm1034, %v806, 16
    %v1099 = vsel %vm1035, %v806, 16
    %v1100 = vsel %vm1036, %v806, 16
    %v1101 = vsel %vm1037, %v806, 16
    %v1102 = vsel %vm1038, %v806, 16
    %v1103 = vsel %vm1039, %v806, 16
    %v1104 = vsel %vm1040, %v806, 16
    %v1105 = vsel %vm1041, %v806, 16
    %v1106 = vsel %vm1042, %v806, 16
    %v1107 = vsel %vm1043, %v806, 16
    %v1108 = vsel %vm1044, %v806, 16
    %v1109 = vsel %vm1045, %v806, 16
    %v1110 = vsel %vm1046, %v806, 16
    %v1111 = vsel %vm1047, %v806, 16
    %v1112 = vsel %vm1048, %v806, 16
    %v1113 = vsel %vm1049, %v806, 16
    %v1114 = vsel %vm1050, %v806, 16
    %v1115 = vsel %vm1051, %v806, 16
    %v1116 = vsel %vm1052, %v806, 16
    %v1117 = vsel %vm1053, %v806, 16
    %v1118 = vsel %vm1054, %v806, 16
    %v1119 = vsel %vm1055, %v806, 16
    %v1120 = vsel %vm1056, %v806, 16
    %v1121 = vsel %vm1057, %v806, 16
    %v1122 = vsel %vm1058, %v806, 16
    %v1123 = vsel %vm1059, %v806, 16
    %v1124 = vsel %vm1060, %v806, 16
    %v1125 = vsel %vm1061, %v806, 16
    %v1126 = vsel %vm1062, %v806, 16
    %v1127 = vsel %vm1063, %v806, 16
    %v1128 = vsel %vm807, %v1064, 2147483647
    %v1129 = vand.u32 %v1128, 65535
    %v1130 = vshra.s32 %v1128, 16
    %v1131 = vcvt.s32.f32 %v1129
    %v1132 = vcvt.s32.f32 %v1130
    %1133 = vmin.xlane.f32.xlu0 %v1132
    %v1134 = vpop.xlane.xlu0 %1133
    %vm1135 = vcmp.eq.f32.partialorder %v1132, %v1134
    %v1136 = vsel %vm1135, %v1131, inf
    %1137 = vmin.xlane.f32.xlu0 %v1136
    %v1138 = vpop.xlane.xlu0 %1137
    %v1139 = vcvt.f32.s32 %v1138
    %v1140 = vcvt.f32.s32 %v1134
    %v1141 = vshll.u32 %v1140, 16
    %v1142 = vadd.s32 %v1141, %v1139
    %v1143 = vsel %vm807, %v1065, 2147483647
    %v1144 = vand.u32 %v1143, 65535
    %v1145 = vshra.s32 %v1143, 16
    %v1146 = vcvt.s32.f32 %v1144
    %v1147 = vcvt.s32.f32 %v1145
    %1148 = vmin.xlane.f32.xlu0 %v1147
    %v1149 = vpop.xlane.xlu0 %1148
    %vm1150 = vcmp.eq.f32.partialorder %v1147, %v1149
    %v1151 = vsel %vm1150, %v1146, inf
    %1152 = vmin.xlane.f32.xlu0 %v1151
    %v1153 = vpop.xlane.xlu0 %1152
    %v1154 = vcvt.f32.s32 %v1153
    %v1155 = vcvt.f32.s32 %v1149
    %v1156 = vshll.u32 %v1155, 16
    %v1157 = vadd.s32 %v1156, %v1154
    %v1158 = vsel %vm807, %v1066, 2147483647
    %v1159 = vand.u32 %v1158, 65535
    %v1160 = vshra.s32 %v1158, 16
    %v1161 = vcvt.s32.f32 %v1159
    %v1162 = vcvt.s32.f32 %v1160
    %1163 = vmin.xlane.f32.xlu0 %v1162
    %v1164 = vpop.xlane.xlu0 %1163
    %vm1165 = vcmp.eq.f32.partialorder %v1162, %v1164
    %v1166 = vsel %vm1165, %v1161, inf
    %1167 = vmin.xlane.f32.xlu0 %v1166
    %v1168 = vpop.xlane.xlu0 %1167
    %v1169 = vcvt.f32.s32 %v1168
    %v1170 = vcvt.f32.s32 %v1164
    %v1171 = vshll.u32 %v1170, 16
    %v1172 = vadd.s32 %v1171, %v1169
    %v1173 = vsel %vm807, %v1067, 2147483647
    %v1174 = vand.u32 %v1173, 65535
    %v1175 = vshra.s32 %v1173, 16
    %v1176 = vcvt.s32.f32 %v1174
    %v1177 = vcvt.s32.f32 %v1175
    %1178 = vmin.xlane.f32.xlu0 %v1177
    %v1179 = vpop.xlane.xlu0 %1178
    %vm1180 = vcmp.eq.f32.partialorder %v1177, %v1179
    %v1181 = vsel %vm1180, %v1176, inf
    %1182 = vmin.xlane.f32.xlu0 %v1181
    %v1183 = vpop.xlane.xlu0 %1182
    %v1184 = vcvt.f32.s32 %v1183
    %v1185 = vcvt.f32.s32 %v1179
    %v1186 = vshll.u32 %v1185, 16
    %v1187 = vadd.s32 %v1186, %v1184
    %v1188 = vsel %vm807, %v1068, 2147483647
    %v1189 = vand.u32 %v1188, 65535
    %v1190 = vshra.s32 %v1188, 16
    %v1191 = vcvt.s32.f32 %v1189
    %v1192 = vcvt.s32.f32 %v1190
    %1193 = vmin.xlane.f32.xlu0 %v1192
    %v1194 = vpop.xlane.xlu0 %1193
    %vm1195 = vcmp.eq.f32.partialorder %v1192, %v1194
    %v1196 = vsel %vm1195, %v1191, inf
    %1197 = vmin.xlane.f32.xlu0 %v1196
    %v1198 = vpop.xlane.xlu0 %1197
    %v1199 = vcvt.f32.s32 %v1198
    %v1200 = vcvt.f32.s32 %v1194
    %v1201 = vshll.u32 %v1200, 16
    %v1202 = vadd.s32 %v1201, %v1199
    %v1203 = vsel %vm807, %v1069, 2147483647
    %v1204 = vand.u32 %v1203, 65535
    %v1205 = vshra.s32 %v1203, 16
    %v1206 = vcvt.s32.f32 %v1204
    %v1207 = vcvt.s32.f32 %v1205
    %1208 = vmin.xlane.f32.xlu0 %v1207
    %v1209 = vpop.xlane.xlu0 %1208
    %vm1210 = vcmp.eq.f32.partialorder %v1207, %v1209
    %v1211 = vsel %vm1210, %v1206, inf
    %1212 = vmin.xlane.f32.xlu0 %v1211
    %v1213 = vpop.xlane.xlu0 %1212
    %v1214 = vcvt.f32.s32 %v1213
    %v1215 = vcvt.f32.s32 %v1209
    %v1216 = vshll.u32 %v1215, 16
    %v1217 = vadd.s32 %v1216, %v1214
    %v1218 = vsel %vm807, %v1070, 2147483647
    %v1219 = vand.u32 %v1218, 65535
    %v1220 = vshra.s32 %v1218, 16
    %v1221 = vcvt.s32.f32 %v1219
    %v1222 = vcvt.s32.f32 %v1220
    %1223 = vmin.xlane.f32.xlu0 %v1222
    %v1224 = vpop.xlane.xlu0 %1223
    %vm1225 = vcmp.eq.f32.partialorder %v1222, %v1224
    %v1226 = vsel %vm1225, %v1221, inf
    %1227 = vmin.xlane.f32.xlu0 %v1226
    %v1228 = vpop.xlane.xlu0 %1227
    %v1229 = vcvt.f32.s32 %v1228
    %v1230 = vcvt.f32.s32 %v1224
    %v1231 = vshll.u32 %v1230, 16
    %v1232 = vadd.s32 %v1231, %v1229
    %v1233 = vsel %vm807, %v1071, 2147483647
    %v1234 = vand.u32 %v1233, 65535
    %v1235 = vshra.s32 %v1233, 16
    %v1236 = vcvt.s32.f32 %v1234
    %v1237 = vcvt.s32.f32 %v1235
    %1238 = vmin.xlane.f32.xlu0 %v1237
    %v1239 = vpop.xlane.xlu0 %1238
    %vm1240 = vcmp.eq.f32.partialorder %v1237, %v1239
    %v1241 = vsel %vm1240, %v1236, inf
    %1242 = vmin.xlane.f32.xlu0 %v1241
    %v1243 = vpop.xlane.xlu0 %1242
    %v1244 = vcvt.f32.s32 %v1243
    %v1245 = vcvt.f32.s32 %v1239
    %v1246 = vshll.u32 %v1245, 16
    %v1247 = vadd.s32 %v1246, %v1244
    %v1248 = vsel %vm807, %v1072, 2147483647
    %v1249 = vand.u32 %v1248, 65535
    %v1250 = vshra.s32 %v1248, 16
    %v1251 = vcvt.s32.f32 %v1249
    %v1252 = vcvt.s32.f32 %v1250
    %1253 = vmin.xlane.f32.xlu0 %v1252
    %v1254 = vpop.xlane.xlu0 %1253
    %vm1255 = vcmp.eq.f32.partialorder %v1252, %v1254
    %v1256 = vsel %vm1255, %v1251, inf
    %1257 = vmin.xlane.f32.xlu0 %v1256
    %v1258 = vpop.xlane.xlu0 %1257
    %v1259 = vcvt.f32.s32 %v1258
    %v1260 = vcvt.f32.s32 %v1254
    %v1261 = vshll.u32 %v1260, 16
    %v1262 = vadd.s32 %v1261, %v1259
    %v1263 = vsel %vm807, %v1073, 2147483647
    %v1264 = vand.u32 %v1263, 65535
    %v1265 = vshra.s32 %v1263, 16
    %v1266 = vcvt.s32.f32 %v1264
    %v1267 = vcvt.s32.f32 %v1265
    %1268 = vmin.xlane.f32.xlu0 %v1267
    %v1269 = vpop.xlane.xlu0 %1268
    %vm1270 = vcmp.eq.f32.partialorder %v1267, %v1269
    %v1271 = vsel %vm1270, %v1266, inf
    %1272 = vmin.xlane.f32.xlu0 %v1271
    %v1273 = vpop.xlane.xlu0 %1272
    %v1274 = vcvt.f32.s32 %v1273
    %v1275 = vcvt.f32.s32 %v1269
    %v1276 = vshll.u32 %v1275, 16
    %v1277 = vadd.s32 %v1276, %v1274
    %v1278 = vsel %vm807, %v1074, 2147483647
    %v1279 = vand.u32 %v1278, 65535
    %v1280 = vshra.s32 %v1278, 16
    %v1281 = vcvt.s32.f32 %v1279
    %v1282 = vcvt.s32.f32 %v1280
    %1283 = vmin.xlane.f32.xlu0 %v1282
    %v1284 = vpop.xlane.xlu0 %1283
    %vm1285 = vcmp.eq.f32.partialorder %v1282, %v1284
    %v1286 = vsel %vm1285, %v1281, inf
    %1287 = vmin.xlane.f32.xlu0 %v1286
    %v1288 = vpop.xlane.xlu0 %1287
    %v1289 = vcvt.f32.s32 %v1288
    %v1290 = vcvt.f32.s32 %v1284
    %v1291 = vshll.u32 %v1290, 16
    %v1292 = vadd.s32 %v1291, %v1289
    %v1293 = vsel %vm807, %v1075, 2147483647
    %v1294 = vand.u32 %v1293, 65535
    %v1295 = vshra.s32 %v1293, 16
    %v1296 = vcvt.s32.f32 %v1294
    %v1297 = vcvt.s32.f32 %v1295
    %1298 = vmin.xlane.f32.xlu0 %v1297
    %v1299 = vpop.xlane.xlu0 %1298
    %vm1300 = vcmp.eq.f32.partialorder %v1297, %v1299
    %v1301 = vsel %vm1300, %v1296, inf
    %1302 = vmin.xlane.f32.xlu0 %v1301
    %v1303 = vpop.xlane.xlu0 %1302
    %v1304 = vcvt.f32.s32 %v1303
    %v1305 = vcvt.f32.s32 %v1299
    %v1306 = vshll.u32 %v1305, 16
    %v1307 = vadd.s32 %v1306, %v1304
    %v1308 = vsel %vm807, %v1076, 2147483647
    %v1309 = vand.u32 %v1308, 65535
    %v1310 = vshra.s32 %v1308, 16
    %v1311 = vcvt.s32.f32 %v1309
    %v1312 = vcvt.s32.f32 %v1310
    %1313 = vmin.xlane.f32.xlu0 %v1312
    %v1314 = vpop.xlane.xlu0 %1313
    %vm1315 = vcmp.eq.f32.partialorder %v1312, %v1314
    %v1316 = vsel %vm1315, %v1311, inf
    %1317 = vmin.xlane.f32.xlu0 %v1316
    %v1318 = vpop.xlane.xlu0 %1317
    %v1319 = vcvt.f32.s32 %v1318
    %v1320 = vcvt.f32.s32 %v1314
    %v1321 = vshll.u32 %v1320, 16
    %v1322 = vadd.s32 %v1321, %v1319
    %v1323 = vsel %vm807, %v1077, 2147483647
    %v1324 = vand.u32 %v1323, 65535
    %v1325 = vshra.s32 %v1323, 16
    %v1326 = vcvt.s32.f32 %v1324
    %v1327 = vcvt.s32.f32 %v1325
    %1328 = vmin.xlane.f32.xlu0 %v1327
    %v1329 = vpop.xlane.xlu0 %1328
    %vm1330 = vcmp.eq.f32.partialorder %v1327, %v1329
    %v1331 = vsel %vm1330, %v1326, inf
    %1332 = vmin.xlane.f32.xlu0 %v1331
    %v1333 = vpop.xlane.xlu0 %1332
    %v1334 = vcvt.f32.s32 %v1333
    %v1335 = vcvt.f32.s32 %v1329
    %v1336 = vshll.u32 %v1335, 16
    %v1337 = vadd.s32 %v1336, %v1334
    %v1338 = vsel %vm807, %v1078, 2147483647
    %v1339 = vand.u32 %v1338, 65535
    %v1340 = vshra.s32 %v1338, 16
    %v1341 = vcvt.s32.f32 %v1339
    %v1342 = vcvt.s32.f32 %v1340
    %1343 = vmin.xlane.f32.xlu0 %v1342
    %v1344 = vpop.xlane.xlu0 %1343
    %vm1345 = vcmp.eq.f32.partialorder %v1342, %v1344
    %v1346 = vsel %vm1345, %v1341, inf
    %1347 = vmin.xlane.f32.xlu0 %v1346
    %v1348 = vpop.xlane.xlu0 %1347
    %v1349 = vcvt.f32.s32 %v1348
    %v1350 = vcvt.f32.s32 %v1344
    %v1351 = vshll.u32 %v1350, 16
    %v1352 = vadd.s32 %v1351, %v1349
    %v1353 = vsel %vm807, %v1079, 2147483647
    %v1354 = vand.u32 %v1353, 65535
    %v1355 = vshra.s32 %v1353, 16
    %v1356 = vcvt.s32.f32 %v1354
    %v1357 = vcvt.s32.f32 %v1355
    %1358 = vmin.xlane.f32.xlu0 %v1357
    %v1359 = vpop.xlane.xlu0 %1358
    %vm1360 = vcmp.eq.f32.partialorder %v1357, %v1359
    %v1361 = vsel %vm1360, %v1356, inf
    %1362 = vmin.xlane.f32.xlu0 %v1361
    %v1363 = vpop.xlane.xlu0 %1362
    %v1364 = vcvt.f32.s32 %v1363
    %v1365 = vcvt.f32.s32 %v1359
    %v1366 = vshll.u32 %v1365, 16
    %v1367 = vadd.s32 %v1366, %v1364
    %v1368 = vsel %vm807, %v1080, 2147483647
    %v1369 = vand.u32 %v1368, 65535
    %v1370 = vshra.s32 %v1368, 16
    %v1371 = vcvt.s32.f32 %v1369
    %v1372 = vcvt.s32.f32 %v1370
    %1373 = vmin.xlane.f32.xlu0 %v1372
    %v1374 = vpop.xlane.xlu0 %1373
    %vm1375 = vcmp.eq.f32.partialorder %v1372, %v1374
    %v1376 = vsel %vm1375, %v1371, inf
    %1377 = vmin.xlane.f32.xlu0 %v1376
    %v1378 = vpop.xlane.xlu0 %1377
    %v1379 = vcvt.f32.s32 %v1378
    %v1380 = vcvt.f32.s32 %v1374
    %v1381 = vshll.u32 %v1380, 16
    %v1382 = vadd.s32 %v1381, %v1379
    %v1383 = vsel %vm807, %v1081, 2147483647
    %v1384 = vand.u32 %v1383, 65535
    %v1385 = vshra.s32 %v1383, 16
    %v1386 = vcvt.s32.f32 %v1384
    %v1387 = vcvt.s32.f32 %v1385
    %1388 = vmin.xlane.f32.xlu0 %v1387
    %v1389 = vpop.xlane.xlu0 %1388
    %vm1390 = vcmp.eq.f32.partialorder %v1387, %v1389
    %v1391 = vsel %vm1390, %v1386, inf
    %1392 = vmin.xlane.f32.xlu0 %v1391
    %v1393 = vpop.xlane.xlu0 %1392
    %v1394 = vcvt.f32.s32 %v1393
    %v1395 = vcvt.f32.s32 %v1389
    %v1396 = vshll.u32 %v1395, 16
    %v1397 = vadd.s32 %v1396, %v1394
    %v1398 = vsel %vm807, %v1082, 2147483647
    %v1399 = vand.u32 %v1398, 65535
    %v1400 = vshra.s32 %v1398, 16
    %v1401 = vcvt.s32.f32 %v1399
    %v1402 = vcvt.s32.f32 %v1400
    %1403 = vmin.xlane.f32.xlu0 %v1402
    %v1404 = vpop.xlane.xlu0 %1403
    %vm1405 = vcmp.eq.f32.partialorder %v1402, %v1404
    %v1406 = vsel %vm1405, %v1401, inf
    %1407 = vmin.xlane.f32.xlu0 %v1406
    %v1408 = vpop.xlane.xlu0 %1407
    %v1409 = vcvt.f32.s32 %v1408
    %v1410 = vcvt.f32.s32 %v1404
    %v1411 = vshll.u32 %v1410, 16
    %v1412 = vadd.s32 %v1411, %v1409
    %v1413 = vsel %vm807, %v1083, 2147483647
    %v1414 = vand.u32 %v1413, 65535
    %v1415 = vshra.s32 %v1413, 16
    %v1416 = vcvt.s32.f32 %v1414
    %v1417 = vcvt.s32.f32 %v1415
    %1418 = vmin.xlane.f32.xlu0 %v1417
    %v1419 = vpop.xlane.xlu0 %1418
    %vm1420 = vcmp.eq.f32.partialorder %v1417, %v1419
    %v1421 = vsel %vm1420, %v1416, inf
    %1422 = vmin.xlane.f32.xlu0 %v1421
    %v1423 = vpop.xlane.xlu0 %1422
    %v1424 = vcvt.f32.s32 %v1423
    %v1425 = vcvt.f32.s32 %v1419
    %v1426 = vshll.u32 %v1425, 16
    %v1427 = vadd.s32 %v1426, %v1424
    %v1428 = vsel %vm807, %v1084, 2147483647
    %v1429 = vand.u32 %v1428, 65535
    %v1430 = vshra.s32 %v1428, 16
    %v1431 = vcvt.s32.f32 %v1429
    %v1432 = vcvt.s32.f32 %v1430
    %1433 = vmin.xlane.f32.xlu0 %v1432
    %v1434 = vpop.xlane.xlu0 %1433
    %vm1435 = vcmp.eq.f32.partialorder %v1432, %v1434
    %v1436 = vsel %vm1435, %v1431, inf
    %1437 = vmin.xlane.f32.xlu0 %v1436
    %v1438 = vpop.xlane.xlu0 %1437
    %v1439 = vcvt.f32.s32 %v1438
    %v1440 = vcvt.f32.s32 %v1434
    %v1441 = vshll.u32 %v1440, 16
    %v1442 = vadd.s32 %v1441, %v1439
    %v1443 = vsel %vm807, %v1085, 2147483647
    %v1444 = vand.u32 %v1443, 65535
    %v1445 = vshra.s32 %v1443, 16
    %v1446 = vcvt.s32.f32 %v1444
    %v1447 = vcvt.s32.f32 %v1445
    %1448 = vmin.xlane.f32.xlu0 %v1447
    %v1449 = vpop.xlane.xlu0 %1448
    %vm1450 = vcmp.eq.f32.partialorder %v1447, %v1449
    %v1451 = vsel %vm1450, %v1446, inf
    %1452 = vmin.xlane.f32.xlu0 %v1451
    %v1453 = vpop.xlane.xlu0 %1452
    %v1454 = vcvt.f32.s32 %v1453
    %v1455 = vcvt.f32.s32 %v1449
    %v1456 = vshll.u32 %v1455, 16
    %v1457 = vadd.s32 %v1456, %v1454
    %v1458 = vsel %vm807, %v1086, 2147483647
    %v1459 = vand.u32 %v1458, 65535
    %v1460 = vshra.s32 %v1458, 16
    %v1461 = vcvt.s32.f32 %v1459
    %v1462 = vcvt.s32.f32 %v1460
    %1463 = vmin.xlane.f32.xlu0 %v1462
    %v1464 = vpop.xlane.xlu0 %1463
    %vm1465 = vcmp.eq.f32.partialorder %v1462, %v1464
    %v1466 = vsel %vm1465, %v1461, inf
    %1467 = vmin.xlane.f32.xlu0 %v1466
    %v1468 = vpop.xlane.xlu0 %1467
    %v1469 = vcvt.f32.s32 %v1468
    %v1470 = vcvt.f32.s32 %v1464
    %v1471 = vshll.u32 %v1470, 16
    %v1472 = vadd.s32 %v1471, %v1469
    %v1473 = vsel %vm807, %v1087, 2147483647
    %v1474 = vand.u32 %v1473, 65535
    %v1475 = vshra.s32 %v1473, 16
    %v1476 = vcvt.s32.f32 %v1474
    %v1477 = vcvt.s32.f32 %v1475
    %1478 = vmin.xlane.f32.xlu0 %v1477
    %v1479 = vpop.xlane.xlu0 %1478
    %vm1480 = vcmp.eq.f32.partialorder %v1477, %v1479
    %v1481 = vsel %vm1480, %v1476, inf
    %1482 = vmin.xlane.f32.xlu0 %v1481
    %v1483 = vpop.xlane.xlu0 %1482
    %v1484 = vcvt.f32.s32 %v1483
    %v1485 = vcvt.f32.s32 %v1479
    %v1486 = vshll.u32 %v1485, 16
    %v1487 = vadd.s32 %v1486, %v1484
    %v1488 = vsel %vm807, %v1088, 2147483647
    %v1489 = vand.u32 %v1488, 65535
    %v1490 = vshra.s32 %v1488, 16
    %v1491 = vcvt.s32.f32 %v1489
    %v1492 = vcvt.s32.f32 %v1490
    %1493 = vmin.xlane.f32.xlu0 %v1492
    %v1494 = vpop.xlane.xlu0 %1493
    %vm1495 = vcmp.eq.f32.partialorder %v1492, %v1494
    %v1496 = vsel %vm1495, %v1491, inf
    %1497 = vmin.xlane.f32.xlu0 %v1496
    %v1498 = vpop.xlane.xlu0 %1497
    %v1499 = vcvt.f32.s32 %v1498
    %v1500 = vcvt.f32.s32 %v1494
    %v1501 = vshll.u32 %v1500, 16
    %v1502 = vadd.s32 %v1501, %v1499
    %v1503 = vsel %vm807, %v1089, 2147483647
    %v1504 = vand.u32 %v1503, 65535
    %v1505 = vshra.s32 %v1503, 16
    %v1506 = vcvt.s32.f32 %v1504
    %v1507 = vcvt.s32.f32 %v1505
    %1508 = vmin.xlane.f32.xlu0 %v1507
    %v1509 = vpop.xlane.xlu0 %1508
    %vm1510 = vcmp.eq.f32.partialorder %v1507, %v1509
    %v1511 = vsel %vm1510, %v1506, inf
    %1512 = vmin.xlane.f32.xlu0 %v1511
    %v1513 = vpop.xlane.xlu0 %1512
    %v1514 = vcvt.f32.s32 %v1513
    %v1515 = vcvt.f32.s32 %v1509
    %v1516 = vshll.u32 %v1515, 16
    %v1517 = vadd.s32 %v1516, %v1514
    %v1518 = vsel %vm807, %v1090, 2147483647
    %v1519 = vand.u32 %v1518, 65535
    %v1520 = vshra.s32 %v1518, 16
    %v1521 = vcvt.s32.f32 %v1519
    %v1522 = vcvt.s32.f32 %v1520
    %1523 = vmin.xlane.f32.xlu0 %v1522
    %v1524 = vpop.xlane.xlu0 %1523
    %vm1525 = vcmp.eq.f32.partialorder %v1522, %v1524
    %v1526 = vsel %vm1525, %v1521, inf
    %1527 = vmin.xlane.f32.xlu0 %v1526
    %v1528 = vpop.xlane.xlu0 %1527
    %v1529 = vcvt.f32.s32 %v1528
    %v1530 = vcvt.f32.s32 %v1524
    %v1531 = vshll.u32 %v1530, 16
    %v1532 = vadd.s32 %v1531, %v1529
    %v1533 = vsel %vm807, %v1091, 2147483647
    %v1534 = vand.u32 %v1533, 65535
    %v1535 = vshra.s32 %v1533, 16
    %v1536 = vcvt.s32.f32 %v1534
    %v1537 = vcvt.s32.f32 %v1535
    %1538 = vmin.xlane.f32.xlu0 %v1537
    %v1539 = vpop.xlane.xlu0 %1538
    %vm1540 = vcmp.eq.f32.partialorder %v1537, %v1539
    %v1541 = vsel %vm1540, %v1536, inf
    %1542 = vmin.xlane.f32.xlu0 %v1541
    %v1543 = vpop.xlane.xlu0 %1542
    %v1544 = vcvt.f32.s32 %v1543
    %v1545 = vcvt.f32.s32 %v1539
    %v1546 = vshll.u32 %v1545, 16
    %v1547 = vadd.s32 %v1546, %v1544
    %v1548 = vsel %vm807, %v1092, 2147483647
    %v1549 = vand.u32 %v1548, 65535
    %v1550 = vshra.s32 %v1548, 16
    %v1551 = vcvt.s32.f32 %v1549
    %v1552 = vcvt.s32.f32 %v1550
    %1553 = vmin.xlane.f32.xlu0 %v1552
    %v1554 = vpop.xlane.xlu0 %1553
    %vm1555 = vcmp.eq.f32.partialorder %v1552, %v1554
    %v1556 = vsel %vm1555, %v1551, inf
    %1557 = vmin.xlane.f32.xlu0 %v1556
    %v1558 = vpop.xlane.xlu0 %1557
    %v1559 = vcvt.f32.s32 %v1558
    %v1560 = vcvt.f32.s32 %v1554
    %v1561 = vshll.u32 %v1560, 16
    %v1562 = vadd.s32 %v1561, %v1559
    %v1563 = vsel %vm807, %v1093, 2147483647
    %v1564 = vand.u32 %v1563, 65535
    %v1565 = vshra.s32 %v1563, 16
    %v1566 = vcvt.s32.f32 %v1564
    %v1567 = vcvt.s32.f32 %v1565
    %1568 = vmin.xlane.f32.xlu0 %v1567
    %v1569 = vpop.xlane.xlu0 %1568
    %vm1570 = vcmp.eq.f32.partialorder %v1567, %v1569
    %v1571 = vsel %vm1570, %v1566, inf
    %1572 = vmin.xlane.f32.xlu0 %v1571
    %v1573 = vpop.xlane.xlu0 %1572
    %v1574 = vcvt.f32.s32 %v1573
    %v1575 = vcvt.f32.s32 %v1569
    %v1576 = vshll.u32 %v1575, 16
    %v1577 = vadd.s32 %v1576, %v1574
    %v1578 = vsel %vm807, %v1094, 2147483647
    %v1579 = vand.u32 %v1578, 65535
    %v1580 = vshra.s32 %v1578, 16
    %v1581 = vcvt.s32.f32 %v1579
    %v1582 = vcvt.s32.f32 %v1580
    %1583 = vmin.xlane.f32.xlu0 %v1582
    %v1584 = vpop.xlane.xlu0 %1583
    %vm1585 = vcmp.eq.f32.partialorder %v1582, %v1584
    %v1586 = vsel %vm1585, %v1581, inf
    %1587 = vmin.xlane.f32.xlu0 %v1586
    %v1588 = vpop.xlane.xlu0 %1587
    %v1589 = vcvt.f32.s32 %v1588
    %v1590 = vcvt.f32.s32 %v1584
    %v1591 = vshll.u32 %v1590, 16
    %v1592 = vadd.s32 %v1591, %v1589
    %v1593 = vsel %vm807, %v1095, 2147483647
    %v1594 = vand.u32 %v1593, 65535
    %v1595 = vshra.s32 %v1593, 16
    %v1596 = vcvt.s32.f32 %v1594
    %v1597 = vcvt.s32.f32 %v1595
    %1598 = vmin.xlane.f32.xlu0 %v1597
    %v1599 = vpop.xlane.xlu0 %1598
    %vm1600 = vcmp.eq.f32.partialorder %v1597, %v1599
    %v1601 = vsel %vm1600, %v1596, inf
    %1602 = vmin.xlane.f32.xlu0 %v1601
    %v1603 = vpop.xlane.xlu0 %1602
    %v1604 = vcvt.f32.s32 %v1603
    %v1605 = vcvt.f32.s32 %v1599
    %v1606 = vshll.u32 %v1605, 16
    %v1607 = vadd.s32 %v1606, %v1604
    %v1608 = vsel %vm807, %v1096, 2147483647
    %v1609 = vand.u32 %v1608, 65535
    %v1610 = vshra.s32 %v1608, 16
    %v1611 = vcvt.s32.f32 %v1609
    %v1612 = vcvt.s32.f32 %v1610
    %1613 = vmin.xlane.f32.xlu0 %v1612
    %v1614 = vpop.xlane.xlu0 %1613
    %vm1615 = vcmp.eq.f32.partialorder %v1612, %v1614
    %v1616 = vsel %vm1615, %v1611, inf
    %1617 = vmin.xlane.f32.xlu0 %v1616
    %v1618 = vpop.xlane.xlu0 %1617
    %v1619 = vcvt.f32.s32 %v1618
    %v1620 = vcvt.f32.s32 %v1614
    %v1621 = vshll.u32 %v1620, 16
    %v1622 = vadd.s32 %v1621, %v1619
    %v1623 = vsel %vm807, %v1097, 2147483647
    %v1624 = vand.u32 %v1623, 65535
    %v1625 = vshra.s32 %v1623, 16
    %v1626 = vcvt.s32.f32 %v1624
    %v1627 = vcvt.s32.f32 %v1625
    %1628 = vmin.xlane.f32.xlu0 %v1627
    %v1629 = vpop.xlane.xlu0 %1628
    %vm1630 = vcmp.eq.f32.partialorder %v1627, %v1629
    %v1631 = vsel %vm1630, %v1626, inf
    %1632 = vmin.xlane.f32.xlu0 %v1631
    %v1633 = vpop.xlane.xlu0 %1632
    %v1634 = vcvt.f32.s32 %v1633
    %v1635 = vcvt.f32.s32 %v1629
    %v1636 = vshll.u32 %v1635, 16
    %v1637 = vadd.s32 %v1636, %v1634
    %v1638 = vsel %vm807, %v1098, 2147483647
    %v1639 = vand.u32 %v1638, 65535
    %v1640 = vshra.s32 %v1638, 16
    %v1641 = vcvt.s32.f32 %v1639
    %v1642 = vcvt.s32.f32 %v1640
    %1643 = vmin.xlane.f32.xlu0 %v1642
    %v1644 = vpop.xlane.xlu0 %1643
    %vm1645 = vcmp.eq.f32.partialorder %v1642, %v1644
    %v1646 = vsel %vm1645, %v1641, inf
    %1647 = vmin.xlane.f32.xlu0 %v1646
    %v1648 = vpop.xlane.xlu0 %1647
    %v1649 = vcvt.f32.s32 %v1648
    %v1650 = vcvt.f32.s32 %v1644
    %v1651 = vshll.u32 %v1650, 16
    %v1652 = vadd.s32 %v1651, %v1649
    %v1653 = vsel %vm807, %v1099, 2147483647
    %v1654 = vand.u32 %v1653, 65535
    %v1655 = vshra.s32 %v1653, 16
    %v1656 = vcvt.s32.f32 %v1654
    %v1657 = vcvt.s32.f32 %v1655
    %1658 = vmin.xlane.f32.xlu0 %v1657
    %v1659 = vpop.xlane.xlu0 %1658
    %vm1660 = vcmp.eq.f32.partialorder %v1657, %v1659
    %v1661 = vsel %vm1660, %v1656, inf
    %1662 = vmin.xlane.f32.xlu0 %v1661
    %v1663 = vpop.xlane.xlu0 %1662
    %v1664 = vcvt.f32.s32 %v1663
    %v1665 = vcvt.f32.s32 %v1659
    %v1666 = vshll.u32 %v1665, 16
    %v1667 = vadd.s32 %v1666, %v1664
    %v1668 = vsel %vm807, %v1100, 2147483647
    %v1669 = vand.u32 %v1668, 65535
    %v1670 = vshra.s32 %v1668, 16
    %v1671 = vcvt.s32.f32 %v1669
    %v1672 = vcvt.s32.f32 %v1670
    %1673 = vmin.xlane.f32.xlu0 %v1672
    %v1674 = vpop.xlane.xlu0 %1673
    %vm1675 = vcmp.eq.f32.partialorder %v1672, %v1674
    %v1676 = vsel %vm1675, %v1671, inf
    %1677 = vmin.xlane.f32.xlu0 %v1676
    %v1678 = vpop.xlane.xlu0 %1677
    %v1679 = vcvt.f32.s32 %v1678
    %v1680 = vcvt.f32.s32 %v1674
    %v1681 = vshll.u32 %v1680, 16
    %v1682 = vadd.s32 %v1681, %v1679
    %v1683 = vsel %vm807, %v1101, 2147483647
    %v1684 = vand.u32 %v1683, 65535
    %v1685 = vshra.s32 %v1683, 16
    %v1686 = vcvt.s32.f32 %v1684
    %v1687 = vcvt.s32.f32 %v1685
    %1688 = vmin.xlane.f32.xlu0 %v1687
    %v1689 = vpop.xlane.xlu0 %1688
    %vm1690 = vcmp.eq.f32.partialorder %v1687, %v1689
    %v1691 = vsel %vm1690, %v1686, inf
    %1692 = vmin.xlane.f32.xlu0 %v1691
    %v1693 = vpop.xlane.xlu0 %1692
    %v1694 = vcvt.f32.s32 %v1693
    %v1695 = vcvt.f32.s32 %v1689
    %v1696 = vshll.u32 %v1695, 16
    %v1697 = vadd.s32 %v1696, %v1694
    %v1698 = vsel %vm807, %v1102, 2147483647
    %v1699 = vand.u32 %v1698, 65535
    %v1700 = vshra.s32 %v1698, 16
    %v1701 = vcvt.s32.f32 %v1699
    %v1702 = vcvt.s32.f32 %v1700
    %1703 = vmin.xlane.f32.xlu0 %v1702
    %v1704 = vpop.xlane.xlu0 %1703
    %vm1705 = vcmp.eq.f32.partialorder %v1702, %v1704
    %v1706 = vsel %vm1705, %v1701, inf
    %1707 = vmin.xlane.f32.xlu0 %v1706
    %v1708 = vpop.xlane.xlu0 %1707
    %v1709 = vcvt.f32.s32 %v1708
    %v1710 = vcvt.f32.s32 %v1704
    %v1711 = vshll.u32 %v1710, 16
    %v1712 = vadd.s32 %v1711, %v1709
    %v1713 = vsel %vm807, %v1103, 2147483647
    %v1714 = vand.u32 %v1713, 65535
    %v1715 = vshra.s32 %v1713, 16
    %v1716 = vcvt.s32.f32 %v1714
    %v1717 = vcvt.s32.f32 %v1715
    %1718 = vmin.xlane.f32.xlu0 %v1717
    %v1719 = vpop.xlane.xlu0 %1718
    %vm1720 = vcmp.eq.f32.partialorder %v1717, %v1719
    %v1721 = vsel %vm1720, %v1716, inf
    %1722 = vmin.xlane.f32.xlu0 %v1721
    %v1723 = vpop.xlane.xlu0 %1722
    %v1724 = vcvt.f32.s32 %v1723
    %v1725 = vcvt.f32.s32 %v1719
    %v1726 = vshll.u32 %v1725, 16
    %v1727 = vadd.s32 %v1726, %v1724
    %v1728 = vsel %vm807, %v1104, 2147483647
    %v1729 = vand.u32 %v1728, 65535
    %v1730 = vshra.s32 %v1728, 16
    %v1731 = vcvt.s32.f32 %v1729
    %v1732 = vcvt.s32.f32 %v1730
    %1733 = vmin.xlane.f32.xlu0 %v1732
    %v1734 = vpop.xlane.xlu0 %1733
    %vm1735 = vcmp.eq.f32.partialorder %v1732, %v1734
    %v1736 = vsel %vm1735, %v1731, inf
    %1737 = vmin.xlane.f32.xlu0 %v1736
    %v1738 = vpop.xlane.xlu0 %1737
    %v1739 = vcvt.f32.s32 %v1738
    %v1740 = vcvt.f32.s32 %v1734
    %v1741 = vshll.u32 %v1740, 16
    %v1742 = vadd.s32 %v1741, %v1739
    %v1743 = vsel %vm807, %v1105, 2147483647
    %v1744 = vand.u32 %v1743, 65535
    %v1745 = vshra.s32 %v1743, 16
    %v1746 = vcvt.s32.f32 %v1744
    %v1747 = vcvt.s32.f32 %v1745
    %1748 = vmin.xlane.f32.xlu0 %v1747
    %v1749 = vpop.xlane.xlu0 %1748
    %vm1750 = vcmp.eq.f32.partialorder %v1747, %v1749
    %v1751 = vsel %vm1750, %v1746, inf
    %1752 = vmin.xlane.f32.xlu0 %v1751
    %v1753 = vpop.xlane.xlu0 %1752
    %v1754 = vcvt.f32.s32 %v1753
    %v1755 = vcvt.f32.s32 %v1749
    %v1756 = vshll.u32 %v1755, 16
    %v1757 = vadd.s32 %v1756, %v1754
    %v1758 = vsel %vm807, %v1106, 2147483647
    %v1759 = vand.u32 %v1758, 65535
    %v1760 = vshra.s32 %v1758, 16
    %v1761 = vcvt.s32.f32 %v1759
    %v1762 = vcvt.s32.f32 %v1760
    %1763 = vmin.xlane.f32.xlu0 %v1762
    %v1764 = vpop.xlane.xlu0 %1763
    %vm1765 = vcmp.eq.f32.partialorder %v1762, %v1764
    %v1766 = vsel %vm1765, %v1761, inf
    %1767 = vmin.xlane.f32.xlu0 %v1766
    %v1768 = vpop.xlane.xlu0 %1767
    %v1769 = vcvt.f32.s32 %v1768
    %v1770 = vcvt.f32.s32 %v1764
    %v1771 = vshll.u32 %v1770, 16
    %v1772 = vadd.s32 %v1771, %v1769
    %v1773 = vsel %vm807, %v1107, 2147483647
    %v1774 = vand.u32 %v1773, 65535
    %v1775 = vshra.s32 %v1773, 16
    %v1776 = vcvt.s32.f32 %v1774
    %v1777 = vcvt.s32.f32 %v1775
    %1778 = vmin.xlane.f32.xlu0 %v1777
    %v1779 = vpop.xlane.xlu0 %1778
    %vm1780 = vcmp.eq.f32.partialorder %v1777, %v1779
    %v1781 = vsel %vm1780, %v1776, inf
    %1782 = vmin.xlane.f32.xlu0 %v1781
    %v1783 = vpop.xlane.xlu0 %1782
    %v1784 = vcvt.f32.s32 %v1783
    %v1785 = vcvt.f32.s32 %v1779
    %v1786 = vshll.u32 %v1785, 16
    %v1787 = vadd.s32 %v1786, %v1784
    %v1788 = vsel %vm807, %v1108, 2147483647
    %v1789 = vand.u32 %v1788, 65535
    %v1790 = vshra.s32 %v1788, 16
    %v1791 = vcvt.s32.f32 %v1789
    %v1792 = vcvt.s32.f32 %v1790
    %1793 = vmin.xlane.f32.xlu0 %v1792
    %v1794 = vpop.xlane.xlu0 %1793
    %vm1795 = vcmp.eq.f32.partialorder %v1792, %v1794
    %v1796 = vsel %vm1795, %v1791, inf
    %1797 = vmin.xlane.f32.xlu0 %v1796
    %v1798 = vpop.xlane.xlu0 %1797
    %v1799 = vcvt.f32.s32 %v1798
    %v1800 = vcvt.f32.s32 %v1794
    %v1801 = vshll.u32 %v1800, 16
    %v1802 = vadd.s32 %v1801, %v1799
    %v1803 = vsel %vm807, %v1109, 2147483647
    %v1804 = vand.u32 %v1803, 65535
    %v1805 = vshra.s32 %v1803, 16
    %v1806 = vcvt.s32.f32 %v1804
    %v1807 = vcvt.s32.f32 %v1805
    %1808 = vmin.xlane.f32.xlu0 %v1807
    %v1809 = vpop.xlane.xlu0 %1808
    %vm1810 = vcmp.eq.f32.partialorder %v1807, %v1809
    %v1811 = vsel %vm1810, %v1806, inf
    %1812 = vmin.xlane.f32.xlu0 %v1811
    %v1813 = vpop.xlane.xlu0 %1812
    %v1814 = vcvt.f32.s32 %v1813
    %v1815 = vcvt.f32.s32 %v1809
    %v1816 = vshll.u32 %v1815, 16
    %v1817 = vadd.s32 %v1816, %v1814
    %v1818 = vsel %vm807, %v1110, 2147483647
    %v1819 = vand.u32 %v1818, 65535
    %v1820 = vshra.s32 %v1818, 16
    %v1821 = vcvt.s32.f32 %v1819
    %v1822 = vcvt.s32.f32 %v1820
    %1823 = vmin.xlane.f32.xlu0 %v1822
    %v1824 = vpop.xlane.xlu0 %1823
    %vm1825 = vcmp.eq.f32.partialorder %v1822, %v1824
    %v1826 = vsel %vm1825, %v1821, inf
    %1827 = vmin.xlane.f32.xlu0 %v1826
    %v1828 = vpop.xlane.xlu0 %1827
    %v1829 = vcvt.f32.s32 %v1828
    %v1830 = vcvt.f32.s32 %v1824
    %v1831 = vshll.u32 %v1830, 16
    %v1832 = vadd.s32 %v1831, %v1829
    %v1833 = vsel %vm807, %v1111, 2147483647
    %v1834 = vand.u32 %v1833, 65535
    %v1835 = vshra.s32 %v1833, 16
    %v1836 = vcvt.s32.f32 %v1834
    %v1837 = vcvt.s32.f32 %v1835
    %1838 = vmin.xlane.f32.xlu0 %v1837
    %v1839 = vpop.xlane.xlu0 %1838
    %vm1840 = vcmp.eq.f32.partialorder %v1837, %v1839
    %v1841 = vsel %vm1840, %v1836, inf
    %1842 = vmin.xlane.f32.xlu0 %v1841
    %v1843 = vpop.xlane.xlu0 %1842
    %v1844 = vcvt.f32.s32 %v1843
    %v1845 = vcvt.f32.s32 %v1839
    %v1846 = vshll.u32 %v1845, 16
    %v1847 = vadd.s32 %v1846, %v1844
    %v1848 = vsel %vm807, %v1112, 2147483647
    %v1849 = vand.u32 %v1848, 65535
    %v1850 = vshra.s32 %v1848, 16
    %v1851 = vcvt.s32.f32 %v1849
    %v1852 = vcvt.s32.f32 %v1850
    %1853 = vmin.xlane.f32.xlu0 %v1852
    %v1854 = vpop.xlane.xlu0 %1853
    %vm1855 = vcmp.eq.f32.partialorder %v1852, %v1854
    %v1856 = vsel %vm1855, %v1851, inf
    %1857 = vmin.xlane.f32.xlu0 %v1856
    %v1858 = vpop.xlane.xlu0 %1857
    %v1859 = vcvt.f32.s32 %v1858
    %v1860 = vcvt.f32.s32 %v1854
    %v1861 = vshll.u32 %v1860, 16
    %v1862 = vadd.s32 %v1861, %v1859
    %v1863 = vsel %vm807, %v1113, 2147483647
    %v1864 = vand.u32 %v1863, 65535
    %v1865 = vshra.s32 %v1863, 16
    %v1866 = vcvt.s32.f32 %v1864
    %v1867 = vcvt.s32.f32 %v1865
    %1868 = vmin.xlane.f32.xlu0 %v1867
    %v1869 = vpop.xlane.xlu0 %1868
    %vm1870 = vcmp.eq.f32.partialorder %v1867, %v1869
    %v1871 = vsel %vm1870, %v1866, inf
    %1872 = vmin.xlane.f32.xlu0 %v1871
    %v1873 = vpop.xlane.xlu0 %1872
    %v1874 = vcvt.f32.s32 %v1873
    %v1875 = vcvt.f32.s32 %v1869
    %v1876 = vshll.u32 %v1875, 16
    %v1877 = vadd.s32 %v1876, %v1874
    %v1878 = vsel %vm807, %v1114, 2147483647
    %v1879 = vand.u32 %v1878, 65535
    %v1880 = vshra.s32 %v1878, 16
    %v1881 = vcvt.s32.f32 %v1879
    %v1882 = vcvt.s32.f32 %v1880
    %1883 = vmin.xlane.f32.xlu0 %v1882
    %v1884 = vpop.xlane.xlu0 %1883
    %vm1885 = vcmp.eq.f32.partialorder %v1882, %v1884
    %v1886 = vsel %vm1885, %v1881, inf
    %1887 = vmin.xlane.f32.xlu0 %v1886
    %v1888 = vpop.xlane.xlu0 %1887
    %v1889 = vcvt.f32.s32 %v1888
    %v1890 = vcvt.f32.s32 %v1884
    %v1891 = vshll.u32 %v1890, 16
    %v1892 = vadd.s32 %v1891, %v1889
    %v1893 = vsel %vm807, %v1115, 2147483647
    %v1894 = vand.u32 %v1893, 65535
    %v1895 = vshra.s32 %v1893, 16
    %v1896 = vcvt.s32.f32 %v1894
    %v1897 = vcvt.s32.f32 %v1895
    %1898 = vmin.xlane.f32.xlu0 %v1897
    %v1899 = vpop.xlane.xlu0 %1898
    %vm1900 = vcmp.eq.f32.partialorder %v1897, %v1899
    %v1901 = vsel %vm1900, %v1896, inf
    %1902 = vmin.xlane.f32.xlu0 %v1901
    %v1903 = vpop.xlane.xlu0 %1902
    %v1904 = vcvt.f32.s32 %v1903
    %v1905 = vcvt.f32.s32 %v1899
    %v1906 = vshll.u32 %v1905, 16
    %v1907 = vadd.s32 %v1906, %v1904
    %v1908 = vsel %vm807, %v1116, 2147483647
    %v1909 = vand.u32 %v1908, 65535
    %v1910 = vshra.s32 %v1908, 16
    %v1911 = vcvt.s32.f32 %v1909
    %v1912 = vcvt.s32.f32 %v1910
    %1913 = vmin.xlane.f32.xlu0 %v1912
    %v1914 = vpop.xlane.xlu0 %1913
    %vm1915 = vcmp.eq.f32.partialorder %v1912, %v1914
    %v1916 = vsel %vm1915, %v1911, inf
    %1917 = vmin.xlane.f32.xlu0 %v1916
    %v1918 = vpop.xlane.xlu0 %1917
    %v1919 = vcvt.f32.s32 %v1918
    %v1920 = vcvt.f32.s32 %v1914
    %v1921 = vshll.u32 %v1920, 16
    %v1922 = vadd.s32 %v1921, %v1919
    %v1923 = vsel %vm807, %v1117, 2147483647
    %v1924 = vand.u32 %v1923, 65535
    %v1925 = vshra.s32 %v1923, 16
    %v1926 = vcvt.s32.f32 %v1924
    %v1927 = vcvt.s32.f32 %v1925
    %1928 = vmin.xlane.f32.xlu0 %v1927
    %v1929 = vpop.xlane.xlu0 %1928
    %vm1930 = vcmp.eq.f32.partialorder %v1927, %v1929
    %v1931 = vsel %vm1930, %v1926, inf
    %1932 = vmin.xlane.f32.xlu0 %v1931
    %v1933 = vpop.xlane.xlu0 %1932
    %v1934 = vcvt.f32.s32 %v1933
    %v1935 = vcvt.f32.s32 %v1929
    %v1936 = vshll.u32 %v1935, 16
    %v1937 = vadd.s32 %v1936, %v1934
    %v1938 = vsel %vm807, %v1118, 2147483647
    %v1939 = vand.u32 %v1938, 65535
    %v1940 = vshra.s32 %v1938, 16
    %v1941 = vcvt.s32.f32 %v1939
    %v1942 = vcvt.s32.f32 %v1940
    %1943 = vmin.xlane.f32.xlu0 %v1942
    %v1944 = vpop.xlane.xlu0 %1943
    %vm1945 = vcmp.eq.f32.partialorder %v1942, %v1944
    %v1946 = vsel %vm1945, %v1941, inf
    %1947 = vmin.xlane.f32.xlu0 %v1946
    %v1948 = vpop.xlane.xlu0 %1947
    %v1949 = vcvt.f32.s32 %v1948
    %v1950 = vcvt.f32.s32 %v1944
    %v1951 = vshll.u32 %v1950, 16
    %v1952 = vadd.s32 %v1951, %v1949
    %v1953 = vsel %vm807, %v1119, 2147483647
    %v1954 = vand.u32 %v1953, 65535
    %v1955 = vshra.s32 %v1953, 16
    %v1956 = vcvt.s32.f32 %v1954
    %v1957 = vcvt.s32.f32 %v1955
    %1958 = vmin.xlane.f32.xlu0 %v1957
    %v1959 = vpop.xlane.xlu0 %1958
    %vm1960 = vcmp.eq.f32.partialorder %v1957, %v1959
    %v1961 = vsel %vm1960, %v1956, inf
    %1962 = vmin.xlane.f32.xlu0 %v1961
    %v1963 = vpop.xlane.xlu0 %1962
    %v1964 = vcvt.f32.s32 %v1963
    %v1965 = vcvt.f32.s32 %v1959
    %v1966 = vshll.u32 %v1965, 16
    %v1967 = vadd.s32 %v1966, %v1964
    %v1968 = vsel %vm807, %v1120, 2147483647
    %v1969 = vand.u32 %v1968, 65535
    %v1970 = vshra.s32 %v1968, 16
    %v1971 = vcvt.s32.f32 %v1969
    %v1972 = vcvt.s32.f32 %v1970
    %1973 = vmin.xlane.f32.xlu0 %v1972
    %v1974 = vpop.xlane.xlu0 %1973
    %vm1975 = vcmp.eq.f32.partialorder %v1972, %v1974
    %v1976 = vsel %vm1975, %v1971, inf
    %1977 = vmin.xlane.f32.xlu0 %v1976
    %v1978 = vpop.xlane.xlu0 %1977
    %v1979 = vcvt.f32.s32 %v1978
    %v1980 = vcvt.f32.s32 %v1974
    %v1981 = vshll.u32 %v1980, 16
    %v1982 = vadd.s32 %v1981, %v1979
    %v1983 = vsel %vm807, %v1121, 2147483647
    %v1984 = vand.u32 %v1983, 65535
    %v1985 = vshra.s32 %v1983, 16
    %v1986 = vcvt.s32.f32 %v1984
    %v1987 = vcvt.s32.f32 %v1985
    %1988 = vmin.xlane.f32.xlu0 %v1987
    %v1989 = vpop.xlane.xlu0 %1988
    %vm1990 = vcmp.eq.f32.partialorder %v1987, %v1989
    %v1991 = vsel %vm1990, %v1986, inf
    %1992 = vmin.xlane.f32.xlu0 %v1991
    %v1993 = vpop.xlane.xlu0 %1992
    %v1994 = vcvt.f32.s32 %v1993
    %v1995 = vcvt.f32.s32 %v1989
    %v1996 = vshll.u32 %v1995, 16
    %v1997 = vadd.s32 %v1996, %v1994
    %v1998 = vsel %vm807, %v1122, 2147483647
    %v1999 = vand.u32 %v1998, 65535
    %v2000 = vshra.s32 %v1998, 16
    %v2001 = vcvt.s32.f32 %v1999
    %v2002 = vcvt.s32.f32 %v2000
    %2003 = vmin.xlane.f32.xlu0 %v2002
    %v2004 = vpop.xlane.xlu0 %2003
    %vm2005 = vcmp.eq.f32.partialorder %v2002, %v2004
    %v2006 = vsel %vm2005, %v2001, inf
    %2007 = vmin.xlane.f32.xlu0 %v2006
    %v2008 = vpop.xlane.xlu0 %2007
    %v2009 = vcvt.f32.s32 %v2008
    %v2010 = vcvt.f32.s32 %v2004
    %v2011 = vshll.u32 %v2010, 16
    %v2012 = vadd.s32 %v2011, %v2009
    %v2013 = vsel %vm807, %v1123, 2147483647
    %v2014 = vand.u32 %v2013, 65535
    %v2015 = vshra.s32 %v2013, 16
    %v2016 = vcvt.s32.f32 %v2014
    %v2017 = vcvt.s32.f32 %v2015
    %2018 = vmin.xlane.f32.xlu0 %v2017
    %v2019 = vpop.xlane.xlu0 %2018
    %vm2020 = vcmp.eq.f32.partialorder %v2017, %v2019
    %v2021 = vsel %vm2020, %v2016, inf
    %2022 = vmin.xlane.f32.xlu0 %v2021
    %v2023 = vpop.xlane.xlu0 %2022
    %v2024 = vcvt.f32.s32 %v2023
    %v2025 = vcvt.f32.s32 %v2019
    %v2026 = vshll.u32 %v2025, 16
    %v2027 = vadd.s32 %v2026, %v2024
    %v2028 = vsel %vm807, %v1124, 2147483647
    %v2029 = vand.u32 %v2028, 65535
    %v2030 = vshra.s32 %v2028, 16
    %v2031 = vcvt.s32.f32 %v2029
    %v2032 = vcvt.s32.f32 %v2030
    %2033 = vmin.xlane.f32.xlu0 %v2032
    %v2034 = vpop.xlane.xlu0 %2033
    %vm2035 = vcmp.eq.f32.partialorder %v2032, %v2034
    %v2036 = vsel %vm2035, %v2031, inf
    %2037 = vmin.xlane.f32.xlu0 %v2036
    %v2038 = vpop.xlane.xlu0 %2037
    %v2039 = vcvt.f32.s32 %v2038
    %v2040 = vcvt.f32.s32 %v2034
    %v2041 = vshll.u32 %v2040, 16
    %v2042 = vadd.s32 %v2041, %v2039
    %v2043 = vsel %vm807, %v1125, 2147483647
    %v2044 = vand.u32 %v2043, 65535
    %v2045 = vshra.s32 %v2043, 16
    %v2046 = vcvt.s32.f32 %v2044
    %v2047 = vcvt.s32.f32 %v2045
    %2048 = vmin.xlane.f32.xlu0 %v2047
    %v2049 = vpop.xlane.xlu0 %2048
    %vm2050 = vcmp.eq.f32.partialorder %v2047, %v2049
    %v2051 = vsel %vm2050, %v2046, inf
    %2052 = vmin.xlane.f32.xlu0 %v2051
    %v2053 = vpop.xlane.xlu0 %2052
    %v2054 = vcvt.f32.s32 %v2053
    %v2055 = vcvt.f32.s32 %v2049
    %v2056 = vshll.u32 %v2055, 16
    %v2057 = vadd.s32 %v2056, %v2054
    %v2058 = vsel %vm807, %v1126, 2147483647
    %v2059 = vand.u32 %v2058, 65535
    %v2060 = vshra.s32 %v2058, 16
    %v2061 = vcvt.s32.f32 %v2059
    %v2062 = vcvt.s32.f32 %v2060
    %2063 = vmin.xlane.f32.xlu0 %v2062
    %v2064 = vpop.xlane.xlu0 %2063
    %vm2065 = vcmp.eq.f32.partialorder %v2062, %v2064
    %v2066 = vsel %vm2065, %v2061, inf
    %2067 = vmin.xlane.f32.xlu0 %v2066
    %v2068 = vpop.xlane.xlu0 %2067
    %v2069 = vcvt.f32.s32 %v2068
    %v2070 = vcvt.f32.s32 %v2064
    %v2071 = vshll.u32 %v2070, 16
    %v2072 = vadd.s32 %v2071, %v2069
    %v2073 = vsel %vm807, %v1127, 2147483647
    %v2074 = vand.u32 %v2073, 65535
    %v2075 = vshra.s32 %v2073, 16
    %v2076 = vcvt.s32.f32 %v2074
    %v2077 = vcvt.s32.f32 %v2075
    %2078 = vmin.xlane.f32.xlu0 %v2077
    %v2079 = vpop.xlane.xlu0 %2078
    %vm2080 = vcmp.eq.f32.partialorder %v2077, %v2079
    %v2081 = vsel %vm2080, %v2076, inf
    %2082 = vmin.xlane.f32.xlu0 %v2081
    %v2083 = vpop.xlane.xlu0 %2082
    %v2084 = vcvt.f32.s32 %v2083
    %v2085 = vcvt.f32.s32 %v2079
    %v2086 = vshll.u32 %v2085, 16
    %v2087 = vadd.s32 %v2086, %v2084
    %vm2088 = vcmp.eq.s32.totalorder %v806, %v1142
    %vm2089 = vcmp.eq.s32.totalorder %v806, %v1157
    %vm2090 = vcmp.eq.s32.totalorder %v806, %v1172
    %vm2091 = vcmp.eq.s32.totalorder %v806, %v1187
    %vm2092 = vcmp.eq.s32.totalorder %v806, %v1202
    %vm2093 = vcmp.eq.s32.totalorder %v806, %v1217
    %vm2094 = vcmp.eq.s32.totalorder %v806, %v1232
    %vm2095 = vcmp.eq.s32.totalorder %v806, %v1247
    %vm2096 = vcmp.eq.s32.totalorder %v806, %v1262
    %vm2097 = vcmp.eq.s32.totalorder %v806, %v1277
    %vm2098 = vcmp.eq.s32.totalorder %v806, %v1292
    %vm2099 = vcmp.eq.s32.totalorder %v806, %v1307
    %vm2100 = vcmp.eq.s32.totalorder %v806, %v1322
    %vm2101 = vcmp.eq.s32.totalorder %v806, %v1337
    %vm2102 = vcmp.eq.s32.totalorder %v806, %v1352
    %vm2103 = vcmp.eq.s32.totalorder %v806, %v1367
    %vm2104 = vcmp.eq.s32.totalorder %v806, %v1382
    %vm2105 = vcmp.eq.s32.totalorder %v806, %v1397
    %vm2106 = vcmp.eq.s32.totalorder %v806, %v1412
    %vm2107 = vcmp.eq.s32.totalorder %v806, %v1427
    %vm2108 = vcmp.eq.s32.totalorder %v806, %v1442
    %vm2109 = vcmp.eq.s32.totalorder %v806, %v1457
    %vm2110 = vcmp.eq.s32.totalorder %v806, %v1472
    %vm2111 = vcmp.eq.s32.totalorder %v806, %v1487
    %vm2112 = vcmp.eq.s32.totalorder %v806, %v1502
    %vm2113 = vcmp.eq.s32.totalorder %v806, %v1517
    %vm2114 = vcmp.eq.s32.totalorder %v806, %v1532
    %vm2115 = vcmp.eq.s32.totalorder %v806, %v1547
    %vm2116 = vcmp.eq.s32.totalorder %v806, %v1562
    %vm2117 = vcmp.eq.s32.totalorder %v806, %v1577
    %vm2118 = vcmp.eq.s32.totalorder %v806, %v1592
    %vm2119 = vcmp.eq.s32.totalorder %v806, %v1607
    %vm2120 = vcmp.eq.s32.totalorder %v806, %v1622
    %vm2121 = vcmp.eq.s32.totalorder %v806, %v1637
    %vm2122 = vcmp.eq.s32.totalorder %v806, %v1652
    %vm2123 = vcmp.eq.s32.totalorder %v806, %v1667
    %vm2124 = vcmp.eq.s32.totalorder %v806, %v1682
    %vm2125 = vcmp.eq.s32.totalorder %v806, %v1697
    %vm2126 = vcmp.eq.s32.totalorder %v806, %v1712
    %vm2127 = vcmp.eq.s32.totalorder %v806, %v1727
    %vm2128 = vcmp.eq.s32.totalorder %v806, %v1742
    %vm2129 = vcmp.eq.s32.totalorder %v806, %v1757
    %vm2130 = vcmp.eq.s32.totalorder %v806, %v1772
    %vm2131 = vcmp.eq.s32.totalorder %v806, %v1787
    %vm2132 = vcmp.eq.s32.totalorder %v806, %v1802
    %vm2133 = vcmp.eq.s32.totalorder %v806, %v1817
    %vm2134 = vcmp.eq.s32.totalorder %v806, %v1832
    %vm2135 = vcmp.eq.s32.totalorder %v806, %v1847
    %vm2136 = vcmp.eq.s32.totalorder %v806, %v1862
    %vm2137 = vcmp.eq.s32.totalorder %v806, %v1877
    %vm2138 = vcmp.eq.s32.totalorder %v806, %v1892
    %vm2139 = vcmp.eq.s32.totalorder %v806, %v1907
    %vm2140 = vcmp.eq.s32.totalorder %v806, %v1922
    %vm2141 = vcmp.eq.s32.totalorder %v806, %v1937
    %vm2142 = vcmp.eq.s32.totalorder %v806, %v1952
    %vm2143 = vcmp.eq.s32.totalorder %v806, %v1967
    %vm2144 = vcmp.eq.s32.totalorder %v806, %v1982
    %vm2145 = vcmp.eq.s32.totalorder %v806, %v1997
    %vm2146 = vcmp.eq.s32.totalorder %v806, %v2012
    %vm2147 = vcmp.eq.s32.totalorder %v806, %v2027
    %vm2148 = vcmp.eq.s32.totalorder %v806, %v2042
    %vm2149 = vcmp.eq.s32.totalorder %v806, %v2057
    %vm2150 = vcmp.eq.s32.totalorder %v806, %v2072
    %vm2151 = vcmp.eq.s32.totalorder %v806, %v2087
    %v2152 = vsel %vm2088, 1, 0
    %v2153 = vsel %vm2089, 1, 0
    %v2154 = vsel %vm2090, 1, 0
    %v2155 = vsel %vm2091, 1, 0
    %v2156 = vsel %vm2092, 1, 0
    %v2157 = vsel %vm2093, 1, 0
    %v2158 = vsel %vm2094, 1, 0
    %v2159 = vsel %vm2095, 1, 0
    %v2160 = vsel %vm2096, 1, 0
    %v2161 = vsel %vm2097, 1, 0
    %v2162 = vsel %vm2098, 1, 0
    %v2163 = vsel %vm2099, 1, 0
    %v2164 = vsel %vm2100, 1, 0
    %v2165 = vsel %vm2101, 1, 0
    %v2166 = vsel %vm2102, 1, 0
    %v2167 = vsel %vm2103, 1, 0
    %v2168 = vsel %vm2104, 1, 0
    %v2169 = vsel %vm2105, 1, 0
    %v2170 = vsel %vm2106, 1, 0
    %v2171 = vsel %vm2107, 1, 0
    %v2172 = vsel %vm2108, 1, 0
    %v2173 = vsel %vm2109, 1, 0
    %v2174 = vsel %vm2110, 1, 0
    %v2175 = vsel %vm2111, 1, 0
    %v2176 = vsel %vm2112, 1, 0
    %v2177 = vsel %vm2113, 1, 0
    %v2178 = vsel %vm2114, 1, 0
    %v2179 = vsel %vm2115, 1, 0
    %v2180 = vsel %vm2116, 1, 0
    %v2181 = vsel %vm2117, 1, 0
    %v2182 = vsel %vm2118, 1, 0
    %v2183 = vsel %vm2119, 1, 0
    %v2184 = vsel %vm2120, 1, 0
    %v2185 = vsel %vm2121, 1, 0
    %v2186 = vsel %vm2122, 1, 0
    %v2187 = vsel %vm2123, 1, 0
    %v2188 = vsel %vm2124, 1, 0
    %v2189 = vsel %vm2125, 1, 0
    %v2190 = vsel %vm2126, 1, 0
    %v2191 = vsel %vm2127, 1, 0
    %v2192 = vsel %vm2128, 1, 0
    %v2193 = vsel %vm2129, 1, 0
    %v2194 = vsel %vm2130, 1, 0
    %v2195 = vsel %vm2131, 1, 0
    %v2196 = vsel %vm2132, 1, 0
    %v2197 = vsel %vm2133, 1, 0
    %v2198 = vsel %vm2134, 1, 0
    %v2199 = vsel %vm2135, 1, 0
    %v2200 = vsel %vm2136, 1, 0
    %v2201 = vsel %vm2137, 1, 0
    %v2202 = vsel %vm2138, 1, 0
    %v2203 = vsel %vm2139, 1, 0
    %v2204 = vsel %vm2140, 1, 0
    %v2205 = vsel %vm2141, 1, 0
    %v2206 = vsel %vm2142, 1, 0
    %v2207 = vsel %vm2143, 1, 0
    %v2208 = vsel %vm2144, 1, 0
    %v2209 = vsel %vm2145, 1, 0
    %v2210 = vsel %vm2146, 1, 0
    %v2211 = vsel %vm2147, 1, 0
    %v2212 = vsel %vm2148, 1, 0
    %v2213 = vsel %vm2149, 1, 0
    %v2214 = vsel %vm2150, 1, 0
    %v2215 = vsel %vm2151, 1, 0
    %v2216 = vcvt.s32.f32 %v2152
    %v2217 = vcvt.s32.f32 %v2153
    %v2218 = vcvt.s32.f32 %v2154
    %v2219 = vcvt.s32.f32 %v2155
    %v2220 = vcvt.s32.f32 %v2156
    %v2221 = vcvt.s32.f32 %v2157
    %v2222 = vcvt.s32.f32 %v2158
    %v2223 = vcvt.s32.f32 %v2159
    %v2224 = vcvt.s32.f32 %v2160
    %v2225 = vcvt.s32.f32 %v2161
    %v2226 = vcvt.s32.f32 %v2162
    %v2227 = vcvt.s32.f32 %v2163
    %v2228 = vcvt.s32.f32 %v2164
    %v2229 = vcvt.s32.f32 %v2165
    %v2230 = vcvt.s32.f32 %v2166
    %v2231 = vcvt.s32.f32 %v2167
    %v2232 = vcvt.s32.f32 %v2168
    %v2233 = vcvt.s32.f32 %v2169
    %v2234 = vcvt.s32.f32 %v2170
    %v2235 = vcvt.s32.f32 %v2171
    %v2236 = vcvt.s32.f32 %v2172
    %v2237 = vcvt.s32.f32 %v2173
    %v2238 = vcvt.s32.f32 %v2174
    %v2239 = vcvt.s32.f32 %v2175
    %v2240 = vcvt.s32.f32 %v2176
    %v2241 = vcvt.s32.f32 %v2177
    %v2242 = vcvt.s32.f32 %v2178
    %v2243 = vcvt.s32.f32 %v2179
    %v2244 = vcvt.s32.f32 %v2180
    %v2245 = vcvt.s32.f32 %v2181
    %v2246 = vcvt.s32.f32 %v2182
    %v2247 = vcvt.s32.f32 %v2183
    %v2248 = vcvt.s32.f32 %v2184
    %v2249 = vcvt.s32.f32 %v2185
    %v2250 = vcvt.s32.f32 %v2186
    %v2251 = vcvt.s32.f32 %v2187
    %v2252 = vcvt.s32.f32 %v2188
    %v2253 = vcvt.s32.f32 %v2189
    %v2254 = vcvt.s32.f32 %v2190
    %v2255 = vcvt.s32.f32 %v2191
    %v2256 = vcvt.s32.f32 %v2192
    %v2257 = vcvt.s32.f32 %v2193
    %v2258 = vcvt.s32.f32 %v2194
    %v2259 = vcvt.s32.f32 %v2195
    %v2260 = vcvt.s32.f32 %v2196
    %v2261 = vcvt.s32.f32 %v2197
    %v2262 = vcvt.s32.f32 %v2198
    %v2263 = vcvt.s32.f32 %v2199
    %v2264 = vcvt.s32.f32 %v2200
    %v2265 = vcvt.s32.f32 %v2201
    %v2266 = vcvt.s32.f32 %v2202
    %v2267 = vcvt.s32.f32 %v2203
    %v2268 = vcvt.s32.f32 %v2204
    %v2269 = vcvt.s32.f32 %v2205
    %v2270 = vcvt.s32.f32 %v2206
    %v2271 = vcvt.s32.f32 %v2207
    %v2272 = vcvt.s32.f32 %v2208
    %v2273 = vcvt.s32.f32 %v2209
    %v2274 = vcvt.s32.f32 %v2210
    %v2275 = vcvt.s32.f32 %v2211
    %v2276 = vcvt.s32.f32 %v2212
    %v2277 = vcvt.s32.f32 %v2213
    %v2278 = vcvt.s32.f32 %v2214
    %v2279 = vcvt.s32.f32 %v2215
    %v2281 = vsel %vm807, %v2216, 0
    %v2284 = vsel %vm807, %v2217, 0
    %v2287 = vsel %vm807, %v2218, 0
    %v2290 = vsel %vm807, %v2219, 0
    %v2293 = vsel %vm807, %v2220, 0
    %v2296 = vsel %vm807, %v2221, 0
    %v2299 = vsel %vm807, %v2222, 0
    %v2302 = vsel %vm807, %v2223, 0
    %v2305 = vsel %vm807, %v2224, 0
    %v2308 = vsel %vm807, %v2225, 0
    %v2311 = vsel %vm807, %v2226, 0
    %v2314 = vsel %vm807, %v2227, 0
    %v2317 = vsel %vm807, %v2228, 0
    %v2320 = vsel %vm807, %v2229, 0
    %v2323 = vsel %vm807, %v2230, 0
    %v2326 = vsel %vm807, %v2231, 0
    %v2329 = vsel %vm807, %v2232, 0
    %v2332 = vsel %vm807, %v2233, 0
    %v2335 = vsel %vm807, %v2234, 0
    %v2338 = vsel %vm807, %v2235, 0
    %v2341 = vsel %vm807, %v2236, 0
    %v2344 = vsel %vm807, %v2237, 0
    %v2347 = vsel %vm807, %v2238, 0
    %v2350 = vsel %vm807, %v2239, 0
    %v2353 = vsel %vm807, %v2240, 0
    %v2356 = vsel %vm807, %v2241, 0
    %v2359 = vsel %vm807, %v2242, 0
    %v2362 = vsel %vm807, %v2243, 0
    %v2365 = vsel %vm807, %v2244, 0
    %v2368 = vsel %vm807, %v2245, 0
    %v2371 = vsel %vm807, %v2246, 0
    %v2374 = vsel %vm807, %v2247, 0
    %v2377 = vsel %vm807, %v2248, 0
    %v2380 = vsel %vm807, %v2249, 0
    %v2383 = vsel %vm807, %v2250, 0
    %v2386 = vsel %vm807, %v2251, 0
    %v2389 = vsel %vm807, %v2252, 0
    %v2392 = vsel %vm807, %v2253, 0
    %v2395 = vsel %vm807, %v2254, 0
    %v2398 = vsel %vm807, %v2255, 0
    %v2401 = vsel %vm807, %v2256, 0
    %v2404 = vsel %vm807, %v2257, 0
    %v2407 = vsel %vm807, %v2258, 0
    %v2410 = vsel %vm807, %v2259, 0
    %v2413 = vsel %vm807, %v2260, 0
    %v2416 = vsel %vm807, %v2261, 0
    %v2419 = vsel %vm807, %v2262, 0
    %v2422 = vsel %vm807, %v2263, 0
    %v2425 = vsel %vm807, %v2264, 0
    %v2428 = vsel %vm807, %v2265, 0
    %v2431 = vsel %vm807, %v2266, 0
    %v2434 = vsel %vm807, %v2267, 0
    %v2437 = vsel %vm807, %v2268, 0
    %v2440 = vsel %vm807, %v2269, 0
    %v2443 = vsel %vm807, %v2270, 0
    %v2446 = vsel %vm807, %v2271, 0
    %v2449 = vsel %vm807, %v2272, 0
    %v2452 = vsel %vm807, %v2273, 0
    %v2455 = vsel %vm807, %v2274, 0
    %v2458 = vsel %vm807, %v2275, 0
    %v2461 = vsel %vm807, %v2276, 0
    %v2464 = vsel %vm807, %v2277, 0
    %v2467 = vsel %vm807, %v2278, 0
    %v2470 = vsel %vm807, %v2279, 0
    %2472 = vmatprep.subr.mxu0 0.0
    %2473 = vmatpush1.msra.mxu0 %v84
    %2474 = vmatprep.subr.mxu0 0.0
    %2475 = vmatpush1.msra.mxu0 %v85
    %2476 = vmatprep.subr.mxu0 0.0
    %2477 = vmatpush1.msra.mxu0 0.0
    %2478 = vmatprep.subr.mxu0 0.0
    %2479 = vmatpush1.msra.mxu0 0.0
    %2480 = vmatprep.subr.mxu0 0.0
    %2481 = vmatpush1.msra.mxu0 0.0
    %2482 = vmatprep.subr.mxu0 0.0
    %2483 = vmatpush1.msra.mxu0 0.0
    %2484 = vmatprep.subr.mxu0 0.0
    %2485 = vmatpush1.msra.mxu0 0.0
    %2486 = vmatprep.subr.mxu0 0.0
    %2487 = vmatpush1.msra.mxu0 0.0
    %2488 = vmatprep.subr.mxu0 0.0
    %2489 = vmatpush1.msra.mxu0 0.0
    %2490 = vmatprep.subr.mxu0 0.0
    %2491 = vmatpush1.msra.mxu0 0.0
    %2492 = vmatprep.subr.mxu0 0.0
    %2493 = vmatpush1.msra.mxu0 0.0
    %2494 = vmatprep.subr.mxu0 0.0
    %2495 = vmatpush1.msra.mxu0 0.0
    %2496 = vmatprep.subr.mxu0 0.0
    %2497 = vmatpush1.msra.mxu0 0.0
    %2498 = vmatprep.subr.mxu0 0.0
    %2499 = vmatpush1.msra.mxu0 0.0
    %2500 = vmatprep.subr.mxu0 0.0
    %2501 = vmatpush1.msra.mxu0 0.0
    %2502 = vmatprep.subr.mxu0 0.0
    %2503 = vmatpush1.msra.mxu0 0.0
    %2504 = vmatprep.subr.mxu0 0.0
    %2505 = vmatpush1.msra.mxu0 0.0
    %2506 = vmatprep.subr.mxu0 0.0
    %2507 = vmatpush1.msra.mxu0 0.0
    %2508 = vmatprep.subr.mxu0 0.0
    %2509 = vmatpush1.msra.mxu0 0.0
    %2510 = vmatprep.subr.mxu0 0.0
    %2511 = vmatpush1.msra.mxu0 0.0
    %2512 = vmatprep.subr.mxu0 0.0
    %2513 = vmatpush1.msra.mxu0 0.0
    %2514 = vmatprep.subr.mxu0 0.0
    %2515 = vmatpush1.msra.mxu0 0.0
    %2516 = vmatprep.subr.mxu0 0.0
    %2517 = vmatpush1.msra.mxu0 0.0
    %2518 = vmatprep.subr.mxu0 0.0
    %2519 = vmatpush1.msra.mxu0 0.0
    %2520 = vmatprep.subr.mxu0 0.0
    %2521 = vmatpush1.msra.mxu0 0.0
    %2522 = vmatprep.subr.mxu0 0.0
    %2523 = vmatpush1.msra.mxu0 0.0
    %2524 = vmatprep.subr.mxu0 0.0
    %2525 = vmatpush1.msra.mxu0 0.0
    %2526 = vmatprep.subr.mxu0 0.0
    %2527 = vmatpush1.msra.mxu0 0.0
    %2528 = vmatprep.subr.mxu0 0.0
    %2529 = vmatpush1.msra.mxu0 0.0
    %2530 = vmatprep.subr.mxu0 0.0
    %2531 = vmatpush1.msra.mxu0 0.0
    %2532 = vmatprep.subr.mxu0 0.0
    %2533 = vmatpush1.msra.mxu0 0.0
    %2534 = vmatprep.subr.mxu0 0.0
    %2535 = vmatpush1.msra.mxu0 0.0
    %2536 = vmatprep.mubr.f32.mxu0 0.0
    %2537 = vmatmul.mubr.f32.gmra.mrb[0].mxu0 %v2281
    %v2538 = vpop.f32.mrb[0].mxu0
    %v2539 = vadd.f32 0.0, %v2538
    %v2540 = vpop.f32.mrb[0].mxu0
    %2541 = vmatprep.mubr.f32.mxu0 0.0
    %2542 = vmatmul.mubr.f32.gmra.mrb[0].mxu0 %v2284
    %v2543 = vpop.f32.mrb[0].mxu0
    %v2544 = vadd.f32 0.0, %v2543
    %v2545 = vpop.f32.mrb[0].mxu0
    %2546 = vmatprep.mubr.f32.mxu0 0.0
    %2547 = vmatmul.mubr.f32.gmra.mrb[0].mxu0 %v2287
    %v2548 = vpop.f32.mrb[0].mxu0
    %v2549 = vadd.f32 0.0, %v2548
    %v2550 = vpop.f32.mrb[0].mxu0
    %2551 = vmatprep.mubr.f32.mxu0 0.0
    %2552 = vmatmul.mubr.f32.gmra.mrb[0].mxu0 %v2290
    %v2553 = vpop.f32.mrb[0].mxu0
    %v2554 = vadd.f32 0.0, %v2553
    %v2555 = vpop.f32.mrb[0].mxu0
    %2556 = vmatprep.mubr.f32.mxu0 0.0
    %2557 = vmatmul.mubr.f32.gmra.mrb[0].mxu0 %v2293
    %v2558 = vpop.f32.mrb[0].mxu0
    %v2559 = vadd.f32 0.0, %v2558
    %v2560 = vpop.f32.mrb[0].mxu0
    %2561 = vmatprep.mubr.f32.mxu0 0.0
    %2562 = vmatmul.mubr.f32.gmra.mrb[0].mxu0 %v2296
    %v2563 = vpop.f32.mrb[0].mxu0
    %v2564 = vadd.f32 0.0, %v2563
    %v2565 = vpop.f32.mrb[0].mxu0
    %2566 = vmatprep.mubr.f32.mxu0 0.0
    %2567 = vmatmul.mubr.f32.gmra.mrb[0].mxu0 %v2299
    %v2568 = vpop.f32.mrb[0].mxu0
    %v2569 = vadd.f32 0.0, %v2568
    %v2570 = vpop.f32.mrb[0].mxu0
    %2571 = vmatprep.mubr.f32.mxu0 0.0
    %2572 = vmatmul.mubr.f32.gmra.mrb[0].mxu0 %v2302
    %v2573 = vpop.f32.mrb[0].mxu0
    %v2574 = vadd.f32 0.0, %v2573
    %v2575 = vpop.f32.mrb[0].mxu0
    %2576 = vmatprep.mubr.f32.mxu0 0.0
    %2577 = vmatmul.mubr.f32.gmra.mrb[0].mxu0 %v2305
    %v2578 = vpop.f32.mrb[0].mxu0
    %v2579 = vadd.f32 0.0, %v2578
    %v2580 = vpop.f32.mrb[0].mxu0
    %2581 = vmatprep.mubr.f32.mxu0 0.0
    %2582 = vmatmul.mubr.f32.gmra.mrb[0].mxu0 %v2308
    %v2583 = vpop.f32.mrb[0].mxu0
    %v2584 = vadd.f32 0.0, %v2583
    %v2585 = vpop.f32.mrb[0].mxu0
    %2586 = vmatprep.mubr.f32.mxu0 0.0
    %2587 = vmatmul.mubr.f32.gmra.mrb[0].mxu0 %v2311
    %v2588 = vpop.f32.mrb[0].mxu0
    %v2589 = vadd.f32 0.0, %v2588
    %v2590 = vpop.f32.mrb[0].mxu0
    %2591 = vmatprep.mubr.f32.mxu0 0.0
    %2592 = vmatmul.mubr.f32.gmra.mrb[0].mxu0 %v2314
    %v2593 = vpop.f32.mrb[0].mxu0
    %v2594 = vadd.f32 0.0, %v2593
    %v2595 = vpop.f32.mrb[0].mxu0
    %2596 = vmatprep.mubr.f32.mxu0 0.0
    %2597 = vmatmul.mubr.f32.gmra.mrb[0].mxu0 %v2317
    %v2598 = vpop.f32.mrb[0].mxu0
    %v2599 = vadd.f32 0.0, %v2598
    %v2600 = vpop.f32.mrb[0].mxu0
    %2601 = vmatprep.mubr.f32.mxu0 0.0
    %2602 = vmatmul.mubr.f32.gmra.mrb[0].mxu0 %v2320
    %v2603 = vpop.f32.mrb[0].mxu0
    %v2604 = vadd.f32 0.0, %v2603
    %v2605 = vpop.f32.mrb[0].mxu0
    %2606 = vmatprep.mubr.f32.mxu0 0.0
    %2607 = vmatmul.mubr.f32.gmra.mrb[0].mxu0 %v2323
    %v2608 = vpop.f32.mrb[0].mxu0
    %v2609 = vadd.f32 0.0, %v2608
    %v2610 = vpop.f32.mrb[0].mxu0
    %2611 = vmatprep.mubr.f32.mxu0 0.0
    %2612 = vmatmul.mubr.f32.gmra.mrb[0].mxu0 %v2326
    %v2613 = vpop.f32.mrb[0].mxu0
    %v2614 = vadd.f32 0.0, %v2613
    %v2615 = vpop.f32.mrb[0].mxu0
    %2616 = vmatprep.mubr.f32.mxu0 0.0
    %2617 = vmatmul.mubr.f32.gmra.mrb[0].mxu0 %v2329
    %v2618 = vpop.f32.mrb[0].mxu0
    %v2619 = vadd.f32 0.0, %v2618
    %v2620 = vpop.f32.mrb[0].mxu0
    %2621 = vmatprep.mubr.f32.mxu0 0.0
    %2622 = vmatmul.mubr.f32.gmra.mrb[0].mxu0 %v2332
    %v2623 = vpop.f32.mrb[0].mxu0
    %v2624 = vadd.f32 0.0, %v2623
    %v2625 = vpop.f32.mrb[0].mxu0
    %2626 = vmatprep.mubr.f32.mxu0 0.0
    %2627 = vmatmul.mubr.f32.gmra.mrb[0].mxu0 %v2335
    %v2628 = vpop.f32.mrb[0].mxu0
    %v2629 = vadd.f32 0.0, %v2628
    %v2630 = vpop.f32.mrb[0].mxu0
    %2631 = vmatprep.mubr.f32.mxu0 0.0
    %2632 = vmatmul.mubr.f32.gmra.mrb[0].mxu0 %v2338
    %v2633 = vpop.f32.mrb[0].mxu0
    %v2634 = vadd.f32 0.0, %v2633
    %v2635 = vpop.f32.mrb[0].mxu0
    %2636 = vmatprep.mubr.f32.mxu0 0.0
    %2637 = vmatmul.mubr.f32.gmra.mrb[0].mxu0 %v2341
    %v2638 = vpop.f32.mrb[0].mxu0
    %v2639 = vadd.f32 0.0, %v2638
    %v2640 = vpop.f32.mrb[0].mxu0
    %2641 = vmatprep.mubr.f32.mxu0 0.0
    %2642 = vmatmul.mubr.f32.gmra.mrb[0].mxu0 %v2344
    %v2643 = vpop.f32.mrb[0].mxu0
    %v2644 = vadd.f32 0.0, %v2643
    %v2645 = vpop.f32.mrb[0].mxu0
    %2646 = vmatprep.mubr.f32.mxu0 0.0
    %2647 = vmatmul.mubr.f32.gmra.mrb[0].mxu0 %v2347
    %v2648 = vpop.f32.mrb[0].mxu0
    %v2649 = vadd.f32 0.0, %v2648
    %v2650 = vpop.f32.mrb[0].mxu0
    %2651 = vmatprep.mubr.f32.mxu0 0.0
    %2652 = vmatmul.mubr.f32.gmra.mrb[0].mxu0 %v2350
    %v2653 = vpop.f32.mrb[0].mxu0
    %v2654 = vadd.f32 0.0, %v2653
    %v2655 = vpop.f32.mrb[0].mxu0
    %2656 = vmatprep.mubr.f32.mxu0 0.0
    %2657 = vmatmul.mubr.f32.gmra.mrb[0].mxu0 %v2353
    %v2658 = vpop.f32.mrb[0].mxu0
    %v2659 = vadd.f32 0.0, %v2658
    %v2660 = vpop.f32.mrb[0].mxu0
    %2661 = vmatprep.mubr.f32.mxu0 0.0
    %2662 = vmatmul.mubr.f32.gmra.mrb[0].mxu0 %v2356
    %v2663 = vpop.f32.mrb[0].mxu0
    %v2664 = vadd.f32 0.0, %v2663
    %v2665 = vpop.f32.mrb[0].mxu0
    %2666 = vmatprep.mubr.f32.mxu0 0.0
    %2667 = vmatmul.mubr.f32.gmra.mrb[0].mxu0 %v2359
    %v2668 = vpop.f32.mrb[0].mxu0
    %v2669 = vadd.f32 0.0, %v2668
    %v2670 = vpop.f32.mrb[0].mxu0
    %2671 = vmatprep.mubr.f32.mxu0 0.0
    %2672 = vmatmul.mubr.f32.gmra.mrb[0].mxu0 %v2362
    %v2673 = vpop.f32.mrb[0].mxu0
    %v2674 = vadd.f32 0.0, %v2673
    %v2675 = vpop.f32.mrb[0].mxu0
    %2676 = vmatprep.mubr.f32.mxu0 0.0
    %2677 = vmatmul.mubr.f32.gmra.mrb[0].mxu0 %v2365
    %v2678 = vpop.f32.mrb[0].mxu0
    %v2679 = vadd.f32 0.0, %v2678
    %v2680 = vpop.f32.mrb[0].mxu0
    %2681 = vmatprep.mubr.f32.mxu0 0.0
    %2682 = vmatmul.mubr.f32.gmra.mrb[0].mxu0 %v2368
    %v2683 = vpop.f32.mrb[0].mxu0
    %v2684 = vadd.f32 0.0, %v2683
    %v2685 = vpop.f32.mrb[0].mxu0
    %2686 = vmatprep.mubr.f32.mxu0 0.0
    %2687 = vmatmul.mubr.f32.gmra.mrb[0].mxu0 %v2371
    %v2688 = vpop.f32.mrb[0].mxu0
    %v2689 = vadd.f32 0.0, %v2688
    %v2690 = vpop.f32.mrb[0].mxu0
    %2691 = vmatprep.mubr.f32.mxu0 0.0
    %2692 = vmatmul.mubr.f32.gmra.mrb[0].mxu0 %v2374
    %v2693 = vpop.f32.mrb[0].mxu0
    %v2694 = vadd.f32 0.0, %v2693
    %v2695 = vpop.f32.mrb[0].mxu0
    %2696 = vmatprep.mubr.f32.mxu0 0.0
    %2697 = vmatmul.mubr.f32.gmra.mrb[0].mxu0 %v2377
    %v2698 = vpop.f32.mrb[0].mxu0
    %v2699 = vadd.f32 0.0, %v2698
    %v2700 = vpop.f32.mrb[0].mxu0
    %2701 = vmatprep.mubr.f32.mxu0 0.0
    %2702 = vmatmul.mubr.f32.gmra.mrb[0].mxu0 %v2380
    %v2703 = vpop.f32.mrb[0].mxu0
    %v2704 = vadd.f32 0.0, %v2703
    %v2705 = vpop.f32.mrb[0].mxu0
    %2706 = vmatprep.mubr.f32.mxu0 0.0
    %2707 = vmatmul.mubr.f32.gmra.mrb[0].mxu0 %v2383
    %v2708 = vpop.f32.mrb[0].mxu0
    %v2709 = vadd.f32 0.0, %v2708
    %v2710 = vpop.f32.mrb[0].mxu0
    %2711 = vmatprep.mubr.f32.mxu0 0.0
    %2712 = vmatmul.mubr.f32.gmra.mrb[0].mxu0 %v2386
    %v2713 = vpop.f32.mrb[0].mxu0
    %v2714 = vadd.f32 0.0, %v2713
    %v2715 = vpop.f32.mrb[0].mxu0
    %2716 = vmatprep.mubr.f32.mxu0 0.0
    %2717 = vmatmul.mubr.f32.gmra.mrb[0].mxu0 %v2389
    %v2718 = vpop.f32.mrb[0].mxu0
    %v2719 = vadd.f32 0.0, %v2718
    %v2720 = vpop.f32.mrb[0].mxu0
    %2721 = vmatprep.mubr.f32.mxu0 0.0
    %2722 = vmatmul.mubr.f32.gmra.mrb[0].mxu0 %v2392
    %v2723 = vpop.f32.mrb[0].mxu0
    %v2724 = vadd.f32 0.0, %v2723
    %v2725 = vpop.f32.mrb[0].mxu0
    %2726 = vmatprep.mubr.f32.mxu0 0.0
    %2727 = vmatmul.mubr.f32.gmra.mrb[0].mxu0 %v2395
    %v2728 = vpop.f32.mrb[0].mxu0
    %v2729 = vadd.f32 0.0, %v2728
    %v2730 = vpop.f32.mrb[0].mxu0
    %2731 = vmatprep.mubr.f32.mxu0 0.0
    %2732 = vmatmul.mubr.f32.gmra.mrb[0].mxu0 %v2398
    %v2733 = vpop.f32.mrb[0].mxu0
    %v2734 = vadd.f32 0.0, %v2733
    %v2735 = vpop.f32.mrb[0].mxu0
    %2736 = vmatprep.mubr.f32.mxu0 0.0
    %2737 = vmatmul.mubr.f32.gmra.mrb[0].mxu0 %v2401
    %v2738 = vpop.f32.mrb[0].mxu0
    %v2739 = vadd.f32 0.0, %v2738
    %v2740 = vpop.f32.mrb[0].mxu0
    %2741 = vmatprep.mubr.f32.mxu0 0.0
    %2742 = vmatmul.mubr.f32.gmra.mrb[0].mxu0 %v2404
    %v2743 = vpop.f32.mrb[0].mxu0
    %v2744 = vadd.f32 0.0, %v2743
    %v2745 = vpop.f32.mrb[0].mxu0
    %2746 = vmatprep.mubr.f32.mxu0 0.0
    %2747 = vmatmul.mubr.f32.gmra.mrb[0].mxu0 %v2407
    %v2748 = vpop.f32.mrb[0].mxu0
    %v2749 = vadd.f32 0.0, %v2748
    %v2750 = vpop.f32.mrb[0].mxu0
    %2751 = vmatprep.mubr.f32.mxu0 0.0
    %2752 = vmatmul.mubr.f32.gmra.mrb[0].mxu0 %v2410
    %v2753 = vpop.f32.mrb[0].mxu0
    %v2754 = vadd.f32 0.0, %v2753
    %v2755 = vpop.f32.mrb[0].mxu0
    %2756 = vmatprep.mubr.f32.mxu0 0.0
    %2757 = vmatmul.mubr.f32.gmra.mrb[0].mxu0 %v2413
    %v2758 = vpop.f32.mrb[0].mxu0
    %v2759 = vadd.f32 0.0, %v2758
    %v2760 = vpop.f32.mrb[0].mxu0
    %2761 = vmatprep.mubr.f32.mxu0 0.0
    %2762 = vmatmul.mubr.f32.gmra.mrb[0].mxu0 %v2416
    %v2763 = vpop.f32.mrb[0].mxu0
    %v2764 = vadd.f32 0.0, %v2763
    %v2765 = vpop.f32.mrb[0].mxu0
    %2766 = vmatprep.mubr.f32.mxu0 0.0
    %2767 = vmatmul.mubr.f32.gmra.mrb[0].mxu0 %v2419
    %v2768 = vpop.f32.mrb[0].mxu0
    %v2769 = vadd.f32 0.0, %v2768
    %v2770 = vpop.f32.mrb[0].mxu0
    %2771 = vmatprep.mubr.f32.mxu0 0.0
    %2772 = vmatmul.mubr.f32.gmra.mrb[0].mxu0 %v2422
    %v2773 = vpop.f32.mrb[0].mxu0
    %v2774 = vadd.f32 0.0, %v2773
    %v2775 = vpop.f32.mrb[0].mxu0
    %2776 = vmatprep.mubr.f32.mxu0 0.0
    %2777 = vmatmul.mubr.f32.gmra.mrb[0].mxu0 %v2425
    %v2778 = vpop.f32.mrb[0].mxu0
    %v2779 = vadd.f32 0.0, %v2778
    %v2780 = vpop.f32.mrb[0].mxu0
    %2781 = vmatprep.mubr.f32.mxu0 0.0
    %2782 = vmatmul.mubr.f32.gmra.mrb[0].mxu0 %v2428
    %v2783 = vpop.f32.mrb[0].mxu0
    %v2784 = vadd.f32 0.0, %v2783
    %v2785 = vpop.f32.mrb[0].mxu0
    %2786 = vmatprep.mubr.f32.mxu0 0.0
    %2787 = vmatmul.mubr.f32.gmra.mrb[0].mxu0 %v2431
    %v2788 = vpop.f32.mrb[0].mxu0
    %v2789 = vadd.f32 0.0, %v2788
    %v2790 = vpop.f32.mrb[0].mxu0
    %2791 = vmatprep.mubr.f32.mxu0 0.0
    %2792 = vmatmul.mubr.f32.gmra.mrb[0].mxu0 %v2434
    %v2793 = vpop.f32.mrb[0].mxu0
    %v2794 = vadd.f32 0.0, %v2793
    %v2795 = vpop.f32.mrb[0].mxu0
    %2796 = vmatprep.mubr.f32.mxu0 0.0
    %2797 = vmatmul.mubr.f32.gmra.mrb[0].mxu0 %v2437
    %v2798 = vpop.f32.mrb[0].mxu0
    %v2799 = vadd.f32 0.0, %v2798
    %v2800 = vpop.f32.mrb[0].mxu0
    %2801 = vmatprep.mubr.f32.mxu0 0.0
    %2802 = vmatmul.mubr.f32.gmra.mrb[0].mxu0 %v2440
    %v2803 = vpop.f32.mrb[0].mxu0
    %v2804 = vadd.f32 0.0, %v2803
    %v2805 = vpop.f32.mrb[0].mxu0
    %2806 = vmatprep.mubr.f32.mxu0 0.0
    %2807 = vmatmul.mubr.f32.gmra.mrb[0].mxu0 %v2443
    %v2808 = vpop.f32.mrb[0].mxu0
    %v2809 = vadd.f32 0.0, %v2808
    %v2810 = vpop.f32.mrb[0].mxu0
    %2811 = vmatprep.mubr.f32.mxu0 0.0
    %2812 = vmatmul.mubr.f32.gmra.mrb[0].mxu0 %v2446
    %v2813 = vpop.f32.mrb[0].mxu0
    %v2814 = vadd.f32 0.0, %v2813
    %v2815 = vpop.f32.mrb[0].mxu0
    %2816 = vmatprep.mubr.f32.mxu0 0.0
    %2817 = vmatmul.mubr.f32.gmra.mrb[0].mxu0 %v2449
    %v2818 = vpop.f32.mrb[0].mxu0
    %v2819 = vadd.f32 0.0, %v2818
    %v2820 = vpop.f32.mrb[0].mxu0
    %2821 = vmatprep.mubr.f32.mxu0 0.0
    %2822 = vmatmul.mubr.f32.gmra.mrb[0].mxu0 %v2452
    %v2823 = vpop.f32.mrb[0].mxu0
    %v2824 = vadd.f32 0.0, %v2823
    %v2825 = vpop.f32.mrb[0].mxu0
    %2826 = vmatprep.mubr.f32.mxu0 0.0
    %2827 = vmatmul.mubr.f32.gmra.mrb[0].mxu0 %v2455
    %v2828 = vpop.f32.mrb[0].mxu0
    %v2829 = vadd.f32 0.0, %v2828
    %v2830 = vpop.f32.mrb[0].mxu0
    %2831 = vmatprep.mubr.f32.mxu0 0.0
    %2832 = vmatmul.mubr.f32.gmra.mrb[0].mxu0 %v2458
    %v2833 = vpop.f32.mrb[0].mxu0
    %v2834 = vadd.f32 0.0, %v2833
    %v2835 = vpop.f32.mrb[0].mxu0
    %2836 = vmatprep.mubr.f32.mxu0 0.0
    %2837 = vmatmul.mubr.f32.gmra.mrb[0].mxu0 %v2461
    %v2838 = vpop.f32.mrb[0].mxu0
    %v2839 = vadd.f32 0.0, %v2838
    %v2840 = vpop.f32.mrb[0].mxu0
    %2841 = vmatprep.mubr.f32.mxu0 0.0
    %2842 = vmatmul.mubr.f32.gmra.mrb[0].mxu0 %v2464
    %v2843 = vpop.f32.mrb[0].mxu0
    %v2844 = vadd.f32 0.0, %v2843
    %v2845 = vpop.f32.mrb[0].mxu0
    %2846 = vmatprep.mubr.f32.mxu0 0.0
    %2847 = vmatmul.mubr.f32.gmra.mrb[0].mxu0 %v2467
    %v2848 = vpop.f32.mrb[0].mxu0
    %v2849 = vadd.f32 0.0, %v2848
    %v2850 = vpop.f32.mrb[0].mxu0
    %2851 = vmatprep.mubr.f32.mxu0 0.0
    %2852 = vmatmul.mubr.f32.gmra.mrb[0].mxu0 %v2470
    %v2853 = vpop.f32.mrb[0].mxu0
    %v2854 = vadd.f32 0.0, %v2853
    %v2855 = vpop.f32.mrb[0].mxu0
    %2856 = vdwg.mxu0
    %2857 = vst.msk [vmem:[%s3] sm:$0xff] %vm87, %v2539
    %2858 = vst.msk [vmem:[%s3 + $0x8] sm:$0xff] %vm87, %v2544
    %2859 = vst.msk [vmem:[%s3 + $0x10] sm:$0xff] %vm87, %v2549
    %2860 = vst.msk [vmem:[%s3 + $0x18] sm:$0xff] %vm87, %v2554
    %2861 = vst.msk [vmem:[%s3 + $0x20] sm:$0xff] %vm87, %v2559
    %2862 = vst.msk [vmem:[%s3 + $0x28] sm:$0xff] %vm87, %v2564
    %2863 = vst.msk [vmem:[%s3 + $0x30] sm:$0xff] %vm87, %v2569
    %2864 = vst.msk [vmem:[%s3 + $0x38] sm:$0xff] %vm87, %v2574
    %2865 = vst.msk [vmem:[%s3 + $0x40] sm:$0xff] %vm87, %v2579
    %2866 = vst.msk [vmem:[%s3 + $0x48] sm:$0xff] %vm87, %v2584
    %2867 = vst.msk [vmem:[%s3 + $0x50] sm:$0xff] %vm87, %v2589
    %2868 = vst.msk [vmem:[%s3 + $0x58] sm:$0xff] %vm87, %v2594
    %2869 = vst.msk [vmem:[%s3 + $0x60] sm:$0xff] %vm87, %v2599
    %2870 = vst.msk [vmem:[%s3 + $0x68] sm:$0xff] %vm87, %v2604
    %2871 = vst.msk [vmem:[%s3 + $0x70] sm:$0xff] %vm87, %v2609
    %2872 = vst.msk [vmem:[%s3 + $0x78] sm:$0xff] %vm87, %v2614
    %2873 = vst.msk [vmem:[%s3 + $0x80] sm:$0xff] %vm87, %v2619
    %2874 = vst.msk [vmem:[%s3 + $0x88] sm:$0xff] %vm87, %v2624
    %2875 = vst.msk [vmem:[%s3 + $0x90] sm:$0xff] %vm87, %v2629
    %2876 = vst.msk [vmem:[%s3 + $0x98] sm:$0xff] %vm87, %v2634
    %2877 = vst.msk [vmem:[%s3 + $0xa0] sm:$0xff] %vm87, %v2639
    %2878 = vst.msk [vmem:[%s3 + $0xa8] sm:$0xff] %vm87, %v2644
    %2879 = vst.msk [vmem:[%s3 + $0xb0] sm:$0xff] %vm87, %v2649
    %2880 = vst.msk [vmem:[%s3 + $0xb8] sm:$0xff] %vm87, %v2654
    %2881 = vst.msk [vmem:[%s3 + $0xc0] sm:$0xff] %vm87, %v2659
    %2882 = vst.msk [vmem:[%s3 + $0xc8] sm:$0xff] %vm87, %v2664
    %2883 = vst.msk [vmem:[%s3 + $0xd0] sm:$0xff] %vm87, %v2669
    %2884 = vst.msk [vmem:[%s3 + $0xd8] sm:$0xff] %vm87, %v2674
    %2885 = vst.msk [vmem:[%s3 + $0xe0] sm:$0xff] %vm87, %v2679
    %2886 = vst.msk [vmem:[%s3 + $0xe8] sm:$0xff] %vm87, %v2684
    %2887 = vst.msk [vmem:[%s3 + $0xf0] sm:$0xff] %vm87, %v2689
    %2888 = vst.msk [vmem:[%s3 + $0xf8] sm:$0xff] %vm87, %v2694
    %2889 = vst.msk [vmem:[%s3 + $0x100] sm:$0xff] %vm87, %v2699
    %2890 = vst.msk [vmem:[%s3 + $0x108] sm:$0xff] %vm87, %v2704
    %2891 = vst.msk [vmem:[%s3 + $0x110] sm:$0xff] %vm87, %v2709
    %2892 = vst.msk [vmem:[%s3 + $0x118] sm:$0xff] %vm87, %v2714
    %2893 = vst.msk [vmem:[%s3 + $0x120] sm:$0xff] %vm87, %v2719
    %2894 = vst.msk [vmem:[%s3 + $0x128] sm:$0xff] %vm87, %v2724
    %2895 = vst.msk [vmem:[%s3 + $0x130] sm:$0xff] %vm87, %v2729
    %2896 = vst.msk [vmem:[%s3 + $0x138] sm:$0xff] %vm87, %v2734
    %2897 = vst.msk [vmem:[%s3 + $0x140] sm:$0xff] %vm87, %v2739
    %2898 = vst.msk [vmem:[%s3 + $0x148] sm:$0xff] %vm87, %v2744
    %2899 = vst.msk [vmem:[%s3 + $0x150] sm:$0xff] %vm87, %v2749
    %2900 = vst.msk [vmem:[%s3 + $0x158] sm:$0xff] %vm87, %v2754
    %2901 = vst.msk [vmem:[%s3 + $0x160] sm:$0xff] %vm87, %v2759
    %2902 = vst.msk [vmem:[%s3 + $0x168] sm:$0xff] %vm87, %v2764
    %2903 = vst.msk [vmem:[%s3 + $0x170] sm:$0xff] %vm87, %v2769
    %2904 = vst.msk [vmem:[%s3 + $0x178] sm:$0xff] %vm87, %v2774
    %2905 = vst.msk [vmem:[%s3 + $0x180] sm:$0xff] %vm87, %v2779
    %2906 = vst.msk [vmem:[%s3 + $0x188] sm:$0xff] %vm87, %v2784
    %2907 = vst.msk [vmem:[%s3 + $0x190] sm:$0xff] %vm87, %v2789
    %2908 = vst.msk [vmem:[%s3 + $0x198] sm:$0xff] %vm87, %v2794
    %2909 = vst.msk [vmem:[%s3 + $0x1a0] sm:$0xff] %vm87, %v2799
    %2910 = vst.msk [vmem:[%s3 + $0x1a8] sm:$0xff] %vm87, %v2804
    %2911 = vst.msk [vmem:[%s3 + $0x1b0] sm:$0xff] %vm87, %v2809
    %2912 = vst.msk [vmem:[%s3 + $0x1b8] sm:$0xff] %vm87, %v2814
    %2913 = vst.msk [vmem:[%s3 + $0x1c0] sm:$0xff] %vm87, %v2819
    %2914 = vst.msk [vmem:[%s3 + $0x1c8] sm:$0xff] %vm87, %v2824
    %2915 = vst.msk [vmem:[%s3 + $0x1d0] sm:$0xff] %vm87, %v2829
    %2916 = vst.msk [vmem:[%s3 + $0x1d8] sm:$0xff] %vm87, %v2834
    %2917 = vst.msk [vmem:[%s3 + $0x1e0] sm:$0xff] %vm87, %v2839
    %2918 = vst.msk [vmem:[%s3 + $0x1e8] sm:$0xff] %vm87, %v2844
    %2919 = vst.msk [vmem:[%s3 + $0x1f0] sm:$0xff] %vm87, %v2849
    %2920 = vst.msk [vmem:[%s3 + $0x1f8] sm:$0xff] %vm87, %v2854
    %v2921 = vcvt.s32.f32 %v806
    %v2923 = vsel %vm807, %v2921, 0
    %2925 = vmatprep.subr.mxu0 0.0
    %2926 = vmatpush1.xpose.msra.mxu0 %v2281
    %2927 = vmatprep.subr.mxu0 0.0
    %2928 = vmatpush1.xpose.msra.mxu0 %v2284
    %2929 = vmatprep.subr.mxu0 0.0
    %2930 = vmatpush1.xpose.msra.mxu0 %v2287
    %2931 = vmatprep.subr.mxu0 0.0
    %2932 = vmatpush1.xpose.msra.mxu0 %v2290
    %2933 = vmatprep.subr.mxu0 0.0
    %2934 = vmatpush1.xpose.msra.mxu0 %v2293
    %2935 = vmatprep.subr.mxu0 0.0
    %2936 = vmatpush1.xpose.msra.mxu0 %v2296
    %2937 = vmatprep.subr.mxu0 0.0
    %2938 = vmatpush1.xpose.msra.mxu0 %v2299
    %2939 = vmatprep.subr.mxu0 0.0
    %2940 = vmatpush1.xpose.msra.mxu0 %v2302
    %2941 = vmatprep.subr.mxu0 0.0
    %2942 = vmatpush1.xpose.msra.mxu0 %v2305
    %2943 = vmatprep.subr.mxu0 0.0
    %2944 = vmatpush1.xpose.msra.mxu0 %v2308
    %2945 = vmatprep.subr.mxu0 0.0
    %2946 = vmatpush1.xpose.msra.mxu0 %v2311
    %2947 = vmatprep.subr.mxu0 0.0
    %2948 = vmatpush1.xpose.msra.mxu0 %v2314
    %2949 = vmatprep.subr.mxu0 0.0
    %2950 = vmatpush1.xpose.msra.mxu0 %v2317
    %2951 = vmatprep.subr.mxu0 0.0
    %2952 = vmatpush1.xpose.msra.mxu0 %v2320
    %2953 = vmatprep.subr.mxu0 0.0
    %2954 = vmatpush1.xpose.msra.mxu0 %v2323
    %2955 = vmatprep.subr.mxu0 0.0
    %2956 = vmatpush1.xpose.msra.mxu0 %v2326
    %2957 = vmatprep.subr.mxu0 0.0
    %2958 = vmatpush1.xpose.msra.mxu0 %v2329
    %2959 = vmatprep.subr.mxu0 0.0
    %2960 = vmatpush1.xpose.msra.mxu0 %v2332
    %2961 = vmatprep.subr.mxu0 0.0
    %2962 = vmatpush1.xpose.msra.mxu0 %v2335
    %2963 = vmatprep.subr.mxu0 0.0
    %2964 = vmatpush1.xpose.msra.mxu0 %v2338
    %2965 = vmatprep.subr.mxu0 0.0
    %2966 = vmatpush1.xpose.msra.mxu0 %v2341
    %2967 = vmatprep.subr.mxu0 0.0
    %2968 = vmatpush1.xpose.msra.mxu0 %v2344
    %2969 = vmatprep.subr.mxu0 0.0
    %2970 = vmatpush1.xpose.msra.mxu0 %v2347
    %2971 = vmatprep.subr.mxu0 0.0
    %2972 = vmatpush1.xpose.msra.mxu0 %v2350
    %2973 = vmatprep.subr.mxu0 0.0
    %2974 = vmatpush1.xpose.msra.mxu0 %v2353
    %2975 = vmatprep.subr.mxu0 0.0
    %2976 = vmatpush1.xpose.msra.mxu0 %v2356
    %2977 = vmatprep.subr.mxu0 0.0
    %2978 = vmatpush1.xpose.msra.mxu0 %v2359
    %2979 = vmatprep.subr.mxu0 0.0
    %2980 = vmatpush1.xpose.msra.mxu0 %v2362
    %2981 = vmatprep.subr.mxu0 0.0
    %2982 = vmatpush1.xpose.msra.mxu0 %v2365
    %2983 = vmatprep.subr.mxu0 0.0
    %2984 = vmatpush1.xpose.msra.mxu0 %v2368
    %2985 = vmatprep.subr.mxu0 0.0
    %2986 = vmatpush1.xpose.msra.mxu0 %v2371
    %2987 = vmatprep.subr.mxu0 0.0
    %2988 = vmatpush1.xpose.msra.mxu0 %v2374
    %2989 = vmatprep.mubr.f32.mxu0 0.0
    %2990 = vmatmul.mubr.f32.gmra.mrb[0].mxu0 %v2923
    %v2991 = vpop.f32.mrb[0].mxu0
    %v2992 = vadd.f32 0.5, %v2991
    %v2993 = vpop.f32.mrb[0].mxu0
    %v2994 = vadd.f32 0.5, %v2993
    %2995 = vdwg.mxu0
    %2996 = vmatprep.subr.mxu0 0.0
    %2997 = vmatpush1.xpose.msra.mxu0 %v2377
    %2998 = vmatprep.subr.mxu0 0.0
    %2999 = vmatpush1.xpose.msra.mxu0 %v2380
    %3000 = vmatprep.subr.mxu0 0.0
    %3001 = vmatpush1.xpose.msra.mxu0 %v2383
    %3002 = vmatprep.subr.mxu0 0.0
    %3003 = vmatpush1.xpose.msra.mxu0 %v2386
    %3004 = vmatprep.subr.mxu0 0.0
    %3005 = vmatpush1.xpose.msra.mxu0 %v2389
    %3006 = vmatprep.subr.mxu0 0.0
    %3007 = vmatpush1.xpose.msra.mxu0 %v2392
    %3008 = vmatprep.subr.mxu0 0.0
    %3009 = vmatpush1.xpose.msra.mxu0 %v2395
    %3010 = vmatprep.subr.mxu0 0.0
    %3011 = vmatpush1.xpose.msra.mxu0 %v2398
    %3012 = vmatprep.subr.mxu0 0.0
    %3013 = vmatpush1.xpose.msra.mxu0 %v2401
    %3014 = vmatprep.subr.mxu0 0.0
    %3015 = vmatpush1.xpose.msra.mxu0 %v2404
    %3016 = vmatprep.subr.mxu0 0.0
    %3017 = vmatpush1.xpose.msra.mxu0 %v2407
    %3018 = vmatprep.subr.mxu0 0.0
    %3019 = vmatpush1.xpose.msra.mxu0 %v2410
    %3020 = vmatprep.subr.mxu0 0.0
    %3021 = vmatpush1.xpose.msra.mxu0 %v2413
    %3022 = vmatprep.subr.mxu0 0.0
    %3023 = vmatpush1.xpose.msra.mxu0 %v2416
    %3024 = vmatprep.subr.mxu0 0.0
    %3025 = vmatpush1.xpose.msra.mxu0 %v2419
    %3026 = vmatprep.subr.mxu0 0.0
    %3027 = vmatpush1.xpose.msra.mxu0 %v2422
    %3028 = vmatprep.subr.mxu0 0.0
    %3029 = vmatpush1.xpose.msra.mxu0 %v2425
    %3030 = vmatprep.subr.mxu0 0.0
    %3031 = vmatpush1.xpose.msra.mxu0 %v2428
    %3032 = vmatprep.subr.mxu0 0.0
    %3033 = vmatpush1.xpose.msra.mxu0 %v2431
    %3034 = vmatprep.subr.mxu0 0.0
    %3035 = vmatpush1.xpose.msra.mxu0 %v2434
    %3036 = vmatprep.subr.mxu0 0.0
    %3037 = vmatpush1.xpose.msra.mxu0 %v2437
    %3038 = vmatprep.subr.mxu0 0.0
    %3039 = vmatpush1.xpose.msra.mxu0 %v2440
    %3040 = vmatprep.subr.mxu0 0.0
    %3041 = vmatpush1.xpose.msra.mxu0 %v2443
    %3042 = vmatprep.subr.mxu0 0.0
    %3043 = vmatpush1.xpose.msra.mxu0 %v2446
    %3044 = vmatprep.subr.mxu0 0.0
    %3045 = vmatpush1.xpose.msra.mxu0 %v2449
    %3046 = vmatprep.subr.mxu0 0.0
    %3047 = vmatpush1.xpose.msra.mxu0 %v2452
    %3048 = vmatprep.subr.mxu0 0.0
    %3049 = vmatpush1.xpose.msra.mxu0 %v2455
    %3050 = vmatprep.subr.mxu0 0.0
    %3051 = vmatpush1.xpose.msra.mxu0 %v2458
    %3052 = vmatprep.subr.mxu0 0.0
    %3053 = vmatpush1.xpose.msra.mxu0 %v2461
    %3054 = vmatprep.subr.mxu0 0.0
    %3055 = vmatpush1.xpose.msra.mxu0 %v2464
    %3056 = vmatprep.subr.mxu0 0.0
    %3057 = vmatpush1.xpose.msra.mxu0 %v2467
    %3058 = vmatprep.subr.mxu0 0.0
    %3059 = vmatpush1.xpose.msra.mxu0 %v2470
    %3060 = vmatprep.mubr.f32.mxu0 0.0
    %3061 = vmatmul.mubr.f32.gmra.mrb[0].mxu0 %v2923
    %v3062 = vpop.f32.mrb[0].mxu0
    %v3063 = vadd.f32 0.5, %v3062
    %v3064 = vpop.f32.mrb[0].mxu0
    %v3065 = vadd.f32 0.5, %v3064
    %3066 = vdwg.mxu0
    %v3067 = vcvt.f32.s32.to.zero.pseudo %v2992
    %v3068 = vcvt.f32.s32.to.zero.pseudo %v2994
    %v3069 = vcvt.f32.s32.to.zero.pseudo %v3063
    %v3070 = vcvt.f32.s32.to.zero.pseudo %v3065
    %v3071 = vcombine.low %v3067, %v3068
    %v3072 = vcombine.low %v3069, %v3070
    %v3074 = vunpack.c.l.s4 1966171168
    %v3075 = vunpack.c.0.s8 %v3074
    %v3076 = vlaneseq
    %v3077 = vshrl.u32 %v3076, 7
    %v3078 = vsub.s32 %v3075, %v3077
    %v3079 = vrot.slane %v3071, %v3078
    %v3081 = vunpack.c.l.s4 1966171168
    %v3082 = vunpack.c.0.s8 %v3081
    %v3083 = vlaneseq
    %v3084 = vshrl.u32 %v3083, 7
    %v3085 = vsub.s32 %v3082, %v3084
    %v3086 = vrot.slane %v3072, %v3085
    %v3087 = vcombine.low %v3079, %v3086
    %v3089 = vunpack.c.l.s4 1966171168
    %v3090 = vunpack.c.0.s8 %v3089
    %v3091 = vlaneseq
    %v3092 = vshrl.u32 %v3091, 7
    %v3093 = vsub.s32 %v3090, %v3092
    %v3094 = vrot.slane %v3087, %v3093
    %v3095 = vlaneseq
    %vm3096 = vcmp.ge.s32.totalorder %v3095, 0
    %vm3097 = vcmp.lt.s32.totalorder %v3095, 512
    %vm3098 = vmand %vm3096, %vm3097
    %3099 = vst.msk [vmem:[#allocation2] sm:$0xf] %vm3098, %v3094
    %v3100 = vadd.s32 %v806, 128
    %v3101 = vadd.s32 %v806, 256
    %v3102 = vadd.s32 %v806, 384
    %s3103 = smul.u32 0, 512
    %v3104 = vstv %s3103
    %v3105 = vadd.s32 %v806, %v3104
    %v3106 = vadd.s32 %v3100, %v3104
    %v3107 = vadd.s32 %v3101, %v3104
    %v3108 = vadd.s32 %v3102, %v3104
    %vm3109 = vcmp.lt.s32.totalorder %v3105, 512
    %vm3110 = vcmp.lt.s32.totalorder %v3106, 512
    %vm3111 = vcmp.lt.s32.totalorder %v3107, 512
    %vm3112 = vcmp.lt.s32.totalorder %v3108, 512
    %v3113 = vsel %vm3109, 1, 0
    %v3114 = vsel %vm3110, 1, 0
    %v3115 = vsel %vm3111, 1, 0
    %v3116 = vsel %vm3112, 1, 0
    %v3117 = vcvt.s32.f32 %v3113
    %v3118 = vcvt.s32.f32 %v3114
    %v3119 = vcvt.s32.f32 %v3115
    %v3120 = vcvt.s32.f32 %v3116
    %3121 = vmatprep.subr.mxu0 0.0
    %3122 = vmatpush1.msra.mxu0 %v2216
    %3123 = vmatprep.subr.mxu0 0.0
    %3124 = vmatpush1.msra.mxu0 %v2217
    %3125 = vmatprep.subr.mxu0 0.0
    %3126 = vmatpush1.msra.mxu0 %v2218
    %3127 = vmatprep.subr.mxu0 0.0
    %3128 = vmatpush1.msra.mxu0 %v2219
    %3129 = vmatprep.subr.mxu0 0.0
    %3130 = vmatpush1.msra.mxu0 %v2220
    %3131 = vmatprep.subr.mxu0 0.0
    %3132 = vmatpush1.msra.mxu0 %v2221
    %3133 = vmatprep.subr.mxu0 0.0
    %3134 = vmatpush1.msra.mxu0 %v2222
    %3135 = vmatprep.subr.mxu0 0.0
    %3136 = vmatpush1.msra.mxu0 %v2223
    %3137 = vmatprep.subr.mxu0 0.0
    %3138 = vmatpush1.msra.mxu0 %v2224
    %3139 = vmatprep.subr.mxu0 0.0
    %3140 = vmatpush1.msra.mxu0 %v2225
    %3141 = vmatprep.subr.mxu0 0.0
    %3142 = vmatpush1.msra.mxu0 %v2226
    %3143 = vmatprep.subr.mxu0 0.0
    %3144 = vmatpush1.msra.mxu0 %v2227
    %3145 = vmatprep.subr.mxu0 0.0
    %3146 = vmatpush1.msra.mxu0 %v2228
    %3147 = vmatprep.subr.mxu0 0.0
    %3148 = vmatpush1.msra.mxu0 %v2229
    %3149 = vmatprep.subr.mxu0 0.0
    %3150 = vmatpush1.msra.mxu0 %v2230
    %3151 = vmatprep.subr.mxu0 0.0
    %3152 = vmatpush1.msra.mxu0 %v2231
    %3153 = vmatprep.subr.mxu0 0.0
    %3154 = vmatpush1.msra.mxu0 %v2232
    %3155 = vmatprep.subr.mxu0 0.0
    %3156 = vmatpush1.msra.mxu0 %v2233
    %3157 = vmatprep.subr.mxu0 0.0
    %3158 = vmatpush1.msra.mxu0 %v2234
    %3159 = vmatprep.subr.mxu0 0.0
    %3160 = vmatpush1.msra.mxu0 %v2235
    %3161 = vmatprep.subr.mxu0 0.0
    %3162 = vmatpush1.msra.mxu0 %v2236
    %3163 = vmatprep.subr.mxu0 0.0
    %3164 = vmatpush1.msra.mxu0 %v2237
    %3165 = vmatprep.subr.mxu0 0.0
    %3166 = vmatpush1.msra.mxu0 %v2238
    %3167 = vmatprep.subr.mxu0 0.0
    %3168 = vmatpush1.msra.mxu0 %v2239
    %3169 = vmatprep.subr.mxu0 0.0
    %3170 = vmatpush1.msra.mxu0 %v2240
    %3171 = vmatprep.subr.mxu0 0.0
    %3172 = vmatpush1.msra.mxu0 %v2241
    %3173 = vmatprep.subr.mxu0 0.0
    %3174 = vmatpush1.msra.mxu0 %v2242
    %3175 = vmatprep.subr.mxu0 0.0
    %3176 = vmatpush1.msra.mxu0 %v2243
    %3177 = vmatprep.subr.mxu0 0.0
    %3178 = vmatpush1.msra.mxu0 %v2244
    %3179 = vmatprep.subr.mxu0 0.0
    %3180 = vmatpush1.msra.mxu0 %v2245
    %3181 = vmatprep.subr.mxu0 0.0
    %3182 = vmatpush1.msra.mxu0 %v2246
    %3183 = vmatprep.subr.mxu0 0.0
    %3184 = vmatpush1.msra.mxu0 %v2247
    %3185 = vmatprep.mubr.f32.mxu0 %v3118
    %3186 = vmatmul.mubr.f32.gmra.mrb[0].mxu0 %v3117
    %v3187 = vpop.f32.mrb[0].mxu0
    %v3188 = vadd.f32 0.0, %v3187
    %v3189 = vpop.f32.mrb[0].mxu0
    %3190 = vdwg.mxu0
    %3191 = vmatprep.subr.mxu0 0.0
    %3192 = vmatpush1.msra.mxu0 %v2248
    %3193 = vmatprep.subr.mxu0 0.0
    %3194 = vmatpush1.msra.mxu0 %v2249
    %3195 = vmatprep.subr.mxu0 0.0
    %3196 = vmatpush1.msra.mxu0 %v2250
    %3197 = vmatprep.subr.mxu0 0.0
    %3198 = vmatpush1.msra.mxu0 %v2251
    %3199 = vmatprep.subr.mxu0 0.0
    %3200 = vmatpush1.msra.mxu0 %v2252
    %3201 = vmatprep.subr.mxu0 0.0
    %3202 = vmatpush1.msra.mxu0 %v2253
    %3203 = vmatprep.subr.mxu0 0.0
    %3204 = vmatpush1.msra.mxu0 %v2254
    %3205 = vmatprep.subr.mxu0 0.0
    %3206 = vmatpush1.msra.mxu0 %v2255
    %3207 = vmatprep.subr.mxu0 0.0
    %3208 = vmatpush1.msra.mxu0 %v2256
    %3209 = vmatprep.subr.mxu0 0.0
    %3210 = vmatpush1.msra.mxu0 %v2257
    %3211 = vmatprep.subr.mxu0 0.0
    %3212 = vmatpush1.msra.mxu0 %v2258
    %3213 = vmatprep.subr.mxu0 0.0
    %3214 = vmatpush1.msra.mxu0 %v2259
    %3215 = vmatprep.subr.mxu0 0.0
    %3216 = vmatpush1.msra.mxu0 %v2260
    %3217 = vmatprep.subr.mxu0 0.0
    %3218 = vmatpush1.msra.mxu0 %v2261
    %3219 = vmatprep.subr.mxu0 0.0
    %3220 = vmatpush1.msra.mxu0 %v2262
    %3221 = vmatprep.subr.mxu0 0.0
    %3222 = vmatpush1.msra.mxu0 %v2263
    %3223 = vmatprep.subr.mxu0 0.0
    %3224 = vmatpush1.msra.mxu0 %v2264
    %3225 = vmatprep.subr.mxu0 0.0
    %3226 = vmatpush1.msra.mxu0 %v2265
    %3227 = vmatprep.subr.mxu0 0.0
    %3228 = vmatpush1.msra.mxu0 %v2266
    %3229 = vmatprep.subr.mxu0 0.0
    %3230 = vmatpush1.msra.mxu0 %v2267
    %3231 = vmatprep.subr.mxu0 0.0
    %3232 = vmatpush1.msra.mxu0 %v2268
    %3233 = vmatprep.subr.mxu0 0.0
    %3234 = vmatpush1.msra.mxu0 %v2269
    %3235 = vmatprep.subr.mxu0 0.0
    %3236 = vmatpush1.msra.mxu0 %v2270
    %3237 = vmatprep.subr.mxu0 0.0
    %3238 = vmatpush1.msra.mxu0 %v2271
    %3239 = vmatprep.subr.mxu0 0.0
    %3240 = vmatpush1.msra.mxu0 %v2272
    %3241 = vmatprep.subr.mxu0 0.0
    %3242 = vmatpush1.msra.mxu0 %v2273
    %3243 = vmatprep.subr.mxu0 0.0
    %3244 = vmatpush1.msra.mxu0 %v2274
    %3245 = vmatprep.subr.mxu0 0.0
    %3246 = vmatpush1.msra.mxu0 %v2275
    %3247 = vmatprep.subr.mxu0 0.0
    %3248 = vmatpush1.msra.mxu0 %v2276
    %3249 = vmatprep.subr.mxu0 0.0
    %3250 = vmatpush1.msra.mxu0 %v2277
    %3251 = vmatprep.subr.mxu0 0.0
    %3252 = vmatpush1.msra.mxu0 %v2278
    %3253 = vmatprep.subr.mxu0 0.0
    %3254 = vmatpush1.msra.mxu0 %v2279
    %3255 = vmatprep.mubr.f32.mxu0 %v3120
    %3256 = vmatmul.mubr.f32.gmra.mrb[0].mxu0 %v3119
    %v3257 = vpop.f32.mrb[0].mxu0
    %v3258 = vadd.f32 %v3188, %v3257
    %v3259 = vpop.f32.mrb[0].mxu0
    %3260 = vdwg.mxu0
    %vm3261 = vcmask 122880
    %3262 = vst.msk [vmem:[#allocation4] sm:$0x1] %vm3261, %v3258
    %v3263 = vsub.f32 %v2539, %v20
    %v3264 = vsub.f32 %v2544, %v21
    %v3265 = vsub.f32 %v2549, %v22
    %v3266 = vsub.f32 %v2554, %v23
    %v3267 = vsub.f32 %v2559, %v24
    %v3268 = vsub.f32 %v2564, %v25
    %v3269 = vsub.f32 %v2569, %v26
    %v3270 = vsub.f32 %v2574, %v27
    %v3271 = vsub.f32 %v2579, %v28
    %v3272 = vsub.f32 %v2584, %v29
    %v3273 = vsub.f32 %v2589, %v30
    %v3274 = vsub.f32 %v2594, %v31
    %v3275 = vsub.f32 %v2599, %v32
    %v3276 = vsub.f32 %v2604, %v33
    %v3277 = vsub.f32 %v2609, %v34
    %v3278 = vsub.f32 %v2614, %v35
    %v3279 = vsub.f32 %v2619, %v36
    %v3280 = vsub.f32 %v2624, %v37
    %v3281 = vsub.f32 %v2629, %v38
    %v3282 = vsub.f32 %v2634, %v39
    %v3283 = vsub.f32 %v2639, %v40
    %v3284 = vsub.f32 %v2644, %v41
    %v3285 = vsub.f32 %v2649, %v42
    %v3286 = vsub.f32 %v2654, %v43
    %v3287 = vsub.f32 %v2659, %v44
    %v3288 = vsub.f32 %v2664, %v45
    %v3289 = vsub.f32 %v2669, %v46
    %v3290 = vsub.f32 %v2674, %v47
    %v3291 = vsub.f32 %v2679, %v48
    %v3292 = vsub.f32 %v2684, %v49
    %v3293 = vsub.f32 %v2689, %v50
    %v3294 = vsub.f32 %v2694, %v51
    %v3295 = vsub.f32 %v2699, %v52
    %v3296 = vsub.f32 %v2704, %v53
    %v3297 = vsub.f32 %v2709, %v54
    %v3298 = vsub.f32 %v2714, %v55
    %v3299 = vsub.f32 %v2719, %v56
    %v3300 = vsub.f32 %v2724, %v57
    %v3301 = vsub.f32 %v2729, %v58
    %v3302 = vsub.f32 %v2734, %v59
    %v3303 = vsub.f32 %v2739, %v60
    %v3304 = vsub.f32 %v2744, %v61
    %v3305 = vsub.f32 %v2749, %v62
    %v3306 = vsub.f32 %v2754, %v63
    %v3307 = vsub.f32 %v2759, %v64
    %v3308 = vsub.f32 %v2764, %v65
    %v3309 = vsub.f32 %v2769, %v66
    %v3310 = vsub.f32 %v2774, %v67
    %v3311 = vsub.f32 %v2779, %v68
    %v3312 = vsub.f32 %v2784, %v69
    %v3313 = vsub.f32 %v2789, %v70
    %v3314 = vsub.f32 %v2794, %v71
    %v3315 = vsub.f32 %v2799, %v72
    %v3316 = vsub.f32 %v2804, %v73
    %v3317 = vsub.f32 %v2809, %v74
    %v3318 = vsub.f32 %v2814, %v75
    %v3319 = vsub.f32 %v2819, %v76
    %v3320 = vsub.f32 %v2824, %v77
    %v3321 = vsub.f32 %v2829, %v78
    %v3322 = vsub.f32 %v2834, %v79
    %v3323 = vsub.f32 %v2839, %v80
    %v3324 = vsub.f32 %v2844, %v81
    %v3325 = vsub.f32 %v2849, %v82
    %v3326 = vsub.f32 %v2854, %v83
    %v3327 = vmul.f32 %v3263, %v3263
    %v3328 = vmul.f32 %v3264, %v3264
    %v3329 = vmul.f32 %v3265, %v3265
    %v3330 = vmul.f32 %v3266, %v3266
    %v3331 = vmul.f32 %v3267, %v3267
    %v3332 = vmul.f32 %v3268, %v3268
    %v3333 = vmul.f32 %v3269, %v3269
    %v3334 = vmul.f32 %v3270, %v3270
    %v3335 = vmul.f32 %v3271, %v3271
    %v3336 = vmul.f32 %v3272, %v3272
    %v3337 = vmul.f32 %v3273, %v3273
    %v3338 = vmul.f32 %v3274, %v3274
    %v3339 = vmul.f32 %v3275, %v3275
    %v3340 = vmul.f32 %v3276, %v3276
    %v3341 = vmul.f32 %v3277, %v3277
    %v3342 = vmul.f32 %v3278, %v3278
    %v3343 = vmul.f32 %v3279, %v3279
    %v3344 = vmul.f32 %v3280, %v3280
    %v3345 = vmul.f32 %v3281, %v3281
    %v3346 = vmul.f32 %v3282, %v3282
    %v3347 = vmul.f32 %v3283, %v3283
    %v3348 = vmul.f32 %v3284, %v3284
    %v3349 = vmul.f32 %v3285, %v3285
    %v3350 = vmul.f32 %v3286, %v3286
    %v3351 = vmul.f32 %v3287, %v3287
    %v3352 = vmul.f32 %v3288, %v3288
    %v3353 = vmul.f32 %v3289, %v3289
    %v3354 = vmul.f32 %v3290, %v3290
    %v3355 = vmul.f32 %v3291, %v3291
    %v3356 = vmul.f32 %v3292, %v3292
    %v3357 = vmul.f32 %v3293, %v3293
    %v3358 = vmul.f32 %v3294, %v3294
    %v3359 = vmul.f32 %v3295, %v3295
    %v3360 = vmul.f32 %v3296, %v3296
    %v3361 = vmul.f32 %v3297, %v3297
    %v3362 = vmul.f32 %v3298, %v3298
    %v3363 = vmul.f32 %v3299, %v3299
    %v3364 = vmul.f32 %v3300, %v3300
    %v3365 = vmul.f32 %v3301, %v3301
    %v3366 = vmul.f32 %v3302, %v3302
    %v3367 = vmul.f32 %v3303, %v3303
    %v3368 = vmul.f32 %v3304, %v3304
    %v3369 = vmul.f32 %v3305, %v3305
    %v3370 = vmul.f32 %v3306, %v3306
    %v3371 = vmul.f32 %v3307, %v3307
    %v3372 = vmul.f32 %v3308, %v3308
    %v3373 = vmul.f32 %v3309, %v3309
    %v3374 = vmul.f32 %v3310, %v3310
    %v3375 = vmul.f32 %v3311, %v3311
    %v3376 = vmul.f32 %v3312, %v3312
    %v3377 = vmul.f32 %v3313, %v3313
    %v3378 = vmul.f32 %v3314, %v3314
    %v3379 = vmul.f32 %v3315, %v3315
    %v3380 = vmul.f32 %v3316, %v3316
    %v3381 = vmul.f32 %v3317, %v3317
    %v3382 = vmul.f32 %v3318, %v3318
    %v3383 = vmul.f32 %v3319, %v3319
    %v3384 = vmul.f32 %v3320, %v3320
    %v3385 = vmul.f32 %v3321, %v3321
    %v3386 = vmul.f32 %v3322, %v3322
    %v3387 = vmul.f32 %v3323, %v3323
    %v3388 = vmul.f32 %v3324, %v3324
    %v3389 = vmul.f32 %v3325, %v3325
    %v3390 = vmul.f32 %v3326, %v3326
    %3391 = vmatprep.subr.mxu0 0.0
    %3392 = vmatpush1.msra.mxu0 %v3327
    %3393 = vmatprep.subr.mxu0 0.0
    %3394 = vmatpush1.msra.mxu0 %v3328
    %3395 = vmatprep.subr.mxu0 0.0
    %3396 = vmatpush1.msra.mxu0 %v3329
    %3397 = vmatprep.subr.mxu0 0.0
    %3398 = vmatpush1.msra.mxu0 %v3330
    %3399 = vmatprep.subr.mxu0 0.0
    %3400 = vmatpush1.msra.mxu0 %v3331
    %3401 = vmatprep.subr.mxu0 0.0
    %3402 = vmatpush1.msra.mxu0 %v3332
    %3403 = vmatprep.subr.mxu0 0.0
    %3404 = vmatpush1.msra.mxu0 %v3333
    %3405 = vmatprep.subr.mxu0 0.0
    %3406 = vmatpush1.msra.mxu0 %v3334
    %3407 = vmatprep.subr.mxu0 0.0
    %3408 = vmatpush1.msra.mxu0 %v3335
    %3409 = vmatprep.subr.mxu0 0.0
    %3410 = vmatpush1.msra.mxu0 %v3336
    %3411 = vmatprep.subr.mxu0 0.0
    %3412 = vmatpush1.msra.mxu0 %v3337
    %3413 = vmatprep.subr.mxu0 0.0
    %3414 = vmatpush1.msra.mxu0 %v3338
    %3415 = vmatprep.subr.mxu0 0.0
    %3416 = vmatpush1.msra.mxu0 %v3339
    %3417 = vmatprep.subr.mxu0 0.0
    %3418 = vmatpush1.msra.mxu0 %v3340
    %3419 = vmatprep.subr.mxu0 0.0
    %3420 = vmatpush1.msra.mxu0 %v3341
    %3421 = vmatprep.subr.mxu0 0.0
    %3422 = vmatpush1.msra.mxu0 %v3342
    %3423 = vmatprep.subr.mxu0 0.0
    %3424 = vmatpush1.msra.mxu0 %v3343
    %3425 = vmatprep.subr.mxu0 0.0
    %3426 = vmatpush1.msra.mxu0 %v3344
    %3427 = vmatprep.subr.mxu0 0.0
    %3428 = vmatpush1.msra.mxu0 %v3345
    %3429 = vmatprep.subr.mxu0 0.0
    %3430 = vmatpush1.msra.mxu0 %v3346
    %3431 = vmatprep.subr.mxu0 0.0
    %3432 = vmatpush1.msra.mxu0 %v3347
    %3433 = vmatprep.subr.mxu0 0.0
    %3434 = vmatpush1.msra.mxu0 %v3348
    %3435 = vmatprep.subr.mxu0 0.0
    %3436 = vmatpush1.msra.mxu0 %v3349
    %3437 = vmatprep.subr.mxu0 0.0
    %3438 = vmatpush1.msra.mxu0 %v3350
    %3439 = vmatprep.subr.mxu0 0.0
    %3440 = vmatpush1.msra.mxu0 %v3351
    %3441 = vmatprep.subr.mxu0 0.0
    %3442 = vmatpush1.msra.mxu0 %v3352
    %3443 = vmatprep.subr.mxu0 0.0
    %3444 = vmatpush1.msra.mxu0 %v3353
    %3445 = vmatprep.subr.mxu0 0.0
    %3446 = vmatpush1.msra.mxu0 %v3354
    %3447 = vmatprep.subr.mxu0 0.0
    %3448 = vmatpush1.msra.mxu0 %v3355
    %3449 = vmatprep.subr.mxu0 0.0
    %3450 = vmatpush1.msra.mxu0 %v3356
    %3451 = vmatprep.subr.mxu0 0.0
    %3452 = vmatpush1.msra.mxu0 %v3357
    %3453 = vmatprep.subr.mxu0 0.0
    %3454 = vmatpush1.msra.mxu0 %v3358
    %3455 = vmatprep.mubr.f32.mxu0 %v3118
    %3456 = vmatmul.mubr.f32.gmra.mrb[0].mxu0 %v3117
    %v3457 = vpop.f32.mrb[0].mxu0
    %v3458 = vadd.f32 0.0, %v3457
    %v3459 = vpop.f32.mrb[0].mxu0
    %3460 = vdwg.mxu0
    %3461 = vmatprep.subr.mxu0 0.0
    %3462 = vmatpush1.msra.mxu0 %v3359
    %3463 = vmatprep.subr.mxu0 0.0
    %3464 = vmatpush1.msra.mxu0 %v3360
    %3465 = vmatprep.subr.mxu0 0.0
    %3466 = vmatpush1.msra.mxu0 %v3361
    %3467 = vmatprep.subr.mxu0 0.0
    %3468 = vmatpush1.msra.mxu0 %v3362
    %3469 = vmatprep.subr.mxu0 0.0
    %3470 = vmatpush1.msra.mxu0 %v3363
    %3471 = vmatprep.subr.mxu0 0.0
    %3472 = vmatpush1.msra.mxu0 %v3364
    %3473 = vmatprep.subr.mxu0 0.0
    %3474 = vmatpush1.msra.mxu0 %v3365
    %3475 = vmatprep.subr.mxu0 0.0
    %3476 = vmatpush1.msra.mxu0 %v3366
    %3477 = vmatprep.subr.mxu0 0.0
    %3478 = vmatpush1.msra.mxu0 %v3367
    %3479 = vmatprep.subr.mxu0 0.0
    %3480 = vmatpush1.msra.mxu0 %v3368
    %3481 = vmatprep.subr.mxu0 0.0
    %3482 = vmatpush1.msra.mxu0 %v3369
    %3483 = vmatprep.subr.mxu0 0.0
    %3484 = vmatpush1.msra.mxu0 %v3370
    %3485 = vmatprep.subr.mxu0 0.0
    %3486 = vmatpush1.msra.mxu0 %v3371
    %3487 = vmatprep.subr.mxu0 0.0
    %3488 = vmatpush1.msra.mxu0 %v3372
    %3489 = vmatprep.subr.mxu0 0.0
    %3490 = vmatpush1.msra.mxu0 %v3373
    %3491 = vmatprep.subr.mxu0 0.0
    %3492 = vmatpush1.msra.mxu0 %v3374
    %3493 = vmatprep.subr.mxu0 0.0
    %3494 = vmatpush1.msra.mxu0 %v3375
    %3495 = vmatprep.subr.mxu0 0.0
    %3496 = vmatpush1.msra.mxu0 %v3376
    %3497 = vmatprep.subr.mxu0 0.0
    %3498 = vmatpush1.msra.mxu0 %v3377
    %3499 = vmatprep.subr.mxu0 0.0
    %3500 = vmatpush1.msra.mxu0 %v3378
    %3501 = vmatprep.subr.mxu0 0.0
    %3502 = vmatpush1.msra.mxu0 %v3379
    %3503 = vmatprep.subr.mxu0 0.0
    %3504 = vmatpush1.msra.mxu0 %v3380
    %3505 = vmatprep.subr.mxu0 0.0
    %3506 = vmatpush1.msra.mxu0 %v3381
    %3507 = vmatprep.subr.mxu0 0.0
    %3508 = vmatpush1.msra.mxu0 %v3382
    %3509 = vmatprep.subr.mxu0 0.0
    %3510 = vmatpush1.msra.mxu0 %v3383
    %3511 = vmatprep.subr.mxu0 0.0
    %3512 = vmatpush1.msra.mxu0 %v3384
    %3513 = vmatprep.subr.mxu0 0.0
    %3514 = vmatpush1.msra.mxu0 %v3385
    %3515 = vmatprep.subr.mxu0 0.0
    %3516 = vmatpush1.msra.mxu0 %v3386
    %3517 = vmatprep.subr.mxu0 0.0
    %3518 = vmatpush1.msra.mxu0 %v3387
    %3519 = vmatprep.subr.mxu0 0.0
    %3520 = vmatpush1.msra.mxu0 %v3388
    %3521 = vmatprep.subr.mxu0 0.0
    %3522 = vmatpush1.msra.mxu0 %v3389
    %3523 = vmatprep.subr.mxu0 0.0
    %3524 = vmatpush1.msra.mxu0 %v3390
    %3525 = vmatprep.mubr.f32.mxu0 %v3120
    %3526 = vmatmul.mubr.f32.gmra.mrb[0].mxu0 %v3119
    %v3527 = vpop.f32.mrb[0].mxu0
    %v3528 = vadd.f32 %v3458, %v3527
    %v3529 = vpop.f32.mrb[0].mxu0
    %3530 = vdwg.mxu0
    %vm3531 = vcmask 24576
    %v3532 = vsel %vm3531, %v3528, 0.0
    %3533 = vadd.xlane.f32.xlu0 %v3532
    %v3534 = vpop.xlane.xlu0 %3533
    %vm3535 = vcmask 0
    %3536 = vst.msk [vmem:[#allocation6] sm:$0x1] %vm3535, %v3534
    // Predicated region
    $region14: #{tpu_custom_call.1} parent=1 // pred_check
      _
    $region15: #{tpu_custom_call.1} parent=1 // pred_check_branch
      %3538 = sbr.rel (0) target = $region17
    $region16: #{tpu_custom_call.1} parent=1 // pred_region
      _
    $region17: #{tpu_custom_call.1} parent=1 // pred_fallthru
      _
    // Predicated region
    $region18: #{tpu_custom_call.1} parent=1 // pred_check
      _
    $region19: #{tpu_custom_call.1} parent=1 // pred_check_branch
      %3540 = sbr.rel (0) target = $region21
    $region20: #{tpu_custom_call.1} parent=1 // pred_region
      %s3542 = ssub.s32 64, 64
      %3543 = vsyncadd [#allocation3], %s3542
      %s3545 = sshll.u32 [#allocation2], 4
      %s3546 = int_to_ptr.vmem [resolvable:$true] %s3545
      %3548 = dma.vmem_to_hbm [thread:$0]  %s3546, 64, %s4, [#allocation3]
    $region21: #{tpu_custom_call.1} parent=1 // pred_fallthru
      _
    // Predicated region
    $region22: #{tpu_custom_call.1} parent=1 // pred_check
      _
    $region23: #{tpu_custom_call.1} parent=1 // pred_check_branch
      %3550 = sbr.rel (0) target = $region25
    $region24: #{tpu_custom_call.1} parent=1 // pred_region
      %s3552 = ssub.s32 16, 16
      %3553 = vsyncadd [#allocation5], %s3552
      %s3555 = sshll.u32 [#allocation4], 4
      %s3556 = int_to_ptr.vmem [resolvable:$true] %s3555
      %3558 = dma.vmem_to_hbm [thread:$0]  %s3556, 16, %s5, [#allocation5]
    $region25: #{tpu_custom_call.1} parent=1 // pred_fallthru
      _
    // Predicated region
    $region26: #{tpu_custom_call.1} parent=1 // pred_check
      _
    $region27: #{tpu_custom_call.1} parent=1 // pred_check_branch
      %3560 = sbr.rel (0) target = $region29
    $region28: #{tpu_custom_call.1} parent=1 // pred_region
      %s3562 = ssub.s32 16, 16
      %3563 = vsyncadd [#allocation5], %s3562
      %s3565 = sshll.u32 [#allocation6], 4
      %s3566 = int_to_ptr.vmem [resolvable:$true] %s3565
      %3568 = dma.vmem_to_hbm [thread:$0]  %s3566, 16, %s6, [#allocation5]
    $region29: #{tpu_custom_call.1} parent=1 // pred_fallthru
      _
    // Predicated region
    $region30: #{tpu_custom_call.1} parent=1 // pred_check
      _
    $region31: #{tpu_custom_call.1} parent=1 // pred_check_branch
      %3570 = sbr.rel (0) target = $region33
    $region32: #{tpu_custom_call.1} parent=1 // pred_region
      _
    $region33: #{tpu_custom_call.1} parent=1 // pred_fallthru
      _
    // Predicated region
    $region34: #{tpu_custom_call.1} parent=1 // pred_check
      _
    $region35: #{tpu_custom_call.1} parent=1 // pred_check_branch
      %3572 = sbr.rel (0) target = $region37
    $region36: #{tpu_custom_call.1} parent=1 // pred_region
      %3573 = dma.done [#allocation3], 64
    $region37: #{tpu_custom_call.1} parent=1 // pred_fallthru
      _
    // Predicated region
    $region38: #{tpu_custom_call.1} parent=1 // pred_check
      _
    $region39: #{tpu_custom_call.1} parent=1 // pred_check_branch
      %3575 = sbr.rel (0) target = $region41
    $region40: #{tpu_custom_call.1} parent=1 // pred_region
      %3576 = dma.done [#allocation5], 16
    $region41: #{tpu_custom_call.1} parent=1 // pred_fallthru
      _
    // Predicated region
    $region42: #{tpu_custom_call.1} parent=1 // pred_check
      _
    $region43: #{tpu_custom_call.1} parent=1 // pred_check_branch
      %3578 = sbr.rel (0) target = $region45
    $region44: #{tpu_custom_call.1} parent=1 // pred_region
      %3579 = dma.done [#allocation5], 16
    $region45: #{tpu_custom_call.1} parent=1 // pred_fallthru
      _
    %3580 = vsyncpa [#allocation3], 1
    %3581 = vsyncpa [#allocation5], 1

</llo_original>
